<compile_context>
chip_gen: v5e
topology: v5e:2x2
jax: 0.10.0
libtpu: 0.0.40
codegen_flags: <defaults>
</compile_context>

<pallas_src>
import functools
import numpy as np
import jax
import jax.numpy as jnp
from jax.experimental import pallas as pl
from jax.experimental.pallas import tpu as pltpu  # noqa: F401  (TPU backend)

IN_FEATURES = 225   # lstm_layer1 input size
HIDDEN = 5          # hidden size of both LSTMs and both Linear layers
NUM_LAYERS = 2      # layers per nn.LSTM
GATES = 4 * HIDDEN  # 20
PIECE_ROWS = 8      # each packed parameter piece starts on an 8-row boundary


def _sigmoid(z):
    # tanh-form sigmoid: a single native EUP tanh (exact), no exp+recip chain.
    return 0.5 * jnp.tanh(0.5 * z) + 0.5


def _lstm_layer(x2d, w_ih, w_hh, b, T, Bp):
    """One LSTM layer over the whole sequence.

    x2d  : (T*Bp, in) traced value, rows ordered time-major (t*Bp + b).
    w_ih : (in, 4H) value (pre-transposed), w_hh: (H, 4H), b: (1, 4H)
           = b_ih + b_hh.  PyTorch gate order i, f, g, o.
    Returns (T*Bp, H) value (time-major rows).
    """
    H = HIDDEN
    G = GATES
    # Batched input projection + bias: ONE MXU matmul for all timesteps.
    gates_x = jnp.dot(x2d, w_ih, preferred_element_type=jnp.float32) + b  # (T*Bp, 4H)

    # Hoist the H recurrent-weight rows (slice + broadcast ONCE, outside the
    # unrolled time loop -- JAX does not CSE broadcast_in_dim).
    wh_rows = [jnp.broadcast_to(w_hh[k:k + 1, :], (Bp, G)) for k in range(H)]

    h = jnp.zeros((Bp, H), jnp.float32)
    c = jnp.zeros((Bp, H), jnp.float32)
    hs = []
    # T is small and static -> unroll.  Only this tiny 20-lane update is serial.
    for t in range(T):
        gx = gates_x[t * Bp:(t + 1) * Bp, :]          # aligned (Bp=8) slice
        # h @ W_hh on the fused (Bp, 4H) slab, tree-reduced to shorten the
        # dependent VALU chain (latency-bound recurrence).
        p0 = h[:, 0:1] * wh_rows[0]
        p1 = h[:, 1:2] * wh_rows[1]
        p2 = h[:, 2:3] * wh_rows[2]
        p3 = h[:, 3:4] * wh_rows[3]
        p4 = h[:, 4:5] * wh_rows[4]
        a = ((p0 + p1) + (p2 + p3)) + (p4 + gx)       # (Bp, 4H)
        # One slab sigmoid + one slab tanh; slice gates afterwards.
        s = _sigmoid(a)
        th = jnp.tanh(a)
        i = s[:, 0 * H:1 * H]
        f = s[:, 1 * H:2 * H]
        g = th[:, 2 * H:3 * H]
        o = s[:, 3 * H:4 * H]
        c = f * c + i * g
        h = o * jnp.tanh(c)
        hs.append(h)
    # Keep the sequence in vregs; aligned concat, no per-timestep VMEM stores.
    return jnp.concatenate(hs, axis=0)                # (T*Bp, H)


def cnn_lstm_kernel(x_ref, wih_a0_ref, slab_ref, out_ref, *, T, Bp):
    # x_ref: (T*Bp, 225) time-major rows.  wih_a0_ref: (225, 4H).
    # slab_ref: (15*8, 4H) packed small params.  out_ref: (T*Bp, 5).
    H = HIDDEN
    G = GATES
    slab = slab_ref[...]

    def piece(idx, rows, cols):
        r0 = idx * PIECE_ROWS                          # 8-row-aligned offset
        return slab[r0:r0 + rows, 0:cols]

    whh_a0 = piece(0, H, G)
    b_a0 = piece(1, 1, G)
    wih_a1 = piece(2, H, G)
    whh_a1 = piece(3, H, G)
    b_a1 = piece(4, 1, G)
    w_l1 = piece(5, H, H)
    b_l1 = piece(6, 1, H)
    wih_b0 = piece(7, H, G)
    whh_b0 = piece(8, H, G)
    b_b0 = piece(9, 1, G)
    wih_b1 = piece(10, H, G)
    whh_b1 = piece(11, H, G)
    b_b1 = piece(12, 1, G)
    w_l2 = piece(13, H, H)
    b_l2 = piece(14, 1, H)

    # lstm_layer1 (2 stacked layers)
    y = _lstm_layer(x_ref[...], wih_a0_ref[...], whh_a0, b_a0, T, Bp)
    y = _lstm_layer(y, wih_a1, whh_a1, b_a1, T, Bp)
    # dp1: Dropout(0.5) is identity at inference.
    # TODO(synk): training-mode dropout (random mask) not implemented.
    # Linear(5,5) + ReLU -- batched over all timesteps.
    y = jnp.maximum(
        jnp.dot(y, w_l1, preferred_element_type=jnp.float32) + b_l1, 0.0)
    # lstm_layer2 (2 stacked layers)
    y = _lstm_layer(y, wih_b0, whh_b0, b_b0, T, Bp)
    y = _lstm_layer(y, wih_b1, whh_b1, b_b1, T, Bp)
    # dp2 identity, Linear(5,5) + Sigmoid -- batched; single bulk store.
    z = jnp.dot(y, w_l2, preferred_element_type=jnp.float32) + b_l2
    out_ref[...] = _sigmoid(z)


# --------- one-time parameter preprocessing (do NOT redo per forward) --------
def _pad_piece(a):
    """Pad a small (rows<=8, cols<=4H) array to an (8, 4H) piece."""
    a = np.asarray(a, np.float32)
    out = np.zeros((PIECE_ROWS, GATES), np.float32)
    out[:a.shape[0], :a.shape[1]] = a
    return out


def prepare_params(params):
    """PyTorch-layout params -> (wih_a0 (225,4H), slab (15*8,4H)) (done once)."""
    def lstm_pieces(layers, skip_first_wih):
        pieces = []
        for li, (w_ih, w_hh, b_ih, b_hh) in enumerate(layers):
            if not (skip_first_wih and li == 0):
                pieces.append(_pad_piece(np.asarray(w_ih).T))   # (in<=5, 4H)
            pieces.append(_pad_piece(np.asarray(w_hh).T))       # (H, 4H)
            pieces.append(_pad_piece(
                (np.asarray(b_ih) + np.asarray(b_hh)).reshape(1, -1)))
        return pieces

    pieces = []
    pieces += lstm_pieces(params["lstm1"], skip_first_wih=True)   # whh_a0,b_a0,wih_a1,whh_a1,b_a1
    W1, b1 = params["l1"]
    pieces += [_pad_piece(np.asarray(W1).T),
               _pad_piece(np.asarray(b1).reshape(1, -1))]
    pieces += lstm_pieces(params["lstm2"], skip_first_wih=False)  # wih_b0..b_b1
    W2, b2 = params["l2"]
    pieces += [_pad_piece(np.asarray(W2).T),
               _pad_piece(np.asarray(b2).reshape(1, -1))]
    assert len(pieces) == 15
    slab = jnp.asarray(np.concatenate(pieces, axis=0))            # (120, 4H)

    w_ih_a0 = jnp.asarray(np.asarray(params["lstm1"][0][0]).T, jnp.float32)  # (225, 4H)
    return (w_ih_a0, slab)


def cnn_lstm_forward(x, prepared):
    """x: (B, T, 225) float32, prepared = prepare_params(params) -> (B, T, 5)."""
    B, T, F = x.shape
    assert F == IN_FEATURES
    wih_a0, slab = prepared

    # Pad batch to a full sublane group so every per-timestep slice inside the
    # kernel is sublane-aligned; extra rows are zero and sliced away below.
    Bp = max(8, ((B + 7) // 8) * 8)
    x_tm = jnp.transpose(x, (1, 0, 2))                    # (T, B, F) time-major
    x_tm = jnp.pad(x_tm, ((0, 0), (0, Bp - B), (0, 0)))
    x2d = x_tm.reshape(T * Bp, F)

    kernel = functools.partial(cnn_lstm_kernel, T=T, Bp=Bp)
    out2d = pl.pallas_call(
        kernel,
        grid=(1,),
        in_specs=[pl.BlockSpec(x2d.shape, lambda i: (0, 0)),
                  pl.BlockSpec(wih_a0.shape, lambda i: (0, 0)),
                  pl.BlockSpec(slab.shape, lambda i: (0, 0))],
        out_specs=pl.BlockSpec((T * Bp, HIDDEN), lambda i: (0, 0)),
        out_shape=jax.ShapeDtypeStruct((T * Bp, HIDDEN), jnp.float32),
    )(x2d, wih_a0, slab)

    out = out2d.reshape(T, Bp, HIDDEN)[:, :B, :]          # drop batch padding
    return jnp.transpose(out, (1, 0, 2))                  # (B, T, 5)


# ---------------- deterministic parameter init (PyTorch-shaped) --------------
def init_params(key, scale=0.3):
    keys = iter(jax.random.split(key, 32))

    def u(shape):
        return jax.random.uniform(next(keys), shape, jnp.float32, -scale, scale)

    def lstm_params(input_size):
        layers = []
        for layer in range(NUM_LAYERS):
            in_sz = input_size if layer == 0 else HIDDEN
            layers.append((u((4 * HIDDEN, in_sz)),   # weight_ih_l{k}
                           u((4 * HIDDEN, HIDDEN)),  # weight_hh_l{k}
                           u((4 * HIDDEN,)),         # bias_ih_l{k}
                           u((4 * HIDDEN,))))        # bias_hh_l{k}
        return layers

    return {
        "lstm1": lstm_params(IN_FEATURES),
        "l1": (u((HIDDEN, HIDDEN)), u((HIDDEN,))),
        "lstm2": lstm_params(HIDDEN),
        "l2": (u((HIDDEN, HIDDEN)), u((HIDDEN,))),
    }


# ---------------- pure-JAX reference (for correctness check) -----------------
def _lstm_ref(x, layers):
    B, T, _ = x.shape
    out = x
    for (w_ih, w_hh, b_ih, b_hh) in layers:
        H = w_hh.shape[1]
        h = jnp.zeros((B, H), jnp.float32)
        c = jnp.zeros((B, H), jnp.float32)
        ys = []
        for t in range(T):
            gates = out[:, t, :] @ w_ih.T + h @ w_hh.T + b_ih + b_hh
            i = jax.nn.sigmoid(gates[:, :H])
            f = jax.nn.sigmoid(gates[:, H:2 * H])
            g = jnp.tanh(gates[:, 2 * H:3 * H])
            o = jax.nn.sigmoid(gates[:, 3 * H:])
            c = f * c + i * g
            h = o * jnp.tanh(c)
            ys.append(h)
        out = jnp.stack(ys, axis=1)
    return out


def forward_ref(x, params):
    y = _lstm_ref(x, params["lstm1"])
    W1, b1 = params["l1"]
    y = jnp.maximum(y @ W1.T + b1, 0.0)
    y = _lstm_ref(y, params["lstm2"])
    W2, b2 = params["l2"]
    return jax.nn.sigmoid(y @ W2.T + b2)


if __name__ == "__main__":
    key = jax.random.PRNGKey(0)
    kx, kp = jax.random.split(key)
    B, T = 2, 8
    x = jax.random.normal(kx, (B, T, IN_FEATURES), jnp.float32) * 0.5
    params = init_params(kp)
    prepared = prepare_params(params)   # one-time weight layout preprocessing

    out = cnn_lstm_forward(x, prepared)
    out = jax.block_until_ready(out)

    ref = forward_ref(x, params)
    assert out.shape == (B, T, HIDDEN), out.shape
    assert bool(jnp.all(jnp.isfinite(out)))
    np.testing.assert_allclose(np.asarray(out), np.asarray(ref),
                               rtol=1e-3, atol=1e-3)
    print("KERNEL_OK")
</pallas_src>

<mosaic_0001>
module attributes {stable_mosaic.version = 11 : i64} {
  func.func @cnn_lstm_kernel(%arg0: i32, %arg1: memref<64x225xf32, #tpu.memory_space<vmem>>, %arg2: memref<225x20xf32, #tpu.memory_space<vmem>>, %arg3: memref<120x20xf32, #tpu.memory_space<vmem>>, %arg4: memref<64x5xf32, #tpu.memory_space<vmem>>) attributes {dimension_semantics = [#tpu.dimension_semantics<arbitrary>], iteration_bounds = array<i64: 1>, scalar_prefetch = 0 : i64, scratch_operands = 0 : i64, tpu.core_type = #tpu.core_type<tc>, window_params = [{pipeline_mode = #tpu.pipeline_mode<synchronous>, transform_indices = @transform_0, window_bounds = array<i64: 64, 225>}, {pipeline_mode = #tpu.pipeline_mode<synchronous>, transform_indices = @transform_1, window_bounds = array<i64: 225, 20>}, {pipeline_mode = #tpu.pipeline_mode<synchronous>, transform_indices = @transform_2, window_bounds = array<i64: 120, 20>}, {pipeline_mode = #tpu.pipeline_mode<synchronous>, transform_indices = @transform_3, window_bounds = array<i64: 64, 5>}]} {
    %c0 = arith.constant 0 : index
    %c0_0 = arith.constant 0 : index
    %0 = vector.load %arg3[%c0, %c0_0] : memref<120x20xf32, #tpu.memory_space<vmem>>, vector<120x20xf32>
    %1 = vector.extract_strided_slice %0 {offsets = [0, 0], sizes = [5, 20], strides = [1, 1]} : vector<120x20xf32> to vector<5x20xf32>
    %2 = vector.extract_strided_slice %0 {offsets = [8, 0], sizes = [1, 20], strides = [1, 1]} : vector<120x20xf32> to vector<1x20xf32>
    %3 = vector.extract_strided_slice %0 {offsets = [16, 0], sizes = [5, 20], strides = [1, 1]} : vector<120x20xf32> to vector<5x20xf32>
    %4 = vector.extract_strided_slice %0 {offsets = [24, 0], sizes = [5, 20], strides = [1, 1]} : vector<120x20xf32> to vector<5x20xf32>
    %5 = vector.extract_strided_slice %0 {offsets = [32, 0], sizes = [1, 20], strides = [1, 1]} : vector<120x20xf32> to vector<1x20xf32>
    %6 = vector.extract_strided_slice %0 {offsets = [40, 0], sizes = [5, 5], strides = [1, 1]} : vector<120x20xf32> to vector<5x5xf32>
    %7 = vector.extract_strided_slice %0 {offsets = [48, 0], sizes = [1, 5], strides = [1, 1]} : vector<120x20xf32> to vector<1x5xf32>
    %8 = vector.extract_strided_slice %0 {offsets = [56, 0], sizes = [5, 20], strides = [1, 1]} : vector<120x20xf32> to vector<5x20xf32>
    %9 = vector.extract_strided_slice %0 {offsets = [64, 0], sizes = [5, 20], strides = [1, 1]} : vector<120x20xf32> to vector<5x20xf32>
    %10 = vector.extract_strided_slice %0 {offsets = [72, 0], sizes = [1, 20], strides = [1, 1]} : vector<120x20xf32> to vector<1x20xf32>
    %11 = vector.extract_strided_slice %0 {offsets = [80, 0], sizes = [5, 20], strides = [1, 1]} : vector<120x20xf32> to vector<5x20xf32>
    %12 = vector.extract_strided_slice %0 {offsets = [88, 0], sizes = [5, 20], strides = [1, 1]} : vector<120x20xf32> to vector<5x20xf32>
    %13 = vector.extract_strided_slice %0 {offsets = [96, 0], sizes = [1, 20], strides = [1, 1]} : vector<120x20xf32> to vector<1x20xf32>
    %14 = vector.extract_strided_slice %0 {offsets = [104, 0], sizes = [5, 5], strides = [1, 1]} : vector<120x20xf32> to vector<5x5xf32>
    %15 = vector.extract_strided_slice %0 {offsets = [112, 0], sizes = [1, 5], strides = [1, 1]} : vector<120x20xf32> to vector<1x5xf32>
    %c0_1 = arith.constant 0 : index
    %c0_2 = arith.constant 0 : index
    %16 = vector.load %arg1[%c0_1, %c0_2] : memref<64x225xf32, #tpu.memory_space<vmem>>, vector<64x225xf32>
    %c0_3 = arith.constant 0 : index
    %c0_4 = arith.constant 0 : index
    %17 = vector.load %arg2[%c0_3, %c0_4] : memref<225x20xf32, #tpu.memory_space<vmem>>, vector<225x20xf32>
    %cst = arith.constant dense<0.000000e+00> : vector<64x20xf32>
    %18 = tpu.matmul %16, %17, %cst {dimension_numbers = #tpu.dot_dimension_numbers<[1], [0], [0], [1], [0, 0, 1, 1], [], []>} : vector<64x225xf32>, vector<225x20xf32>, vector<64x20xf32> -> vector<64x20xf32>
    %19 = vector.broadcast %2 : vector<1x20xf32> to vector<64x20xf32>
    %20 = arith.addf %18, %19 : vector<64x20xf32>
    %21 = vector.extract_strided_slice %1 {offsets = [0, 0], sizes = [1, 20], strides = [1, 1]} : vector<5x20xf32> to vector<1x20xf32>
    %22 = vector.shape_cast %21 : vector<1x20xf32> to vector<1x20xf32>
    %23 = vector.broadcast %22 : vector<1x20xf32> to vector<8x20xf32>
    %24 = vector.extract_strided_slice %1 {offsets = [1, 0], sizes = [1, 20], strides = [1, 1]} : vector<5x20xf32> to vector<1x20xf32>
    %25 = vector.shape_cast %24 : vector<1x20xf32> to vector<1x20xf32>
    %26 = vector.broadcast %25 : vector<1x20xf32> to vector<8x20xf32>
    %27 = vector.extract_strided_slice %1 {offsets = [2, 0], sizes = [1, 20], strides = [1, 1]} : vector<5x20xf32> to vector<1x20xf32>
    %28 = vector.shape_cast %27 : vector<1x20xf32> to vector<1x20xf32>
    %29 = vector.broadcast %28 : vector<1x20xf32> to vector<8x20xf32>
    %30 = vector.extract_strided_slice %1 {offsets = [3, 0], sizes = [1, 20], strides = [1, 1]} : vector<5x20xf32> to vector<1x20xf32>
    %31 = vector.shape_cast %30 : vector<1x20xf32> to vector<1x20xf32>
    %32 = vector.broadcast %31 : vector<1x20xf32> to vector<8x20xf32>
    %33 = vector.extract_strided_slice %1 {offsets = [4, 0], sizes = [1, 20], strides = [1, 1]} : vector<5x20xf32> to vector<1x20xf32>
    %34 = vector.shape_cast %33 : vector<1x20xf32> to vector<1x20xf32>
    %35 = vector.broadcast %34 : vector<1x20xf32> to vector<8x20xf32>
    %cst_5 = arith.constant 0.000000e+00 : f32
    %36 = vector.broadcast %cst_5 : f32 to vector<8x5xf32>
    %cst_6 = arith.constant 0.000000e+00 : f32
    %37 = vector.broadcast %cst_6 : f32 to vector<8x5xf32>
    %38 = vector.extract_strided_slice %20 {offsets = [0, 0], sizes = [8, 20], strides = [1, 1]} : vector<64x20xf32> to vector<8x20xf32>
    %39 = vector.extract_strided_slice %36 {offsets = [0, 0], sizes = [8, 1], strides = [1, 1]} : vector<8x5xf32> to vector<8x1xf32>
    %40 = vector.broadcast %39 : vector<8x1xf32> to vector<8x20xf32>
    %41 = arith.mulf %40, %23 : vector<8x20xf32>
    %42 = vector.extract_strided_slice %36 {offsets = [0, 1], sizes = [8, 1], strides = [1, 1]} : vector<8x5xf32> to vector<8x1xf32>
    %43 = vector.broadcast %42 : vector<8x1xf32> to vector<8x20xf32>
    %44 = arith.mulf %43, %26 : vector<8x20xf32>
    %45 = vector.extract_strided_slice %36 {offsets = [0, 2], sizes = [8, 1], strides = [1, 1]} : vector<8x5xf32> to vector<8x1xf32>
    %46 = vector.broadcast %45 : vector<8x1xf32> to vector<8x20xf32>
    %47 = arith.mulf %46, %29 : vector<8x20xf32>
    %48 = vector.extract_strided_slice %36 {offsets = [0, 3], sizes = [8, 1], strides = [1, 1]} : vector<8x5xf32> to vector<8x1xf32>
    %49 = vector.broadcast %48 : vector<8x1xf32> to vector<8x20xf32>
    %50 = arith.mulf %49, %32 : vector<8x20xf32>
    %51 = vector.extract_strided_slice %36 {offsets = [0, 4], sizes = [8, 1], strides = [1, 1]} : vector<8x5xf32> to vector<8x1xf32>
    %52 = vector.broadcast %51 : vector<8x1xf32> to vector<8x20xf32>
    %53 = arith.mulf %52, %35 : vector<8x20xf32>
    %54 = arith.addf %41, %44 : vector<8x20xf32>
    %55 = arith.addf %47, %50 : vector<8x20xf32>
    %56 = arith.addf %54, %55 : vector<8x20xf32>
    %57 = arith.addf %53, %38 : vector<8x20xf32>
    %58 = arith.addf %56, %57 : vector<8x20xf32>
    %cst_7 = arith.constant 5.000000e-01 : f32
    %59 = vector.broadcast %cst_7 : f32 to vector<8x20xf32>
    %60 = arith.mulf %59, %58 : vector<8x20xf32>
    %61 = math.tanh %60 : vector<8x20xf32>
    %cst_8 = arith.constant 5.000000e-01 : f32
    %62 = vector.broadcast %cst_8 : f32 to vector<8x20xf32>
    %63 = arith.mulf %62, %61 : vector<8x20xf32>
    %cst_9 = arith.constant 5.000000e-01 : f32
    %64 = vector.broadcast %cst_9 : f32 to vector<8x20xf32>
    %65 = arith.addf %63, %64 : vector<8x20xf32>
    %66 = math.tanh %58 : vector<8x20xf32>
    %67 = vector.extract_strided_slice %65 {offsets = [0, 0], sizes = [8, 5], strides = [1, 1]} : vector<8x20xf32> to vector<8x5xf32>
    %68 = vector.extract_strided_slice %65 {offsets = [0, 5], sizes = [8, 5], strides = [1, 1]} : vector<8x20xf32> to vector<8x5xf32>
    %69 = vector.extract_strided_slice %66 {offsets = [0, 10], sizes = [8, 5], strides = [1, 1]} : vector<8x20xf32> to vector<8x5xf32>
    %70 = vector.extract_strided_slice %65 {offsets = [0, 15], sizes = [8, 5], strides = [1, 1]} : vector<8x20xf32> to vector<8x5xf32>
    %71 = arith.mulf %68, %37 : vector<8x5xf32>
    %72 = arith.mulf %67, %69 : vector<8x5xf32>
    %73 = arith.addf %71, %72 : vector<8x5xf32>
    %74 = math.tanh %73 : vector<8x5xf32>
    %75 = arith.mulf %70, %74 : vector<8x5xf32>
    %76 = vector.extract_strided_slice %20 {offsets = [8, 0], sizes = [8, 20], strides = [1, 1]} : vector<64x20xf32> to vector<8x20xf32>
    %77 = vector.extract_strided_slice %75 {offsets = [0, 0], sizes = [8, 1], strides = [1, 1]} : vector<8x5xf32> to vector<8x1xf32>
    %78 = vector.broadcast %77 : vector<8x1xf32> to vector<8x20xf32>
    %79 = arith.mulf %78, %23 : vector<8x20xf32>
    %80 = vector.extract_strided_slice %75 {offsets = [0, 1], sizes = [8, 1], strides = [1, 1]} : vector<8x5xf32> to vector<8x1xf32>
    %81 = vector.broadcast %80 : vector<8x1xf32> to vector<8x20xf32>
    %82 = arith.mulf %81, %26 : vector<8x20xf32>
    %83 = vector.extract_strided_slice %75 {offsets = [0, 2], sizes = [8, 1], strides = [1, 1]} : vector<8x5xf32> to vector<8x1xf32>
    %84 = vector.broadcast %83 : vector<8x1xf32> to vector<8x20xf32>
    %85 = arith.mulf %84, %29 : vector<8x20xf32>
    %86 = vector.extract_strided_slice %75 {offsets = [0, 3], sizes = [8, 1], strides = [1, 1]} : vector<8x5xf32> to vector<8x1xf32>
    %87 = vector.broadcast %86 : vector<8x1xf32> to vector<8x20xf32>
    %88 = arith.mulf %87, %32 : vector<8x20xf32>
    %89 = vector.extract_strided_slice %75 {offsets = [0, 4], sizes = [8, 1], strides = [1, 1]} : vector<8x5xf32> to vector<8x1xf32>
    %90 = vector.broadcast %89 : vector<8x1xf32> to vector<8x20xf32>
    %91 = arith.mulf %90, %35 : vector<8x20xf32>
    %92 = arith.addf %79, %82 : vector<8x20xf32>
    %93 = arith.addf %85, %88 : vector<8x20xf32>
    %94 = arith.addf %92, %93 : vector<8x20xf32>
    %95 = arith.addf %91, %76 : vector<8x20xf32>
    %96 = arith.addf %94, %95 : vector<8x20xf32>
    %cst_10 = arith.constant 5.000000e-01 : f32
    %97 = vector.broadcast %cst_10 : f32 to vector<8x20xf32>
    %98 = arith.mulf %97, %96 : vector<8x20xf32>
    %99 = math.tanh %98 : vector<8x20xf32>
    %cst_11 = arith.constant 5.000000e-01 : f32
    %100 = vector.broadcast %cst_11 : f32 to vector<8x20xf32>
    %101 = arith.mulf %100, %99 : vector<8x20xf32>
    %cst_12 = arith.constant 5.000000e-01 : f32
    %102 = vector.broadcast %cst_12 : f32 to vector<8x20xf32>
    %103 = arith.addf %101, %102 : vector<8x20xf32>
    %104 = math.tanh %96 : vector<8x20xf32>
    %105 = vector.extract_strided_slice %103 {offsets = [0, 0], sizes = [8, 5], strides = [1, 1]} : vector<8x20xf32> to vector<8x5xf32>
    %106 = vector.extract_strided_slice %103 {offsets = [0, 5], sizes = [8, 5], strides = [1, 1]} : vector<8x20xf32> to vector<8x5xf32>
    %107 = vector.extract_strided_slice %104 {offsets = [0, 10], sizes = [8, 5], strides = [1, 1]} : vector<8x20xf32> to vector<8x5xf32>
    %108 = vector.extract_strided_slice %103 {offsets = [0, 15], sizes = [8, 5], strides = [1, 1]} : vector<8x20xf32> to vector<8x5xf32>
    %109 = arith.mulf %106, %73 : vector<8x5xf32>
    %110 = arith.mulf %105, %107 : vector<8x5xf32>
    %111 = arith.addf %109, %110 : vector<8x5xf32>
    %112 = math.tanh %111 : vector<8x5xf32>
    %113 = arith.mulf %108, %112 : vector<8x5xf32>
    %114 = vector.extract_strided_slice %20 {offsets = [16, 0], sizes = [8, 20], strides = [1, 1]} : vector<64x20xf32> to vector<8x20xf32>
    %115 = vector.extract_strided_slice %113 {offsets = [0, 0], sizes = [8, 1], strides = [1, 1]} : vector<8x5xf32> to vector<8x1xf32>
    %116 = vector.broadcast %115 : vector<8x1xf32> to vector<8x20xf32>
    %117 = arith.mulf %116, %23 : vector<8x20xf32>
    %118 = vector.extract_strided_slice %113 {offsets = [0, 1], sizes = [8, 1], strides = [1, 1]} : vector<8x5xf32> to vector<8x1xf32>
    %119 = vector.broadcast %118 : vector<8x1xf32> to vector<8x20xf32>
    %120 = arith.mulf %119, %26 : vector<8x20xf32>
    %121 = vector.extract_strided_slice %113 {offsets = [0, 2], sizes = [8, 1], strides = [1, 1]} : vector<8x5xf32> to vector<8x1xf32>
    %122 = vector.broadcast %121 : vector<8x1xf32> to vector<8x20xf32>
    %123 = arith.mulf %122, %29 : vector<8x20xf32>
    %124 = vector.extract_strided_slice %113 {offsets = [0, 3], sizes = [8, 1], strides = [1, 1]} : vector<8x5xf32> to vector<8x1xf32>
    %125 = vector.broadcast %124 : vector<8x1xf32> to vector<8x20xf32>
    %126 = arith.mulf %125, %32 : vector<8x20xf32>
    %127 = vector.extract_strided_slice %113 {offsets = [0, 4], sizes = [8, 1], strides = [1, 1]} : vector<8x5xf32> to vector<8x1xf32>
    %128 = vector.broadcast %127 : vector<8x1xf32> to vector<8x20xf32>
    %129 = arith.mulf %128, %35 : vector<8x20xf32>
    %130 = arith.addf %117, %120 : vector<8x20xf32>
    %131 = arith.addf %123, %126 : vector<8x20xf32>
    %132 = arith.addf %130, %131 : vector<8x20xf32>
    %133 = arith.addf %129, %114 : vector<8x20xf32>
    %134 = arith.addf %132, %133 : vector<8x20xf32>
    %cst_13 = arith.constant 5.000000e-01 : f32
    %135 = vector.broadcast %cst_13 : f32 to vector<8x20xf32>
    %136 = arith.mulf %135, %134 : vector<8x20xf32>
    %137 = math.tanh %136 : vector<8x20xf32>
    %cst_14 = arith.constant 5.000000e-01 : f32
    %138 = vector.broadcast %cst_14 : f32 to vector<8x20xf32>
    %139 = arith.mulf %138, %137 : vector<8x20xf32>
    %cst_15 = arith.constant 5.000000e-01 : f32
    %140 = vector.broadcast %cst_15 : f32 to vector<8x20xf32>
    %141 = arith.addf %139, %140 : vector<8x20xf32>
    %142 = math.tanh %134 : vector<8x20xf32>
    %143 = vector.extract_strided_slice %141 {offsets = [0, 0], sizes = [8, 5], strides = [1, 1]} : vector<8x20xf32> to vector<8x5xf32>
    %144 = vector.extract_strided_slice %141 {offsets = [0, 5], sizes = [8, 5], strides = [1, 1]} : vector<8x20xf32> to vector<8x5xf32>
    %145 = vector.extract_strided_slice %142 {offsets = [0, 10], sizes = [8, 5], strides = [1, 1]} : vector<8x20xf32> to vector<8x5xf32>
    %146 = vector.extract_strided_slice %141 {offsets = [0, 15], sizes = [8, 5], strides = [1, 1]} : vector<8x20xf32> to vector<8x5xf32>
    %147 = arith.mulf %144, %111 : vector<8x5xf32>
    %148 = arith.mulf %143, %145 : vector<8x5xf32>
    %149 = arith.addf %147, %148 : vector<8x5xf32>
    %150 = math.tanh %149 : vector<8x5xf32>
    %151 = arith.mulf %146, %150 : vector<8x5xf32>
    %152 = vector.extract_strided_slice %20 {offsets = [24, 0], sizes = [8, 20], strides = [1, 1]} : vector<64x20xf32> to vector<8x20xf32>
    %153 = vector.extract_strided_slice %151 {offsets = [0, 0], sizes = [8, 1], strides = [1, 1]} : vector<8x5xf32> to vector<8x1xf32>
    %154 = vector.broadcast %153 : vector<8x1xf32> to vector<8x20xf32>
    %155 = arith.mulf %154, %23 : vector<8x20xf32>
    %156 = vector.extract_strided_slice %151 {offsets = [0, 1], sizes = [8, 1], strides = [1, 1]} : vector<8x5xf32> to vector<8x1xf32>
    %157 = vector.broadcast %156 : vector<8x1xf32> to vector<8x20xf32>
    %158 = arith.mulf %157, %26 : vector<8x20xf32>
    %159 = vector.extract_strided_slice %151 {offsets = [0, 2], sizes = [8, 1], strides = [1, 1]} : vector<8x5xf32> to vector<8x1xf32>
    %160 = vector.broadcast %159 : vector<8x1xf32> to vector<8x20xf32>
    %161 = arith.mulf %160, %29 : vector<8x20xf32>
    %162 = vector.extract_strided_slice %151 {offsets = [0, 3], sizes = [8, 1], strides = [1, 1]} : vector<8x5xf32> to vector<8x1xf32>
    %163 = vector.broadcast %162 : vector<8x1xf32> to vector<8x20xf32>
    %164 = arith.mulf %163, %32 : vector<8x20xf32>
    %165 = vector.extract_strided_slice %151 {offsets = [0, 4], sizes = [8, 1], strides = [1, 1]} : vector<8x5xf32> to vector<8x1xf32>
    %166 = vector.broadcast %165 : vector<8x1xf32> to vector<8x20xf32>
    %167 = arith.mulf %166, %35 : vector<8x20xf32>
    %168 = arith.addf %155, %158 : vector<8x20xf32>
    %169 = arith.addf %161, %164 : vector<8x20xf32>
    %170 = arith.addf %168, %169 : vector<8x20xf32>
    %171 = arith.addf %167, %152 : vector<8x20xf32>
    %172 = arith.addf %170, %171 : vector<8x20xf32>
    %cst_16 = arith.constant 5.000000e-01 : f32
    %173 = vector.broadcast %cst_16 : f32 to vector<8x20xf32>
    %174 = arith.mulf %173, %172 : vector<8x20xf32>
    %175 = math.tanh %174 : vector<8x20xf32>
    %cst_17 = arith.constant 5.000000e-01 : f32
    %176 = vector.broadcast %cst_17 : f32 to vector<8x20xf32>
    %177 = arith.mulf %176, %175 : vector<8x20xf32>
    %cst_18 = arith.constant 5.000000e-01 : f32
    %178 = vector.broadcast %cst_18 : f32 to vector<8x20xf32>
    %179 = arith.addf %177, %178 : vector<8x20xf32>
    %180 = math.tanh %172 : vector<8x20xf32>
    %181 = vector.extract_strided_slice %179 {offsets = [0, 0], sizes = [8, 5], strides = [1, 1]} : vector<8x20xf32> to vector<8x5xf32>
    %182 = vector.extract_strided_slice %179 {offsets = [0, 5], sizes = [8, 5], strides = [1, 1]} : vector<8x20xf32> to vector<8x5xf32>
    %183 = vector.extract_strided_slice %180 {offsets = [0, 10], sizes = [8, 5], strides = [1, 1]} : vector<8x20xf32> to vector<8x5xf32>
    %184 = vector.extract_strided_slice %179 {offsets = [0, 15], sizes = [8, 5], strides = [1, 1]} : vector<8x20xf32> to vector<8x5xf32>
    %185 = arith.mulf %182, %149 : vector<8x5xf32>
    %186 = arith.mulf %181, %183 : vector<8x5xf32>
    %187 = arith.addf %185, %186 : vector<8x5xf32>
    %188 = math.tanh %187 : vector<8x5xf32>
    %189 = arith.mulf %184, %188 : vector<8x5xf32>
    %190 = vector.extract_strided_slice %20 {offsets = [32, 0], sizes = [8, 20], strides = [1, 1]} : vector<64x20xf32> to vector<8x20xf32>
    %191 = vector.extract_strided_slice %189 {offsets = [0, 0], sizes = [8, 1], strides = [1, 1]} : vector<8x5xf32> to vector<8x1xf32>
    %192 = vector.broadcast %191 : vector<8x1xf32> to vector<8x20xf32>
    %193 = arith.mulf %192, %23 : vector<8x20xf32>
    %194 = vector.extract_strided_slice %189 {offsets = [0, 1], sizes = [8, 1], strides = [1, 1]} : vector<8x5xf32> to vector<8x1xf32>
    %195 = vector.broadcast %194 : vector<8x1xf32> to vector<8x20xf32>
    %196 = arith.mulf %195, %26 : vector<8x20xf32>
    %197 = vector.extract_strided_slice %189 {offsets = [0, 2], sizes = [8, 1], strides = [1, 1]} : vector<8x5xf32> to vector<8x1xf32>
    %198 = vector.broadcast %197 : vector<8x1xf32> to vector<8x20xf32>
    %199 = arith.mulf %198, %29 : vector<8x20xf32>
    %200 = vector.extract_strided_slice %189 {offsets = [0, 3], sizes = [8, 1], strides = [1, 1]} : vector<8x5xf32> to vector<8x1xf32>
    %201 = vector.broadcast %200 : vector<8x1xf32> to vector<8x20xf32>
    %202 = arith.mulf %201, %32 : vector<8x20xf32>
    %203 = vector.extract_strided_slice %189 {offsets = [0, 4], sizes = [8, 1], strides = [1, 1]} : vector<8x5xf32> to vector<8x1xf32>
    %204 = vector.broadcast %203 : vector<8x1xf32> to vector<8x20xf32>
    %205 = arith.mulf %204, %35 : vector<8x20xf32>
    %206 = arith.addf %193, %196 : vector<8x20xf32>
    %207 = arith.addf %199, %202 : vector<8x20xf32>
    %208 = arith.addf %206, %207 : vector<8x20xf32>
    %209 = arith.addf %205, %190 : vector<8x20xf32>
    %210 = arith.addf %208, %209 : vector<8x20xf32>
    %cst_19 = arith.constant 5.000000e-01 : f32
    %211 = vector.broadcast %cst_19 : f32 to vector<8x20xf32>
    %212 = arith.mulf %211, %210 : vector<8x20xf32>
    %213 = math.tanh %212 : vector<8x20xf32>
    %cst_20 = arith.constant 5.000000e-01 : f32
    %214 = vector.broadcast %cst_20 : f32 to vector<8x20xf32>
    %215 = arith.mulf %214, %213 : vector<8x20xf32>
    %cst_21 = arith.constant 5.000000e-01 : f32
    %216 = vector.broadcast %cst_21 : f32 to vector<8x20xf32>
    %217 = arith.addf %215, %216 : vector<8x20xf32>
    %218 = math.tanh %210 : vector<8x20xf32>
    %219 = vector.extract_strided_slice %217 {offsets = [0, 0], sizes = [8, 5], strides = [1, 1]} : vector<8x20xf32> to vector<8x5xf32>
    %220 = vector.extract_strided_slice %217 {offsets = [0, 5], sizes = [8, 5], strides = [1, 1]} : vector<8x20xf32> to vector<8x5xf32>
    %221 = vector.extract_strided_slice %218 {offsets = [0, 10], sizes = [8, 5], strides = [1, 1]} : vector<8x20xf32> to vector<8x5xf32>
    %222 = vector.extract_strided_slice %217 {offsets = [0, 15], sizes = [8, 5], strides = [1, 1]} : vector<8x20xf32> to vector<8x5xf32>
    %223 = arith.mulf %220, %187 : vector<8x5xf32>
    %224 = arith.mulf %219, %221 : vector<8x5xf32>
    %225 = arith.addf %223, %224 : vector<8x5xf32>
    %226 = math.tanh %225 : vector<8x5xf32>
    %227 = arith.mulf %222, %226 : vector<8x5xf32>
    %228 = vector.extract_strided_slice %20 {offsets = [40, 0], sizes = [8, 20], strides = [1, 1]} : vector<64x20xf32> to vector<8x20xf32>
    %229 = vector.extract_strided_slice %227 {offsets = [0, 0], sizes = [8, 1], strides = [1, 1]} : vector<8x5xf32> to vector<8x1xf32>
    %230 = vector.broadcast %229 : vector<8x1xf32> to vector<8x20xf32>
    %231 = arith.mulf %230, %23 : vector<8x20xf32>
    %232 = vector.extract_strided_slice %227 {offsets = [0, 1], sizes = [8, 1], strides = [1, 1]} : vector<8x5xf32> to vector<8x1xf32>
    %233 = vector.broadcast %232 : vector<8x1xf32> to vector<8x20xf32>
    %234 = arith.mulf %233, %26 : vector<8x20xf32>
    %235 = vector.extract_strided_slice %227 {offsets = [0, 2], sizes = [8, 1], strides = [1, 1]} : vector<8x5xf32> to vector<8x1xf32>
    %236 = vector.broadcast %235 : vector<8x1xf32> to vector<8x20xf32>
    %237 = arith.mulf %236, %29 : vector<8x20xf32>
    %238 = vector.extract_strided_slice %227 {offsets = [0, 3], sizes = [8, 1], strides = [1, 1]} : vector<8x5xf32> to vector<8x1xf32>
    %239 = vector.broadcast %238 : vector<8x1xf32> to vector<8x20xf32>
    %240 = arith.mulf %239, %32 : vector<8x20xf32>
    %241 = vector.extract_strided_slice %227 {offsets = [0, 4], sizes = [8, 1], strides = [1, 1]} : vector<8x5xf32> to vector<8x1xf32>
    %242 = vector.broadcast %241 : vector<8x1xf32> to vector<8x20xf32>
    %243 = arith.mulf %242, %35 : vector<8x20xf32>
    %244 = arith.addf %231, %234 : vector<8x20xf32>
    %245 = arith.addf %237, %240 : vector<8x20xf32>
    %246 = arith.addf %244, %245 : vector<8x20xf32>
    %247 = arith.addf %243, %228 : vector<8x20xf32>
    %248 = arith.addf %246, %247 : vector<8x20xf32>
    %cst_22 = arith.constant 5.000000e-01 : f32
    %249 = vector.broadcast %cst_22 : f32 to vector<8x20xf32>
    %250 = arith.mulf %249, %248 : vector<8x20xf32>
    %251 = math.tanh %250 : vector<8x20xf32>
    %cst_23 = arith.constant 5.000000e-01 : f32
    %252 = vector.broadcast %cst_23 : f32 to vector<8x20xf32>
    %253 = arith.mulf %252, %251 : vector<8x20xf32>
    %cst_24 = arith.constant 5.000000e-01 : f32
    %254 = vector.broadcast %cst_24 : f32 to vector<8x20xf32>
    %255 = arith.addf %253, %254 : vector<8x20xf32>
    %256 = math.tanh %248 : vector<8x20xf32>
    %257 = vector.extract_strided_slice %255 {offsets = [0, 0], sizes = [8, 5], strides = [1, 1]} : vector<8x20xf32> to vector<8x5xf32>
    %258 = vector.extract_strided_slice %255 {offsets = [0, 5], sizes = [8, 5], strides = [1, 1]} : vector<8x20xf32> to vector<8x5xf32>
    %259 = vector.extract_strided_slice %256 {offsets = [0, 10], sizes = [8, 5], strides = [1, 1]} : vector<8x20xf32> to vector<8x5xf32>
    %260 = vector.extract_strided_slice %255 {offsets = [0, 15], sizes = [8, 5], strides = [1, 1]} : vector<8x20xf32> to vector<8x5xf32>
    %261 = arith.mulf %258, %225 : vector<8x5xf32>
    %262 = arith.mulf %257, %259 : vector<8x5xf32>
    %263 = arith.addf %261, %262 : vector<8x5xf32>
    %264 = math.tanh %263 : vector<8x5xf32>
    %265 = arith.mulf %260, %264 : vector<8x5xf32>
    %266 = vector.extract_strided_slice %20 {offsets = [48, 0], sizes = [8, 20], strides = [1, 1]} : vector<64x20xf32> to vector<8x20xf32>
    %267 = vector.extract_strided_slice %265 {offsets = [0, 0], sizes = [8, 1], strides = [1, 1]} : vector<8x5xf32> to vector<8x1xf32>
    %268 = vector.broadcast %267 : vector<8x1xf32> to vector<8x20xf32>
    %269 = arith.mulf %268, %23 : vector<8x20xf32>
    %270 = vector.extract_strided_slice %265 {offsets = [0, 1], sizes = [8, 1], strides = [1, 1]} : vector<8x5xf32> to vector<8x1xf32>
    %271 = vector.broadcast %270 : vector<8x1xf32> to vector<8x20xf32>
    %272 = arith.mulf %271, %26 : vector<8x20xf32>
    %273 = vector.extract_strided_slice %265 {offsets = [0, 2], sizes = [8, 1], strides = [1, 1]} : vector<8x5xf32> to vector<8x1xf32>
    %274 = vector.broadcast %273 : vector<8x1xf32> to vector<8x20xf32>
    %275 = arith.mulf %274, %29 : vector<8x20xf32>
    %276 = vector.extract_strided_slice %265 {offsets = [0, 3], sizes = [8, 1], strides = [1, 1]} : vector<8x5xf32> to vector<8x1xf32>
    %277 = vector.broadcast %276 : vector<8x1xf32> to vector<8x20xf32>
    %278 = arith.mulf %277, %32 : vector<8x20xf32>
    %279 = vector.extract_strided_slice %265 {offsets = [0, 4], sizes = [8, 1], strides = [1, 1]} : vector<8x5xf32> to vector<8x1xf32>
    %280 = vector.broadcast %279 : vector<8x1xf32> to vector<8x20xf32>
    %281 = arith.mulf %280, %35 : vector<8x20xf32>
    %282 = arith.addf %269, %272 : vector<8x20xf32>
    %283 = arith.addf %275, %278 : vector<8x20xf32>
    %284 = arith.addf %282, %283 : vector<8x20xf32>
    %285 = arith.addf %281, %266 : vector<8x20xf32>
    %286 = arith.addf %284, %285 : vector<8x20xf32>
    %cst_25 = arith.constant 5.000000e-01 : f32
    %287 = vector.broadcast %cst_25 : f32 to vector<8x20xf32>
    %288 = arith.mulf %287, %286 : vector<8x20xf32>
    %289 = math.tanh %288 : vector<8x20xf32>
    %cst_26 = arith.constant 5.000000e-01 : f32
    %290 = vector.broadcast %cst_26 : f32 to vector<8x20xf32>
    %291 = arith.mulf %290, %289 : vector<8x20xf32>
    %cst_27 = arith.constant 5.000000e-01 : f32
    %292 = vector.broadcast %cst_27 : f32 to vector<8x20xf32>
    %293 = arith.addf %291, %292 : vector<8x20xf32>
    %294 = math.tanh %286 : vector<8x20xf32>
    %295 = vector.extract_strided_slice %293 {offsets = [0, 0], sizes = [8, 5], strides = [1, 1]} : vector<8x20xf32> to vector<8x5xf32>
    %296 = vector.extract_strided_slice %293 {offsets = [0, 5], sizes = [8, 5], strides = [1, 1]} : vector<8x20xf32> to vector<8x5xf32>
    %297 = vector.extract_strided_slice %294 {offsets = [0, 10], sizes = [8, 5], strides = [1, 1]} : vector<8x20xf32> to vector<8x5xf32>
    %298 = vector.extract_strided_slice %293 {offsets = [0, 15], sizes = [8, 5], strides = [1, 1]} : vector<8x20xf32> to vector<8x5xf32>
    %299 = arith.mulf %296, %263 : vector<8x5xf32>
    %300 = arith.mulf %295, %297 : vector<8x5xf32>
    %301 = arith.addf %299, %300 : vector<8x5xf32>
    %302 = math.tanh %301 : vector<8x5xf32>
    %303 = arith.mulf %298, %302 : vector<8x5xf32>
    %304 = vector.extract_strided_slice %20 {offsets = [56, 0], sizes = [8, 20], strides = [1, 1]} : vector<64x20xf32> to vector<8x20xf32>
    %305 = vector.extract_strided_slice %303 {offsets = [0, 0], sizes = [8, 1], strides = [1, 1]} : vector<8x5xf32> to vector<8x1xf32>
    %306 = vector.broadcast %305 : vector<8x1xf32> to vector<8x20xf32>
    %307 = arith.mulf %306, %23 : vector<8x20xf32>
    %308 = vector.extract_strided_slice %303 {offsets = [0, 1], sizes = [8, 1], strides = [1, 1]} : vector<8x5xf32> to vector<8x1xf32>
    %309 = vector.broadcast %308 : vector<8x1xf32> to vector<8x20xf32>
    %310 = arith.mulf %309, %26 : vector<8x20xf32>
    %311 = vector.extract_strided_slice %303 {offsets = [0, 2], sizes = [8, 1], strides = [1, 1]} : vector<8x5xf32> to vector<8x1xf32>
    %312 = vector.broadcast %311 : vector<8x1xf32> to vector<8x20xf32>
    %313 = arith.mulf %312, %29 : vector<8x20xf32>
    %314 = vector.extract_strided_slice %303 {offsets = [0, 3], sizes = [8, 1], strides = [1, 1]} : vector<8x5xf32> to vector<8x1xf32>
    %315 = vector.broadcast %314 : vector<8x1xf32> to vector<8x20xf32>
    %316 = arith.mulf %315, %32 : vector<8x20xf32>
    %317 = vector.extract_strided_slice %303 {offsets = [0, 4], sizes = [8, 1], strides = [1, 1]} : vector<8x5xf32> to vector<8x1xf32>
    %318 = vector.broadcast %317 : vector<8x1xf32> to vector<8x20xf32>
    %319 = arith.mulf %318, %35 : vector<8x20xf32>
    %320 = arith.addf %307, %310 : vector<8x20xf32>
    %321 = arith.addf %313, %316 : vector<8x20xf32>
    %322 = arith.addf %320, %321 : vector<8x20xf32>
    %323 = arith.addf %319, %304 : vector<8x20xf32>
    %324 = arith.addf %322, %323 : vector<8x20xf32>
    %cst_28 = arith.constant 5.000000e-01 : f32
    %325 = vector.broadcast %cst_28 : f32 to vector<8x20xf32>
    %326 = arith.mulf %325, %324 : vector<8x20xf32>
    %327 = math.tanh %326 : vector<8x20xf32>
    %cst_29 = arith.constant 5.000000e-01 : f32
    %328 = vector.broadcast %cst_29 : f32 to vector<8x20xf32>
    %329 = arith.mulf %328, %327 : vector<8x20xf32>
    %cst_30 = arith.constant 5.000000e-01 : f32
    %330 = vector.broadcast %cst_30 : f32 to vector<8x20xf32>
    %331 = arith.addf %329, %330 : vector<8x20xf32>
    %332 = math.tanh %324 : vector<8x20xf32>
    %333 = vector.extract_strided_slice %331 {offsets = [0, 0], sizes = [8, 5], strides = [1, 1]} : vector<8x20xf32> to vector<8x5xf32>
    %334 = vector.extract_strided_slice %331 {offsets = [0, 5], sizes = [8, 5], strides = [1, 1]} : vector<8x20xf32> to vector<8x5xf32>
    %335 = vector.extract_strided_slice %332 {offsets = [0, 10], sizes = [8, 5], strides = [1, 1]} : vector<8x20xf32> to vector<8x5xf32>
    %336 = vector.extract_strided_slice %331 {offsets = [0, 15], sizes = [8, 5], strides = [1, 1]} : vector<8x20xf32> to vector<8x5xf32>
    %337 = arith.mulf %334, %301 : vector<8x5xf32>
    %338 = arith.mulf %333, %335 : vector<8x5xf32>
    %339 = arith.addf %337, %338 : vector<8x5xf32>
    %340 = math.tanh %339 : vector<8x5xf32>
    %341 = arith.mulf %336, %340 : vector<8x5xf32>
    %342 = tpu.concatenate %75, %113, %151, %189, %227, %265, %303, %341 in 0 : vector<8x5xf32>, vector<8x5xf32>, vector<8x5xf32>, vector<8x5xf32>, vector<8x5xf32>, vector<8x5xf32>, vector<8x5xf32>, vector<8x5xf32> -> vector<64x5xf32>
    %cst_31 = arith.constant dense<0.000000e+00> : vector<64x20xf32>
    %343 = tpu.matmul %342, %3, %cst_31 {dimension_numbers = #tpu.dot_dimension_numbers<[1], [0], [0], [1], [0, 0, 1, 1], [], []>} : vector<64x5xf32>, vector<5x20xf32>, vector<64x20xf32> -> vector<64x20xf32>
    %344 = vector.broadcast %5 : vector<1x20xf32> to vector<64x20xf32>
    %345 = arith.addf %343, %344 : vector<64x20xf32>
    %346 = vector.extract_strided_slice %4 {offsets = [0, 0], sizes = [1, 20], strides = [1, 1]} : vector<5x20xf32> to vector<1x20xf32>
    %347 = vector.shape_cast %346 : vector<1x20xf32> to vector<1x20xf32>
    %348 = vector.broadcast %347 : vector<1x20xf32> to vector<8x20xf32>
    %349 = vector.extract_strided_slice %4 {offsets = [1, 0], sizes = [1, 20], strides = [1, 1]} : vector<5x20xf32> to vector<1x20xf32>
    %350 = vector.shape_cast %349 : vector<1x20xf32> to vector<1x20xf32>
    %351 = vector.broadcast %350 : vector<1x20xf32> to vector<8x20xf32>
    %352 = vector.extract_strided_slice %4 {offsets = [2, 0], sizes = [1, 20], strides = [1, 1]} : vector<5x20xf32> to vector<1x20xf32>
    %353 = vector.shape_cast %352 : vector<1x20xf32> to vector<1x20xf32>
    %354 = vector.broadcast %353 : vector<1x20xf32> to vector<8x20xf32>
    %355 = vector.extract_strided_slice %4 {offsets = [3, 0], sizes = [1, 20], strides = [1, 1]} : vector<5x20xf32> to vector<1x20xf32>
    %356 = vector.shape_cast %355 : vector<1x20xf32> to vector<1x20xf32>
    %357 = vector.broadcast %356 : vector<1x20xf32> to vector<8x20xf32>
    %358 = vector.extract_strided_slice %4 {offsets = [4, 0], sizes = [1, 20], strides = [1, 1]} : vector<5x20xf32> to vector<1x20xf32>
    %359 = vector.shape_cast %358 : vector<1x20xf32> to vector<1x20xf32>
    %360 = vector.broadcast %359 : vector<1x20xf32> to vector<8x20xf32>
    %cst_32 = arith.constant 0.000000e+00 : f32
    %361 = vector.broadcast %cst_32 : f32 to vector<8x5xf32>
    %cst_33 = arith.constant 0.000000e+00 : f32
    %362 = vector.broadcast %cst_33 : f32 to vector<8x5xf32>
    %363 = vector.extract_strided_slice %345 {offsets = [0, 0], sizes = [8, 20], strides = [1, 1]} : vector<64x20xf32> to vector<8x20xf32>
    %364 = vector.extract_strided_slice %361 {offsets = [0, 0], sizes = [8, 1], strides = [1, 1]} : vector<8x5xf32> to vector<8x1xf32>
    %365 = vector.broadcast %364 : vector<8x1xf32> to vector<8x20xf32>
    %366 = arith.mulf %365, %348 : vector<8x20xf32>
    %367 = vector.extract_strided_slice %361 {offsets = [0, 1], sizes = [8, 1], strides = [1, 1]} : vector<8x5xf32> to vector<8x1xf32>
    %368 = vector.broadcast %367 : vector<8x1xf32> to vector<8x20xf32>
    %369 = arith.mulf %368, %351 : vector<8x20xf32>
    %370 = vector.extract_strided_slice %361 {offsets = [0, 2], sizes = [8, 1], strides = [1, 1]} : vector<8x5xf32> to vector<8x1xf32>
    %371 = vector.broadcast %370 : vector<8x1xf32> to vector<8x20xf32>
    %372 = arith.mulf %371, %354 : vector<8x20xf32>
    %373 = vector.extract_strided_slice %361 {offsets = [0, 3], sizes = [8, 1], strides = [1, 1]} : vector<8x5xf32> to vector<8x1xf32>
    %374 = vector.broadcast %373 : vector<8x1xf32> to vector<8x20xf32>
    %375 = arith.mulf %374, %357 : vector<8x20xf32>
    %376 = vector.extract_strided_slice %361 {offsets = [0, 4], sizes = [8, 1], strides = [1, 1]} : vector<8x5xf32> to vector<8x1xf32>
    %377 = vector.broadcast %376 : vector<8x1xf32> to vector<8x20xf32>
    %378 = arith.mulf %377, %360 : vector<8x20xf32>
    %379 = arith.addf %366, %369 : vector<8x20xf32>
    %380 = arith.addf %372, %375 : vector<8x20xf32>
    %381 = arith.addf %379, %380 : vector<8x20xf32>
    %382 = arith.addf %378, %363 : vector<8x20xf32>
    %383 = arith.addf %381, %382 : vector<8x20xf32>
    %cst_34 = arith.constant 5.000000e-01 : f32
    %384 = vector.broadcast %cst_34 : f32 to vector<8x20xf32>
    %385 = arith.mulf %384, %383 : vector<8x20xf32>
    %386 = math.tanh %385 : vector<8x20xf32>
    %cst_35 = arith.constant 5.000000e-01 : f32
    %387 = vector.broadcast %cst_35 : f32 to vector<8x20xf32>
    %388 = arith.mulf %387, %386 : vector<8x20xf32>
    %cst_36 = arith.constant 5.000000e-01 : f32
    %389 = vector.broadcast %cst_36 : f32 to vector<8x20xf32>
    %390 = arith.addf %388, %389 : vector<8x20xf32>
    %391 = math.tanh %383 : vector<8x20xf32>
    %392 = vector.extract_strided_slice %390 {offsets = [0, 0], sizes = [8, 5], strides = [1, 1]} : vector<8x20xf32> to vector<8x5xf32>
    %393 = vector.extract_strided_slice %390 {offsets = [0, 5], sizes = [8, 5], strides = [1, 1]} : vector<8x20xf32> to vector<8x5xf32>
    %394 = vector.extract_strided_slice %391 {offsets = [0, 10], sizes = [8, 5], strides = [1, 1]} : vector<8x20xf32> to vector<8x5xf32>
    %395 = vector.extract_strided_slice %390 {offsets = [0, 15], sizes = [8, 5], strides = [1, 1]} : vector<8x20xf32> to vector<8x5xf32>
    %396 = arith.mulf %393, %362 : vector<8x5xf32>
    %397 = arith.mulf %392, %394 : vector<8x5xf32>
    %398 = arith.addf %396, %397 : vector<8x5xf32>
    %399 = math.tanh %398 : vector<8x5xf32>
    %400 = arith.mulf %395, %399 : vector<8x5xf32>
    %401 = vector.extract_strided_slice %345 {offsets = [8, 0], sizes = [8, 20], strides = [1, 1]} : vector<64x20xf32> to vector<8x20xf32>
    %402 = vector.extract_strided_slice %400 {offsets = [0, 0], sizes = [8, 1], strides = [1, 1]} : vector<8x5xf32> to vector<8x1xf32>
    %403 = vector.broadcast %402 : vector<8x1xf32> to vector<8x20xf32>
    %404 = arith.mulf %403, %348 : vector<8x20xf32>
    %405 = vector.extract_strided_slice %400 {offsets = [0, 1], sizes = [8, 1], strides = [1, 1]} : vector<8x5xf32> to vector<8x1xf32>
    %406 = vector.broadcast %405 : vector<8x1xf32> to vector<8x20xf32>
    %407 = arith.mulf %406, %351 : vector<8x20xf32>
    %408 = vector.extract_strided_slice %400 {offsets = [0, 2], sizes = [8, 1], strides = [1, 1]} : vector<8x5xf32> to vector<8x1xf32>
    %409 = vector.broadcast %408 : vector<8x1xf32> to vector<8x20xf32>
    %410 = arith.mulf %409, %354 : vector<8x20xf32>
    %411 = vector.extract_strided_slice %400 {offsets = [0, 3], sizes = [8, 1], strides = [1, 1]} : vector<8x5xf32> to vector<8x1xf32>
    %412 = vector.broadcast %411 : vector<8x1xf32> to vector<8x20xf32>
    %413 = arith.mulf %412, %357 : vector<8x20xf32>
    %414 = vector.extract_strided_slice %400 {offsets = [0, 4], sizes = [8, 1], strides = [1, 1]} : vector<8x5xf32> to vector<8x1xf32>
    %415 = vector.broadcast %414 : vector<8x1xf32> to vector<8x20xf32>
    %416 = arith.mulf %415, %360 : vector<8x20xf32>
    %417 = arith.addf %404, %407 : vector<8x20xf32>
    %418 = arith.addf %410, %413 : vector<8x20xf32>
    %419 = arith.addf %417, %418 : vector<8x20xf32>
    %420 = arith.addf %416, %401 : vector<8x20xf32>
    %421 = arith.addf %419, %420 : vector<8x20xf32>
    %cst_37 = arith.constant 5.000000e-01 : f32
    %422 = vector.broadcast %cst_37 : f32 to vector<8x20xf32>
    %423 = arith.mulf %422, %421 : vector<8x20xf32>
    %424 = math.tanh %423 : vector<8x20xf32>
    %cst_38 = arith.constant 5.000000e-01 : f32
    %425 = vector.broadcast %cst_38 : f32 to vector<8x20xf32>
    %426 = arith.mulf %425, %424 : vector<8x20xf32>
    %cst_39 = arith.constant 5.000000e-01 : f32
    %427 = vector.broadcast %cst_39 : f32 to vector<8x20xf32>
    %428 = arith.addf %426, %427 : vector<8x20xf32>
    %429 = math.tanh %421 : vector<8x20xf32>
    %430 = vector.extract_strided_slice %428 {offsets = [0, 0], sizes = [8, 5], strides = [1, 1]} : vector<8x20xf32> to vector<8x5xf32>
    %431 = vector.extract_strided_slice %428 {offsets = [0, 5], sizes = [8, 5], strides = [1, 1]} : vector<8x20xf32> to vector<8x5xf32>
    %432 = vector.extract_strided_slice %429 {offsets = [0, 10], sizes = [8, 5], strides = [1, 1]} : vector<8x20xf32> to vector<8x5xf32>
    %433 = vector.extract_strided_slice %428 {offsets = [0, 15], sizes = [8, 5], strides = [1, 1]} : vector<8x20xf32> to vector<8x5xf32>
    %434 = arith.mulf %431, %398 : vector<8x5xf32>
    %435 = arith.mulf %430, %432 : vector<8x5xf32>
    %436 = arith.addf %434, %435 : vector<8x5xf32>
    %437 = math.tanh %436 : vector<8x5xf32>
    %438 = arith.mulf %433, %437 : vector<8x5xf32>
    %439 = vector.extract_strided_slice %345 {offsets = [16, 0], sizes = [8, 20], strides = [1, 1]} : vector<64x20xf32> to vector<8x20xf32>
    %440 = vector.extract_strided_slice %438 {offsets = [0, 0], sizes = [8, 1], strides = [1, 1]} : vector<8x5xf32> to vector<8x1xf32>
    %441 = vector.broadcast %440 : vector<8x1xf32> to vector<8x20xf32>
    %442 = arith.mulf %441, %348 : vector<8x20xf32>
    %443 = vector.extract_strided_slice %438 {offsets = [0, 1], sizes = [8, 1], strides = [1, 1]} : vector<8x5xf32> to vector<8x1xf32>
    %444 = vector.broadcast %443 : vector<8x1xf32> to vector<8x20xf32>
    %445 = arith.mulf %444, %351 : vector<8x20xf32>
    %446 = vector.extract_strided_slice %438 {offsets = [0, 2], sizes = [8, 1], strides = [1, 1]} : vector<8x5xf32> to vector<8x1xf32>
    %447 = vector.broadcast %446 : vector<8x1xf32> to vector<8x20xf32>
    %448 = arith.mulf %447, %354 : vector<8x20xf32>
    %449 = vector.extract_strided_slice %438 {offsets = [0, 3], sizes = [8, 1], strides = [1, 1]} : vector<8x5xf32> to vector<8x1xf32>
    %450 = vector.broadcast %449 : vector<8x1xf32> to vector<8x20xf32>
    %451 = arith.mulf %450, %357 : vector<8x20xf32>
    %452 = vector.extract_strided_slice %438 {offsets = [0, 4], sizes = [8, 1], strides = [1, 1]} : vector<8x5xf32> to vector<8x1xf32>
    %453 = vector.broadcast %452 : vector<8x1xf32> to vector<8x20xf32>
    %454 = arith.mulf %453, %360 : vector<8x20xf32>
    %455 = arith.addf %442, %445 : vector<8x20xf32>
    %456 = arith.addf %448, %451 : vector<8x20xf32>
    %457 = arith.addf %455, %456 : vector<8x20xf32>
    %458 = arith.addf %454, %439 : vector<8x20xf32>
    %459 = arith.addf %457, %458 : vector<8x20xf32>
    %cst_40 = arith.constant 5.000000e-01 : f32
    %460 = vector.broadcast %cst_40 : f32 to vector<8x20xf32>
    %461 = arith.mulf %460, %459 : vector<8x20xf32>
    %462 = math.tanh %461 : vector<8x20xf32>
    %cst_41 = arith.constant 5.000000e-01 : f32
    %463 = vector.broadcast %cst_41 : f32 to vector<8x20xf32>
    %464 = arith.mulf %463, %462 : vector<8x20xf32>
    %cst_42 = arith.constant 5.000000e-01 : f32
    %465 = vector.broadcast %cst_42 : f32 to vector<8x20xf32>
    %466 = arith.addf %464, %465 : vector<8x20xf32>
    %467 = math.tanh %459 : vector<8x20xf32>
    %468 = vector.extract_strided_slice %466 {offsets = [0, 0], sizes = [8, 5], strides = [1, 1]} : vector<8x20xf32> to vector<8x5xf32>
    %469 = vector.extract_strided_slice %466 {offsets = [0, 5], sizes = [8, 5], strides = [1, 1]} : vector<8x20xf32> to vector<8x5xf32>
    %470 = vector.extract_strided_slice %467 {offsets = [0, 10], sizes = [8, 5], strides = [1, 1]} : vector<8x20xf32> to vector<8x5xf32>
    %471 = vector.extract_strided_slice %466 {offsets = [0, 15], sizes = [8, 5], strides = [1, 1]} : vector<8x20xf32> to vector<8x5xf32>
    %472 = arith.mulf %469, %436 : vector<8x5xf32>
    %473 = arith.mulf %468, %470 : vector<8x5xf32>
    %474 = arith.addf %472, %473 : vector<8x5xf32>
    %475 = math.tanh %474 : vector<8x5xf32>
    %476 = arith.mulf %471, %475 : vector<8x5xf32>
    %477 = vector.extract_strided_slice %345 {offsets = [24, 0], sizes = [8, 20], strides = [1, 1]} : vector<64x20xf32> to vector<8x20xf32>
    %478 = vector.extract_strided_slice %476 {offsets = [0, 0], sizes = [8, 1], strides = [1, 1]} : vector<8x5xf32> to vector<8x1xf32>
    %479 = vector.broadcast %478 : vector<8x1xf32> to vector<8x20xf32>
    %480 = arith.mulf %479, %348 : vector<8x20xf32>
    %481 = vector.extract_strided_slice %476 {offsets = [0, 1], sizes = [8, 1], strides = [1, 1]} : vector<8x5xf32> to vector<8x1xf32>
    %482 = vector.broadcast %481 : vector<8x1xf32> to vector<8x20xf32>
    %483 = arith.mulf %482, %351 : vector<8x20xf32>
    %484 = vector.extract_strided_slice %476 {offsets = [0, 2], sizes = [8, 1], strides = [1, 1]} : vector<8x5xf32> to vector<8x1xf32>
    %485 = vector.broadcast %484 : vector<8x1xf32> to vector<8x20xf32>
    %486 = arith.mulf %485, %354 : vector<8x20xf32>
    %487 = vector.extract_strided_slice %476 {offsets = [0, 3], sizes = [8, 1], strides = [1, 1]} : vector<8x5xf32> to vector<8x1xf32>
    %488 = vector.broadcast %487 : vector<8x1xf32> to vector<8x20xf32>
    %489 = arith.mulf %488, %357 : vector<8x20xf32>
    %490 = vector.extract_strided_slice %476 {offsets = [0, 4], sizes = [8, 1], strides = [1, 1]} : vector<8x5xf32> to vector<8x1xf32>
    %491 = vector.broadcast %490 : vector<8x1xf32> to vector<8x20xf32>
    %492 = arith.mulf %491, %360 : vector<8x20xf32>
    %493 = arith.addf %480, %483 : vector<8x20xf32>
    %494 = arith.addf %486, %489 : vector<8x20xf32>
    %495 = arith.addf %493, %494 : vector<8x20xf32>
    %496 = arith.addf %492, %477 : vector<8x20xf32>
    %497 = arith.addf %495, %496 : vector<8x20xf32>
    %cst_43 = arith.constant 5.000000e-01 : f32
    %498 = vector.broadcast %cst_43 : f32 to vector<8x20xf32>
    %499 = arith.mulf %498, %497 : vector<8x20xf32>
    %500 = math.tanh %499 : vector<8x20xf32>
    %cst_44 = arith.constant 5.000000e-01 : f32
    %501 = vector.broadcast %cst_44 : f32 to vector<8x20xf32>
    %502 = arith.mulf %501, %500 : vector<8x20xf32>
    %cst_45 = arith.constant 5.000000e-01 : f32
    %503 = vector.broadcast %cst_45 : f32 to vector<8x20xf32>
    %504 = arith.addf %502, %503 : vector<8x20xf32>
    %505 = math.tanh %497 : vector<8x20xf32>
    %506 = vector.extract_strided_slice %504 {offsets = [0, 0], sizes = [8, 5], strides = [1, 1]} : vector<8x20xf32> to vector<8x5xf32>
    %507 = vector.extract_strided_slice %504 {offsets = [0, 5], sizes = [8, 5], strides = [1, 1]} : vector<8x20xf32> to vector<8x5xf32>
    %508 = vector.extract_strided_slice %505 {offsets = [0, 10], sizes = [8, 5], strides = [1, 1]} : vector<8x20xf32> to vector<8x5xf32>
    %509 = vector.extract_strided_slice %504 {offsets = [0, 15], sizes = [8, 5], strides = [1, 1]} : vector<8x20xf32> to vector<8x5xf32>
    %510 = arith.mulf %507, %474 : vector<8x5xf32>
    %511 = arith.mulf %506, %508 : vector<8x5xf32>
    %512 = arith.addf %510, %511 : vector<8x5xf32>
    %513 = math.tanh %512 : vector<8x5xf32>
    %514 = arith.mulf %509, %513 : vector<8x5xf32>
    %515 = vector.extract_strided_slice %345 {offsets = [32, 0], sizes = [8, 20], strides = [1, 1]} : vector<64x20xf32> to vector<8x20xf32>
    %516 = vector.extract_strided_slice %514 {offsets = [0, 0], sizes = [8, 1], strides = [1, 1]} : vector<8x5xf32> to vector<8x1xf32>
    %517 = vector.broadcast %516 : vector<8x1xf32> to vector<8x20xf32>
    %518 = arith.mulf %517, %348 : vector<8x20xf32>
    %519 = vector.extract_strided_slice %514 {offsets = [0, 1], sizes = [8, 1], strides = [1, 1]} : vector<8x5xf32> to vector<8x1xf32>
    %520 = vector.broadcast %519 : vector<8x1xf32> to vector<8x20xf32>
    %521 = arith.mulf %520, %351 : vector<8x20xf32>
    %522 = vector.extract_strided_slice %514 {offsets = [0, 2], sizes = [8, 1], strides = [1, 1]} : vector<8x5xf32> to vector<8x1xf32>
    %523 = vector.broadcast %522 : vector<8x1xf32> to vector<8x20xf32>
    %524 = arith.mulf %523, %354 : vector<8x20xf32>
    %525 = vector.extract_strided_slice %514 {offsets = [0, 3], sizes = [8, 1], strides = [1, 1]} : vector<8x5xf32> to vector<8x1xf32>
    %526 = vector.broadcast %525 : vector<8x1xf32> to vector<8x20xf32>
    %527 = arith.mulf %526, %357 : vector<8x20xf32>
    %528 = vector.extract_strided_slice %514 {offsets = [0, 4], sizes = [8, 1], strides = [1, 1]} : vector<8x5xf32> to vector<8x1xf32>
    %529 = vector.broadcast %528 : vector<8x1xf32> to vector<8x20xf32>
    %530 = arith.mulf %529, %360 : vector<8x20xf32>
    %531 = arith.addf %518, %521 : vector<8x20xf32>
    %532 = arith.addf %524, %527 : vector<8x20xf32>
    %533 = arith.addf %531, %532 : vector<8x20xf32>
    %534 = arith.addf %530, %515 : vector<8x20xf32>
    %535 = arith.addf %533, %534 : vector<8x20xf32>
    %cst_46 = arith.constant 5.000000e-01 : f32
    %536 = vector.broadcast %cst_46 : f32 to vector<8x20xf32>
    %537 = arith.mulf %536, %535 : vector<8x20xf32>
    %538 = math.tanh %537 : vector<8x20xf32>
    %cst_47 = arith.constant 5.000000e-01 : f32
    %539 = vector.broadcast %cst_47 : f32 to vector<8x20xf32>
    %540 = arith.mulf %539, %538 : vector<8x20xf32>
    %cst_48 = arith.constant 5.000000e-01 : f32
    %541 = vector.broadcast %cst_48 : f32 to vector<8x20xf32>
    %542 = arith.addf %540, %541 : vector<8x20xf32>
    %543 = math.tanh %535 : vector<8x20xf32>
    %544 = vector.extract_strided_slice %542 {offsets = [0, 0], sizes = [8, 5], strides = [1, 1]} : vector<8x20xf32> to vector<8x5xf32>
    %545 = vector.extract_strided_slice %542 {offsets = [0, 5], sizes = [8, 5], strides = [1, 1]} : vector<8x20xf32> to vector<8x5xf32>
    %546 = vector.extract_strided_slice %543 {offsets = [0, 10], sizes = [8, 5], strides = [1, 1]} : vector<8x20xf32> to vector<8x5xf32>
    %547 = vector.extract_strided_slice %542 {offsets = [0, 15], sizes = [8, 5], strides = [1, 1]} : vector<8x20xf32> to vector<8x5xf32>
    %548 = arith.mulf %545, %512 : vector<8x5xf32>
    %549 = arith.mulf %544, %546 : vector<8x5xf32>
    %550 = arith.addf %548, %549 : vector<8x5xf32>
    %551 = math.tanh %550 : vector<8x5xf32>
    %552 = arith.mulf %547, %551 : vector<8x5xf32>
    %553 = vector.extract_strided_slice %345 {offsets = [40, 0], sizes = [8, 20], strides = [1, 1]} : vector<64x20xf32> to vector<8x20xf32>
    %554 = vector.extract_strided_slice %552 {offsets = [0, 0], sizes = [8, 1], strides = [1, 1]} : vector<8x5xf32> to vector<8x1xf32>
    %555 = vector.broadcast %554 : vector<8x1xf32> to vector<8x20xf32>
    %556 = arith.mulf %555, %348 : vector<8x20xf32>
    %557 = vector.extract_strided_slice %552 {offsets = [0, 1], sizes = [8, 1], strides = [1, 1]} : vector<8x5xf32> to vector<8x1xf32>
    %558 = vector.broadcast %557 : vector<8x1xf32> to vector<8x20xf32>
    %559 = arith.mulf %558, %351 : vector<8x20xf32>
    %560 = vector.extract_strided_slice %552 {offsets = [0, 2], sizes = [8, 1], strides = [1, 1]} : vector<8x5xf32> to vector<8x1xf32>
    %561 = vector.broadcast %560 : vector<8x1xf32> to vector<8x20xf32>
    %562 = arith.mulf %561, %354 : vector<8x20xf32>
    %563 = vector.extract_strided_slice %552 {offsets = [0, 3], sizes = [8, 1], strides = [1, 1]} : vector<8x5xf32> to vector<8x1xf32>
    %564 = vector.broadcast %563 : vector<8x1xf32> to vector<8x20xf32>
    %565 = arith.mulf %564, %357 : vector<8x20xf32>
    %566 = vector.extract_strided_slice %552 {offsets = [0, 4], sizes = [8, 1], strides = [1, 1]} : vector<8x5xf32> to vector<8x1xf32>
    %567 = vector.broadcast %566 : vector<8x1xf32> to vector<8x20xf32>
    %568 = arith.mulf %567, %360 : vector<8x20xf32>
    %569 = arith.addf %556, %559 : vector<8x20xf32>
    %570 = arith.addf %562, %565 : vector<8x20xf32>
    %571 = arith.addf %569, %570 : vector<8x20xf32>
    %572 = arith.addf %568, %553 : vector<8x20xf32>
    %573 = arith.addf %571, %572 : vector<8x20xf32>
    %cst_49 = arith.constant 5.000000e-01 : f32
    %574 = vector.broadcast %cst_49 : f32 to vector<8x20xf32>
    %575 = arith.mulf %574, %573 : vector<8x20xf32>
    %576 = math.tanh %575 : vector<8x20xf32>
    %cst_50 = arith.constant 5.000000e-01 : f32
    %577 = vector.broadcast %cst_50 : f32 to vector<8x20xf32>
    %578 = arith.mulf %577, %576 : vector<8x20xf32>
    %cst_51 = arith.constant 5.000000e-01 : f32
    %579 = vector.broadcast %cst_51 : f32 to vector<8x20xf32>
    %580 = arith.addf %578, %579 : vector<8x20xf32>
    %581 = math.tanh %573 : vector<8x20xf32>
    %582 = vector.extract_strided_slice %580 {offsets = [0, 0], sizes = [8, 5], strides = [1, 1]} : vector<8x20xf32> to vector<8x5xf32>
    %583 = vector.extract_strided_slice %580 {offsets = [0, 5], sizes = [8, 5], strides = [1, 1]} : vector<8x20xf32> to vector<8x5xf32>
    %584 = vector.extract_strided_slice %581 {offsets = [0, 10], sizes = [8, 5], strides = [1, 1]} : vector<8x20xf32> to vector<8x5xf32>
    %585 = vector.extract_strided_slice %580 {offsets = [0, 15], sizes = [8, 5], strides = [1, 1]} : vector<8x20xf32> to vector<8x5xf32>
    %586 = arith.mulf %583, %550 : vector<8x5xf32>
    %587 = arith.mulf %582, %584 : vector<8x5xf32>
    %588 = arith.addf %586, %587 : vector<8x5xf32>
    %589 = math.tanh %588 : vector<8x5xf32>
    %590 = arith.mulf %585, %589 : vector<8x5xf32>
    %591 = vector.extract_strided_slice %345 {offsets = [48, 0], sizes = [8, 20], strides = [1, 1]} : vector<64x20xf32> to vector<8x20xf32>
    %592 = vector.extract_strided_slice %590 {offsets = [0, 0], sizes = [8, 1], strides = [1, 1]} : vector<8x5xf32> to vector<8x1xf32>
    %593 = vector.broadcast %592 : vector<8x1xf32> to vector<8x20xf32>
    %594 = arith.mulf %593, %348 : vector<8x20xf32>
    %595 = vector.extract_strided_slice %590 {offsets = [0, 1], sizes = [8, 1], strides = [1, 1]} : vector<8x5xf32> to vector<8x1xf32>
    %596 = vector.broadcast %595 : vector<8x1xf32> to vector<8x20xf32>
    %597 = arith.mulf %596, %351 : vector<8x20xf32>
    %598 = vector.extract_strided_slice %590 {offsets = [0, 2], sizes = [8, 1], strides = [1, 1]} : vector<8x5xf32> to vector<8x1xf32>
    %599 = vector.broadcast %598 : vector<8x1xf32> to vector<8x20xf32>
    %600 = arith.mulf %599, %354 : vector<8x20xf32>
    %601 = vector.extract_strided_slice %590 {offsets = [0, 3], sizes = [8, 1], strides = [1, 1]} : vector<8x5xf32> to vector<8x1xf32>
    %602 = vector.broadcast %601 : vector<8x1xf32> to vector<8x20xf32>
    %603 = arith.mulf %602, %357 : vector<8x20xf32>
    %604 = vector.extract_strided_slice %590 {offsets = [0, 4], sizes = [8, 1], strides = [1, 1]} : vector<8x5xf32> to vector<8x1xf32>
    %605 = vector.broadcast %604 : vector<8x1xf32> to vector<8x20xf32>
    %606 = arith.mulf %605, %360 : vector<8x20xf32>
    %607 = arith.addf %594, %597 : vector<8x20xf32>
    %608 = arith.addf %600, %603 : vector<8x20xf32>
    %609 = arith.addf %607, %608 : vector<8x20xf32>
    %610 = arith.addf %606, %591 : vector<8x20xf32>
    %611 = arith.addf %609, %610 : vector<8x20xf32>
    %cst_52 = arith.constant 5.000000e-01 : f32
    %612 = vector.broadcast %cst_52 : f32 to vector<8x20xf32>
    %613 = arith.mulf %612, %611 : vector<8x20xf32>
    %614 = math.tanh %613 : vector<8x20xf32>
    %cst_53 = arith.constant 5.000000e-01 : f32
    %615 = vector.broadcast %cst_53 : f32 to vector<8x20xf32>
    %616 = arith.mulf %615, %614 : vector<8x20xf32>
    %cst_54 = arith.constant 5.000000e-01 : f32
    %617 = vector.broadcast %cst_54 : f32 to vector<8x20xf32>
    %618 = arith.addf %616, %617 : vector<8x20xf32>
    %619 = math.tanh %611 : vector<8x20xf32>
    %620 = vector.extract_strided_slice %618 {offsets = [0, 0], sizes = [8, 5], strides = [1, 1]} : vector<8x20xf32> to vector<8x5xf32>
    %621 = vector.extract_strided_slice %618 {offsets = [0, 5], sizes = [8, 5], strides = [1, 1]} : vector<8x20xf32> to vector<8x5xf32>
    %622 = vector.extract_strided_slice %619 {offsets = [0, 10], sizes = [8, 5], strides = [1, 1]} : vector<8x20xf32> to vector<8x5xf32>
    %623 = vector.extract_strided_slice %618 {offsets = [0, 15], sizes = [8, 5], strides = [1, 1]} : vector<8x20xf32> to vector<8x5xf32>
    %624 = arith.mulf %621, %588 : vector<8x5xf32>
    %625 = arith.mulf %620, %622 : vector<8x5xf32>
    %626 = arith.addf %624, %625 : vector<8x5xf32>
    %627 = math.tanh %626 : vector<8x5xf32>
    %628 = arith.mulf %623, %627 : vector<8x5xf32>
    %629 = vector.extract_strided_slice %345 {offsets = [56, 0], sizes = [8, 20], strides = [1, 1]} : vector<64x20xf32> to vector<8x20xf32>
    %630 = vector.extract_strided_slice %628 {offsets = [0, 0], sizes = [8, 1], strides = [1, 1]} : vector<8x5xf32> to vector<8x1xf32>
    %631 = vector.broadcast %630 : vector<8x1xf32> to vector<8x20xf32>
    %632 = arith.mulf %631, %348 : vector<8x20xf32>
    %633 = vector.extract_strided_slice %628 {offsets = [0, 1], sizes = [8, 1], strides = [1, 1]} : vector<8x5xf32> to vector<8x1xf32>
    %634 = vector.broadcast %633 : vector<8x1xf32> to vector<8x20xf32>
    %635 = arith.mulf %634, %351 : vector<8x20xf32>
    %636 = vector.extract_strided_slice %628 {offsets = [0, 2], sizes = [8, 1], strides = [1, 1]} : vector<8x5xf32> to vector<8x1xf32>
    %637 = vector.broadcast %636 : vector<8x1xf32> to vector<8x20xf32>
    %638 = arith.mulf %637, %354 : vector<8x20xf32>
    %639 = vector.extract_strided_slice %628 {offsets = [0, 3], sizes = [8, 1], strides = [1, 1]} : vector<8x5xf32> to vector<8x1xf32>
    %640 = vector.broadcast %639 : vector<8x1xf32> to vector<8x20xf32>
    %641 = arith.mulf %640, %357 : vector<8x20xf32>
    %642 = vector.extract_strided_slice %628 {offsets = [0, 4], sizes = [8, 1], strides = [1, 1]} : vector<8x5xf32> to vector<8x1xf32>
    %643 = vector.broadcast %642 : vector<8x1xf32> to vector<8x20xf32>
    %644 = arith.mulf %643, %360 : vector<8x20xf32>
    %645 = arith.addf %632, %635 : vector<8x20xf32>
    %646 = arith.addf %638, %641 : vector<8x20xf32>
    %647 = arith.addf %645, %646 : vector<8x20xf32>
    %648 = arith.addf %644, %629 : vector<8x20xf32>
    %649 = arith.addf %647, %648 : vector<8x20xf32>
    %cst_55 = arith.constant 5.000000e-01 : f32
    %650 = vector.broadcast %cst_55 : f32 to vector<8x20xf32>
    %651 = arith.mulf %650, %649 : vector<8x20xf32>
    %652 = math.tanh %651 : vector<8x20xf32>
    %cst_56 = arith.constant 5.000000e-01 : f32
    %653 = vector.broadcast %cst_56 : f32 to vector<8x20xf32>
    %654 = arith.mulf %653, %652 : vector<8x20xf32>
    %cst_57 = arith.constant 5.000000e-01 : f32
    %655 = vector.broadcast %cst_57 : f32 to vector<8x20xf32>
    %656 = arith.addf %654, %655 : vector<8x20xf32>
    %657 = math.tanh %649 : vector<8x20xf32>
    %658 = vector.extract_strided_slice %656 {offsets = [0, 0], sizes = [8, 5], strides = [1, 1]} : vector<8x20xf32> to vector<8x5xf32>
    %659 = vector.extract_strided_slice %656 {offsets = [0, 5], sizes = [8, 5], strides = [1, 1]} : vector<8x20xf32> to vector<8x5xf32>
    %660 = vector.extract_strided_slice %657 {offsets = [0, 10], sizes = [8, 5], strides = [1, 1]} : vector<8x20xf32> to vector<8x5xf32>
    %661 = vector.extract_strided_slice %656 {offsets = [0, 15], sizes = [8, 5], strides = [1, 1]} : vector<8x20xf32> to vector<8x5xf32>
    %662 = arith.mulf %659, %626 : vector<8x5xf32>
    %663 = arith.mulf %658, %660 : vector<8x5xf32>
    %664 = arith.addf %662, %663 : vector<8x5xf32>
    %665 = math.tanh %664 : vector<8x5xf32>
    %666 = arith.mulf %661, %665 : vector<8x5xf32>
    %667 = tpu.concatenate %400, %438, %476, %514, %552, %590, %628, %666 in 0 : vector<8x5xf32>, vector<8x5xf32>, vector<8x5xf32>, vector<8x5xf32>, vector<8x5xf32>, vector<8x5xf32>, vector<8x5xf32>, vector<8x5xf32> -> vector<64x5xf32>
    %cst_58 = arith.constant dense<0.000000e+00> : vector<64x5xf32>
    %668 = tpu.matmul %667, %6, %cst_58 {dimension_numbers = #tpu.dot_dimension_numbers<[1], [0], [0], [1], [0, 0, 1, 1], [], []>} : vector<64x5xf32>, vector<5x5xf32>, vector<64x5xf32> -> vector<64x5xf32>
    %669 = vector.broadcast %7 : vector<1x5xf32> to vector<64x5xf32>
    %670 = arith.addf %668, %669 : vector<64x5xf32>
    %cst_59 = arith.constant 0.000000e+00 : f32
    %671 = vector.broadcast %cst_59 : f32 to vector<64x5xf32>
    %672 = arith.maximumf %670, %671 : vector<64x5xf32>
    %cst_60 = arith.constant dense<0.000000e+00> : vector<64x20xf32>
    %673 = tpu.matmul %672, %8, %cst_60 {dimension_numbers = #tpu.dot_dimension_numbers<[1], [0], [0], [1], [0, 0, 1, 1], [], []>} : vector<64x5xf32>, vector<5x20xf32>, vector<64x20xf32> -> vector<64x20xf32>
    %674 = vector.broadcast %10 : vector<1x20xf32> to vector<64x20xf32>
    %675 = arith.addf %673, %674 : vector<64x20xf32>
    %676 = vector.extract_strided_slice %9 {offsets = [0, 0], sizes = [1, 20], strides = [1, 1]} : vector<5x20xf32> to vector<1x20xf32>
    %677 = vector.shape_cast %676 : vector<1x20xf32> to vector<1x20xf32>
    %678 = vector.broadcast %677 : vector<1x20xf32> to vector<8x20xf32>
    %679 = vector.extract_strided_slice %9 {offsets = [1, 0], sizes = [1, 20], strides = [1, 1]} : vector<5x20xf32> to vector<1x20xf32>
    %680 = vector.shape_cast %679 : vector<1x20xf32> to vector<1x20xf32>
    %681 = vector.broadcast %680 : vector<1x20xf32> to vector<8x20xf32>
    %682 = vector.extract_strided_slice %9 {offsets = [2, 0], sizes = [1, 20], strides = [1, 1]} : vector<5x20xf32> to vector<1x20xf32>
    %683 = vector.shape_cast %682 : vector<1x20xf32> to vector<1x20xf32>
    %684 = vector.broadcast %683 : vector<1x20xf32> to vector<8x20xf32>
    %685 = vector.extract_strided_slice %9 {offsets = [3, 0], sizes = [1, 20], strides = [1, 1]} : vector<5x20xf32> to vector<1x20xf32>
    %686 = vector.shape_cast %685 : vector<1x20xf32> to vector<1x20xf32>
    %687 = vector.broadcast %686 : vector<1x20xf32> to vector<8x20xf32>
    %688 = vector.extract_strided_slice %9 {offsets = [4, 0], sizes = [1, 20], strides = [1, 1]} : vector<5x20xf32> to vector<1x20xf32>
    %689 = vector.shape_cast %688 : vector<1x20xf32> to vector<1x20xf32>
    %690 = vector.broadcast %689 : vector<1x20xf32> to vector<8x20xf32>
    %cst_61 = arith.constant 0.000000e+00 : f32
    %691 = vector.broadcast %cst_61 : f32 to vector<8x5xf32>
    %cst_62 = arith.constant 0.000000e+00 : f32
    %692 = vector.broadcast %cst_62 : f32 to vector<8x5xf32>
    %693 = vector.extract_strided_slice %675 {offsets = [0, 0], sizes = [8, 20], strides = [1, 1]} : vector<64x20xf32> to vector<8x20xf32>
    %694 = vector.extract_strided_slice %691 {offsets = [0, 0], sizes = [8, 1], strides = [1, 1]} : vector<8x5xf32> to vector<8x1xf32>
    %695 = vector.broadcast %694 : vector<8x1xf32> to vector<8x20xf32>
    %696 = arith.mulf %695, %678 : vector<8x20xf32>
    %697 = vector.extract_strided_slice %691 {offsets = [0, 1], sizes = [8, 1], strides = [1, 1]} : vector<8x5xf32> to vector<8x1xf32>
    %698 = vector.broadcast %697 : vector<8x1xf32> to vector<8x20xf32>
    %699 = arith.mulf %698, %681 : vector<8x20xf32>
    %700 = vector.extract_strided_slice %691 {offsets = [0, 2], sizes = [8, 1], strides = [1, 1]} : vector<8x5xf32> to vector<8x1xf32>
    %701 = vector.broadcast %700 : vector<8x1xf32> to vector<8x20xf32>
    %702 = arith.mulf %701, %684 : vector<8x20xf32>
    %703 = vector.extract_strided_slice %691 {offsets = [0, 3], sizes = [8, 1], strides = [1, 1]} : vector<8x5xf32> to vector<8x1xf32>
    %704 = vector.broadcast %703 : vector<8x1xf32> to vector<8x20xf32>
    %705 = arith.mulf %704, %687 : vector<8x20xf32>
    %706 = vector.extract_strided_slice %691 {offsets = [0, 4], sizes = [8, 1], strides = [1, 1]} : vector<8x5xf32> to vector<8x1xf32>
    %707 = vector.broadcast %706 : vector<8x1xf32> to vector<8x20xf32>
    %708 = arith.mulf %707, %690 : vector<8x20xf32>
    %709 = arith.addf %696, %699 : vector<8x20xf32>
    %710 = arith.addf %702, %705 : vector<8x20xf32>
    %711 = arith.addf %709, %710 : vector<8x20xf32>
    %712 = arith.addf %708, %693 : vector<8x20xf32>
    %713 = arith.addf %711, %712 : vector<8x20xf32>
    %cst_63 = arith.constant 5.000000e-01 : f32
    %714 = vector.broadcast %cst_63 : f32 to vector<8x20xf32>
    %715 = arith.mulf %714, %713 : vector<8x20xf32>
    %716 = math.tanh %715 : vector<8x20xf32>
    %cst_64 = arith.constant 5.000000e-01 : f32
    %717 = vector.broadcast %cst_64 : f32 to vector<8x20xf32>
    %718 = arith.mulf %717, %716 : vector<8x20xf32>
    %cst_65 = arith.constant 5.000000e-01 : f32
    %719 = vector.broadcast %cst_65 : f32 to vector<8x20xf32>
    %720 = arith.addf %718, %719 : vector<8x20xf32>
    %721 = math.tanh %713 : vector<8x20xf32>
    %722 = vector.extract_strided_slice %720 {offsets = [0, 0], sizes = [8, 5], strides = [1, 1]} : vector<8x20xf32> to vector<8x5xf32>
    %723 = vector.extract_strided_slice %720 {offsets = [0, 5], sizes = [8, 5], strides = [1, 1]} : vector<8x20xf32> to vector<8x5xf32>
    %724 = vector.extract_strided_slice %721 {offsets = [0, 10], sizes = [8, 5], strides = [1, 1]} : vector<8x20xf32> to vector<8x5xf32>
    %725 = vector.extract_strided_slice %720 {offsets = [0, 15], sizes = [8, 5], strides = [1, 1]} : vector<8x20xf32> to vector<8x5xf32>
    %726 = arith.mulf %723, %692 : vector<8x5xf32>
    %727 = arith.mulf %722, %724 : vector<8x5xf32>
    %728 = arith.addf %726, %727 : vector<8x5xf32>
    %729 = math.tanh %728 : vector<8x5xf32>
    %730 = arith.mulf %725, %729 : vector<8x5xf32>
    %731 = vector.extract_strided_slice %675 {offsets = [8, 0], sizes = [8, 20], strides = [1, 1]} : vector<64x20xf32> to vector<8x20xf32>
    %732 = vector.extract_strided_slice %730 {offsets = [0, 0], sizes = [8, 1], strides = [1, 1]} : vector<8x5xf32> to vector<8x1xf32>
    %733 = vector.broadcast %732 : vector<8x1xf32> to vector<8x20xf32>
    %734 = arith.mulf %733, %678 : vector<8x20xf32>
    %735 = vector.extract_strided_slice %730 {offsets = [0, 1], sizes = [8, 1], strides = [1, 1]} : vector<8x5xf32> to vector<8x1xf32>
    %736 = vector.broadcast %735 : vector<8x1xf32> to vector<8x20xf32>
    %737 = arith.mulf %736, %681 : vector<8x20xf32>
    %738 = vector.extract_strided_slice %730 {offsets = [0, 2], sizes = [8, 1], strides = [1, 1]} : vector<8x5xf32> to vector<8x1xf32>
    %739 = vector.broadcast %738 : vector<8x1xf32> to vector<8x20xf32>
    %740 = arith.mulf %739, %684 : vector<8x20xf32>
    %741 = vector.extract_strided_slice %730 {offsets = [0, 3], sizes = [8, 1], strides = [1, 1]} : vector<8x5xf32> to vector<8x1xf32>
    %742 = vector.broadcast %741 : vector<8x1xf32> to vector<8x20xf32>
    %743 = arith.mulf %742, %687 : vector<8x20xf32>
    %744 = vector.extract_strided_slice %730 {offsets = [0, 4], sizes = [8, 1], strides = [1, 1]} : vector<8x5xf32> to vector<8x1xf32>
    %745 = vector.broadcast %744 : vector<8x1xf32> to vector<8x20xf32>
    %746 = arith.mulf %745, %690 : vector<8x20xf32>
    %747 = arith.addf %734, %737 : vector<8x20xf32>
    %748 = arith.addf %740, %743 : vector<8x20xf32>
    %749 = arith.addf %747, %748 : vector<8x20xf32>
    %750 = arith.addf %746, %731 : vector<8x20xf32>
    %751 = arith.addf %749, %750 : vector<8x20xf32>
    %cst_66 = arith.constant 5.000000e-01 : f32
    %752 = vector.broadcast %cst_66 : f32 to vector<8x20xf32>
    %753 = arith.mulf %752, %751 : vector<8x20xf32>
    %754 = math.tanh %753 : vector<8x20xf32>
    %cst_67 = arith.constant 5.000000e-01 : f32
    %755 = vector.broadcast %cst_67 : f32 to vector<8x20xf32>
    %756 = arith.mulf %755, %754 : vector<8x20xf32>
    %cst_68 = arith.constant 5.000000e-01 : f32
    %757 = vector.broadcast %cst_68 : f32 to vector<8x20xf32>
    %758 = arith.addf %756, %757 : vector<8x20xf32>
    %759 = math.tanh %751 : vector<8x20xf32>
    %760 = vector.extract_strided_slice %758 {offsets = [0, 0], sizes = [8, 5], strides = [1, 1]} : vector<8x20xf32> to vector<8x5xf32>
    %761 = vector.extract_strided_slice %758 {offsets = [0, 5], sizes = [8, 5], strides = [1, 1]} : vector<8x20xf32> to vector<8x5xf32>
    %762 = vector.extract_strided_slice %759 {offsets = [0, 10], sizes = [8, 5], strides = [1, 1]} : vector<8x20xf32> to vector<8x5xf32>
    %763 = vector.extract_strided_slice %758 {offsets = [0, 15], sizes = [8, 5], strides = [1, 1]} : vector<8x20xf32> to vector<8x5xf32>
    %764 = arith.mulf %761, %728 : vector<8x5xf32>
    %765 = arith.mulf %760, %762 : vector<8x5xf32>
    %766 = arith.addf %764, %765 : vector<8x5xf32>
    %767 = math.tanh %766 : vector<8x5xf32>
    %768 = arith.mulf %763, %767 : vector<8x5xf32>
    %769 = vector.extract_strided_slice %675 {offsets = [16, 0], sizes = [8, 20], strides = [1, 1]} : vector<64x20xf32> to vector<8x20xf32>
    %770 = vector.extract_strided_slice %768 {offsets = [0, 0], sizes = [8, 1], strides = [1, 1]} : vector<8x5xf32> to vector<8x1xf32>
    %771 = vector.broadcast %770 : vector<8x1xf32> to vector<8x20xf32>
    %772 = arith.mulf %771, %678 : vector<8x20xf32>
    %773 = vector.extract_strided_slice %768 {offsets = [0, 1], sizes = [8, 1], strides = [1, 1]} : vector<8x5xf32> to vector<8x1xf32>
    %774 = vector.broadcast %773 : vector<8x1xf32> to vector<8x20xf32>
    %775 = arith.mulf %774, %681 : vector<8x20xf32>
    %776 = vector.extract_strided_slice %768 {offsets = [0, 2], sizes = [8, 1], strides = [1, 1]} : vector<8x5xf32> to vector<8x1xf32>
    %777 = vector.broadcast %776 : vector<8x1xf32> to vector<8x20xf32>
    %778 = arith.mulf %777, %684 : vector<8x20xf32>
    %779 = vector.extract_strided_slice %768 {offsets = [0, 3], sizes = [8, 1], strides = [1, 1]} : vector<8x5xf32> to vector<8x1xf32>
    %780 = vector.broadcast %779 : vector<8x1xf32> to vector<8x20xf32>
    %781 = arith.mulf %780, %687 : vector<8x20xf32>
    %782 = vector.extract_strided_slice %768 {offsets = [0, 4], sizes = [8, 1], strides = [1, 1]} : vector<8x5xf32> to vector<8x1xf32>
    %783 = vector.broadcast %782 : vector<8x1xf32> to vector<8x20xf32>
    %784 = arith.mulf %783, %690 : vector<8x20xf32>
    %785 = arith.addf %772, %775 : vector<8x20xf32>
    %786 = arith.addf %778, %781 : vector<8x20xf32>
    %787 = arith.addf %785, %786 : vector<8x20xf32>
    %788 = arith.addf %784, %769 : vector<8x20xf32>
    %789 = arith.addf %787, %788 : vector<8x20xf32>
    %cst_69 = arith.constant 5.000000e-01 : f32
    %790 = vector.broadcast %cst_69 : f32 to vector<8x20xf32>
    %791 = arith.mulf %790, %789 : vector<8x20xf32>
    %792 = math.tanh %791 : vector<8x20xf32>
    %cst_70 = arith.constant 5.000000e-01 : f32
    %793 = vector.broadcast %cst_70 : f32 to vector<8x20xf32>
    %794 = arith.mulf %793, %792 : vector<8x20xf32>
    %cst_71 = arith.constant 5.000000e-01 : f32
    %795 = vector.broadcast %cst_71 : f32 to vector<8x20xf32>
    %796 = arith.addf %794, %795 : vector<8x20xf32>
    %797 = math.tanh %789 : vector<8x20xf32>
    %798 = vector.extract_strided_slice %796 {offsets = [0, 0], sizes = [8, 5], strides = [1, 1]} : vector<8x20xf32> to vector<8x5xf32>
    %799 = vector.extract_strided_slice %796 {offsets = [0, 5], sizes = [8, 5], strides = [1, 1]} : vector<8x20xf32> to vector<8x5xf32>
    %800 = vector.extract_strided_slice %797 {offsets = [0, 10], sizes = [8, 5], strides = [1, 1]} : vector<8x20xf32> to vector<8x5xf32>
    %801 = vector.extract_strided_slice %796 {offsets = [0, 15], sizes = [8, 5], strides = [1, 1]} : vector<8x20xf32> to vector<8x5xf32>
    %802 = arith.mulf %799, %766 : vector<8x5xf32>
    %803 = arith.mulf %798, %800 : vector<8x5xf32>
    %804 = arith.addf %802, %803 : vector<8x5xf32>
    %805 = math.tanh %804 : vector<8x5xf32>
    %806 = arith.mulf %801, %805 : vector<8x5xf32>
    %807 = vector.extract_strided_slice %675 {offsets = [24, 0], sizes = [8, 20], strides = [1, 1]} : vector<64x20xf32> to vector<8x20xf32>
    %808 = vector.extract_strided_slice %806 {offsets = [0, 0], sizes = [8, 1], strides = [1, 1]} : vector<8x5xf32> to vector<8x1xf32>
    %809 = vector.broadcast %808 : vector<8x1xf32> to vector<8x20xf32>
    %810 = arith.mulf %809, %678 : vector<8x20xf32>
    %811 = vector.extract_strided_slice %806 {offsets = [0, 1], sizes = [8, 1], strides = [1, 1]} : vector<8x5xf32> to vector<8x1xf32>
    %812 = vector.broadcast %811 : vector<8x1xf32> to vector<8x20xf32>
    %813 = arith.mulf %812, %681 : vector<8x20xf32>
    %814 = vector.extract_strided_slice %806 {offsets = [0, 2], sizes = [8, 1], strides = [1, 1]} : vector<8x5xf32> to vector<8x1xf32>
    %815 = vector.broadcast %814 : vector<8x1xf32> to vector<8x20xf32>
    %816 = arith.mulf %815, %684 : vector<8x20xf32>
    %817 = vector.extract_strided_slice %806 {offsets = [0, 3], sizes = [8, 1], strides = [1, 1]} : vector<8x5xf32> to vector<8x1xf32>
    %818 = vector.broadcast %817 : vector<8x1xf32> to vector<8x20xf32>
    %819 = arith.mulf %818, %687 : vector<8x20xf32>
    %820 = vector.extract_strided_slice %806 {offsets = [0, 4], sizes = [8, 1], strides = [1, 1]} : vector<8x5xf32> to vector<8x1xf32>
    %821 = vector.broadcast %820 : vector<8x1xf32> to vector<8x20xf32>
    %822 = arith.mulf %821, %690 : vector<8x20xf32>
    %823 = arith.addf %810, %813 : vector<8x20xf32>
    %824 = arith.addf %816, %819 : vector<8x20xf32>
    %825 = arith.addf %823, %824 : vector<8x20xf32>
    %826 = arith.addf %822, %807 : vector<8x20xf32>
    %827 = arith.addf %825, %826 : vector<8x20xf32>
    %cst_72 = arith.constant 5.000000e-01 : f32
    %828 = vector.broadcast %cst_72 : f32 to vector<8x20xf32>
    %829 = arith.mulf %828, %827 : vector<8x20xf32>
    %830 = math.tanh %829 : vector<8x20xf32>
    %cst_73 = arith.constant 5.000000e-01 : f32
    %831 = vector.broadcast %cst_73 : f32 to vector<8x20xf32>
    %832 = arith.mulf %831, %830 : vector<8x20xf32>
    %cst_74 = arith.constant 5.000000e-01 : f32
    %833 = vector.broadcast %cst_74 : f32 to vector<8x20xf32>
    %834 = arith.addf %832, %833 : vector<8x20xf32>
    %835 = math.tanh %827 : vector<8x20xf32>
    %836 = vector.extract_strided_slice %834 {offsets = [0, 0], sizes = [8, 5], strides = [1, 1]} : vector<8x20xf32> to vector<8x5xf32>
    %837 = vector.extract_strided_slice %834 {offsets = [0, 5], sizes = [8, 5], strides = [1, 1]} : vector<8x20xf32> to vector<8x5xf32>
    %838 = vector.extract_strided_slice %835 {offsets = [0, 10], sizes = [8, 5], strides = [1, 1]} : vector<8x20xf32> to vector<8x5xf32>
    %839 = vector.extract_strided_slice %834 {offsets = [0, 15], sizes = [8, 5], strides = [1, 1]} : vector<8x20xf32> to vector<8x5xf32>
    %840 = arith.mulf %837, %804 : vector<8x5xf32>
    %841 = arith.mulf %836, %838 : vector<8x5xf32>
    %842 = arith.addf %840, %841 : vector<8x5xf32>
    %843 = math.tanh %842 : vector<8x5xf32>
    %844 = arith.mulf %839, %843 : vector<8x5xf32>
    %845 = vector.extract_strided_slice %675 {offsets = [32, 0], sizes = [8, 20], strides = [1, 1]} : vector<64x20xf32> to vector<8x20xf32>
    %846 = vector.extract_strided_slice %844 {offsets = [0, 0], sizes = [8, 1], strides = [1, 1]} : vector<8x5xf32> to vector<8x1xf32>
    %847 = vector.broadcast %846 : vector<8x1xf32> to vector<8x20xf32>
    %848 = arith.mulf %847, %678 : vector<8x20xf32>
    %849 = vector.extract_strided_slice %844 {offsets = [0, 1], sizes = [8, 1], strides = [1, 1]} : vector<8x5xf32> to vector<8x1xf32>
    %850 = vector.broadcast %849 : vector<8x1xf32> to vector<8x20xf32>
    %851 = arith.mulf %850, %681 : vector<8x20xf32>
    %852 = vector.extract_strided_slice %844 {offsets = [0, 2], sizes = [8, 1], strides = [1, 1]} : vector<8x5xf32> to vector<8x1xf32>
    %853 = vector.broadcast %852 : vector<8x1xf32> to vector<8x20xf32>
    %854 = arith.mulf %853, %684 : vector<8x20xf32>
    %855 = vector.extract_strided_slice %844 {offsets = [0, 3], sizes = [8, 1], strides = [1, 1]} : vector<8x5xf32> to vector<8x1xf32>
    %856 = vector.broadcast %855 : vector<8x1xf32> to vector<8x20xf32>
    %857 = arith.mulf %856, %687 : vector<8x20xf32>
    %858 = vector.extract_strided_slice %844 {offsets = [0, 4], sizes = [8, 1], strides = [1, 1]} : vector<8x5xf32> to vector<8x1xf32>
    %859 = vector.broadcast %858 : vector<8x1xf32> to vector<8x20xf32>
    %860 = arith.mulf %859, %690 : vector<8x20xf32>
    %861 = arith.addf %848, %851 : vector<8x20xf32>
    %862 = arith.addf %854, %857 : vector<8x20xf32>
    %863 = arith.addf %861, %862 : vector<8x20xf32>
    %864 = arith.addf %860, %845 : vector<8x20xf32>
    %865 = arith.addf %863, %864 : vector<8x20xf32>
    %cst_75 = arith.constant 5.000000e-01 : f32
    %866 = vector.broadcast %cst_75 : f32 to vector<8x20xf32>
    %867 = arith.mulf %866, %865 : vector<8x20xf32>
    %868 = math.tanh %867 : vector<8x20xf32>
    %cst_76 = arith.constant 5.000000e-01 : f32
    %869 = vector.broadcast %cst_76 : f32 to vector<8x20xf32>
    %870 = arith.mulf %869, %868 : vector<8x20xf32>
    %cst_77 = arith.constant 5.000000e-01 : f32
    %871 = vector.broadcast %cst_77 : f32 to vector<8x20xf32>
    %872 = arith.addf %870, %871 : vector<8x20xf32>
    %873 = math.tanh %865 : vector<8x20xf32>
    %874 = vector.extract_strided_slice %872 {offsets = [0, 0], sizes = [8, 5], strides = [1, 1]} : vector<8x20xf32> to vector<8x5xf32>
    %875 = vector.extract_strided_slice %872 {offsets = [0, 5], sizes = [8, 5], strides = [1, 1]} : vector<8x20xf32> to vector<8x5xf32>
    %876 = vector.extract_strided_slice %873 {offsets = [0, 10], sizes = [8, 5], strides = [1, 1]} : vector<8x20xf32> to vector<8x5xf32>
    %877 = vector.extract_strided_slice %872 {offsets = [0, 15], sizes = [8, 5], strides = [1, 1]} : vector<8x20xf32> to vector<8x5xf32>
    %878 = arith.mulf %875, %842 : vector<8x5xf32>
    %879 = arith.mulf %874, %876 : vector<8x5xf32>
    %880 = arith.addf %878, %879 : vector<8x5xf32>
    %881 = math.tanh %880 : vector<8x5xf32>
    %882 = arith.mulf %877, %881 : vector<8x5xf32>
    %883 = vector.extract_strided_slice %675 {offsets = [40, 0], sizes = [8, 20], strides = [1, 1]} : vector<64x20xf32> to vector<8x20xf32>
    %884 = vector.extract_strided_slice %882 {offsets = [0, 0], sizes = [8, 1], strides = [1, 1]} : vector<8x5xf32> to vector<8x1xf32>
    %885 = vector.broadcast %884 : vector<8x1xf32> to vector<8x20xf32>
    %886 = arith.mulf %885, %678 : vector<8x20xf32>
    %887 = vector.extract_strided_slice %882 {offsets = [0, 1], sizes = [8, 1], strides = [1, 1]} : vector<8x5xf32> to vector<8x1xf32>
    %888 = vector.broadcast %887 : vector<8x1xf32> to vector<8x20xf32>
    %889 = arith.mulf %888, %681 : vector<8x20xf32>
    %890 = vector.extract_strided_slice %882 {offsets = [0, 2], sizes = [8, 1], strides = [1, 1]} : vector<8x5xf32> to vector<8x1xf32>
    %891 = vector.broadcast %890 : vector<8x1xf32> to vector<8x20xf32>
    %892 = arith.mulf %891, %684 : vector<8x20xf32>
    %893 = vector.extract_strided_slice %882 {offsets = [0, 3], sizes = [8, 1], strides = [1, 1]} : vector<8x5xf32> to vector<8x1xf32>
    %894 = vector.broadcast %893 : vector<8x1xf32> to vector<8x20xf32>
    %895 = arith.mulf %894, %687 : vector<8x20xf32>
    %896 = vector.extract_strided_slice %882 {offsets = [0, 4], sizes = [8, 1], strides = [1, 1]} : vector<8x5xf32> to vector<8x1xf32>
    %897 = vector.broadcast %896 : vector<8x1xf32> to vector<8x20xf32>
    %898 = arith.mulf %897, %690 : vector<8x20xf32>
    %899 = arith.addf %886, %889 : vector<8x20xf32>
    %900 = arith.addf %892, %895 : vector<8x20xf32>
    %901 = arith.addf %899, %900 : vector<8x20xf32>
    %902 = arith.addf %898, %883 : vector<8x20xf32>
    %903 = arith.addf %901, %902 : vector<8x20xf32>
    %cst_78 = arith.constant 5.000000e-01 : f32
    %904 = vector.broadcast %cst_78 : f32 to vector<8x20xf32>
    %905 = arith.mulf %904, %903 : vector<8x20xf32>
    %906 = math.tanh %905 : vector<8x20xf32>
    %cst_79 = arith.constant 5.000000e-01 : f32
    %907 = vector.broadcast %cst_79 : f32 to vector<8x20xf32>
    %908 = arith.mulf %907, %906 : vector<8x20xf32>
    %cst_80 = arith.constant 5.000000e-01 : f32
    %909 = vector.broadcast %cst_80 : f32 to vector<8x20xf32>
    %910 = arith.addf %908, %909 : vector<8x20xf32>
    %911 = math.tanh %903 : vector<8x20xf32>
    %912 = vector.extract_strided_slice %910 {offsets = [0, 0], sizes = [8, 5], strides = [1, 1]} : vector<8x20xf32> to vector<8x5xf32>
    %913 = vector.extract_strided_slice %910 {offsets = [0, 5], sizes = [8, 5], strides = [1, 1]} : vector<8x20xf32> to vector<8x5xf32>
    %914 = vector.extract_strided_slice %911 {offsets = [0, 10], sizes = [8, 5], strides = [1, 1]} : vector<8x20xf32> to vector<8x5xf32>
    %915 = vector.extract_strided_slice %910 {offsets = [0, 15], sizes = [8, 5], strides = [1, 1]} : vector<8x20xf32> to vector<8x5xf32>
    %916 = arith.mulf %913, %880 : vector<8x5xf32>
    %917 = arith.mulf %912, %914 : vector<8x5xf32>
    %918 = arith.addf %916, %917 : vector<8x5xf32>
    %919 = math.tanh %918 : vector<8x5xf32>
    %920 = arith.mulf %915, %919 : vector<8x5xf32>
    %921 = vector.extract_strided_slice %675 {offsets = [48, 0], sizes = [8, 20], strides = [1, 1]} : vector<64x20xf32> to vector<8x20xf32>
    %922 = vector.extract_strided_slice %920 {offsets = [0, 0], sizes = [8, 1], strides = [1, 1]} : vector<8x5xf32> to vector<8x1xf32>
    %923 = vector.broadcast %922 : vector<8x1xf32> to vector<8x20xf32>
    %924 = arith.mulf %923, %678 : vector<8x20xf32>
    %925 = vector.extract_strided_slice %920 {offsets = [0, 1], sizes = [8, 1], strides = [1, 1]} : vector<8x5xf32> to vector<8x1xf32>
    %926 = vector.broadcast %925 : vector<8x1xf32> to vector<8x20xf32>
    %927 = arith.mulf %926, %681 : vector<8x20xf32>
    %928 = vector.extract_strided_slice %920 {offsets = [0, 2], sizes = [8, 1], strides = [1, 1]} : vector<8x5xf32> to vector<8x1xf32>
    %929 = vector.broadcast %928 : vector<8x1xf32> to vector<8x20xf32>
    %930 = arith.mulf %929, %684 : vector<8x20xf32>
    %931 = vector.extract_strided_slice %920 {offsets = [0, 3], sizes = [8, 1], strides = [1, 1]} : vector<8x5xf32> to vector<8x1xf32>
    %932 = vector.broadcast %931 : vector<8x1xf32> to vector<8x20xf32>
    %933 = arith.mulf %932, %687 : vector<8x20xf32>
    %934 = vector.extract_strided_slice %920 {offsets = [0, 4], sizes = [8, 1], strides = [1, 1]} : vector<8x5xf32> to vector<8x1xf32>
    %935 = vector.broadcast %934 : vector<8x1xf32> to vector<8x20xf32>
    %936 = arith.mulf %935, %690 : vector<8x20xf32>
    %937 = arith.addf %924, %927 : vector<8x20xf32>
    %938 = arith.addf %930, %933 : vector<8x20xf32>
    %939 = arith.addf %937, %938 : vector<8x20xf32>
    %940 = arith.addf %936, %921 : vector<8x20xf32>
    %941 = arith.addf %939, %940 : vector<8x20xf32>
    %cst_81 = arith.constant 5.000000e-01 : f32
    %942 = vector.broadcast %cst_81 : f32 to vector<8x20xf32>
    %943 = arith.mulf %942, %941 : vector<8x20xf32>
    %944 = math.tanh %943 : vector<8x20xf32>
    %cst_82 = arith.constant 5.000000e-01 : f32
    %945 = vector.broadcast %cst_82 : f32 to vector<8x20xf32>
    %946 = arith.mulf %945, %944 : vector<8x20xf32>
    %cst_83 = arith.constant 5.000000e-01 : f32
    %947 = vector.broadcast %cst_83 : f32 to vector<8x20xf32>
    %948 = arith.addf %946, %947 : vector<8x20xf32>
    %949 = math.tanh %941 : vector<8x20xf32>
    %950 = vector.extract_strided_slice %948 {offsets = [0, 0], sizes = [8, 5], strides = [1, 1]} : vector<8x20xf32> to vector<8x5xf32>
    %951 = vector.extract_strided_slice %948 {offsets = [0, 5], sizes = [8, 5], strides = [1, 1]} : vector<8x20xf32> to vector<8x5xf32>
    %952 = vector.extract_strided_slice %949 {offsets = [0, 10], sizes = [8, 5], strides = [1, 1]} : vector<8x20xf32> to vector<8x5xf32>
    %953 = vector.extract_strided_slice %948 {offsets = [0, 15], sizes = [8, 5], strides = [1, 1]} : vector<8x20xf32> to vector<8x5xf32>
    %954 = arith.mulf %951, %918 : vector<8x5xf32>
    %955 = arith.mulf %950, %952 : vector<8x5xf32>
    %956 = arith.addf %954, %955 : vector<8x5xf32>
    %957 = math.tanh %956 : vector<8x5xf32>
    %958 = arith.mulf %953, %957 : vector<8x5xf32>
    %959 = vector.extract_strided_slice %675 {offsets = [56, 0], sizes = [8, 20], strides = [1, 1]} : vector<64x20xf32> to vector<8x20xf32>
    %960 = vector.extract_strided_slice %958 {offsets = [0, 0], sizes = [8, 1], strides = [1, 1]} : vector<8x5xf32> to vector<8x1xf32>
    %961 = vector.broadcast %960 : vector<8x1xf32> to vector<8x20xf32>
    %962 = arith.mulf %961, %678 : vector<8x20xf32>
    %963 = vector.extract_strided_slice %958 {offsets = [0, 1], sizes = [8, 1], strides = [1, 1]} : vector<8x5xf32> to vector<8x1xf32>
    %964 = vector.broadcast %963 : vector<8x1xf32> to vector<8x20xf32>
    %965 = arith.mulf %964, %681 : vector<8x20xf32>
    %966 = vector.extract_strided_slice %958 {offsets = [0, 2], sizes = [8, 1], strides = [1, 1]} : vector<8x5xf32> to vector<8x1xf32>
    %967 = vector.broadcast %966 : vector<8x1xf32> to vector<8x20xf32>
    %968 = arith.mulf %967, %684 : vector<8x20xf32>
    %969 = vector.extract_strided_slice %958 {offsets = [0, 3], sizes = [8, 1], strides = [1, 1]} : vector<8x5xf32> to vector<8x1xf32>
    %970 = vector.broadcast %969 : vector<8x1xf32> to vector<8x20xf32>
    %971 = arith.mulf %970, %687 : vector<8x20xf32>
    %972 = vector.extract_strided_slice %958 {offsets = [0, 4], sizes = [8, 1], strides = [1, 1]} : vector<8x5xf32> to vector<8x1xf32>
    %973 = vector.broadcast %972 : vector<8x1xf32> to vector<8x20xf32>
    %974 = arith.mulf %973, %690 : vector<8x20xf32>
    %975 = arith.addf %962, %965 : vector<8x20xf32>
    %976 = arith.addf %968, %971 : vector<8x20xf32>
    %977 = arith.addf %975, %976 : vector<8x20xf32>
    %978 = arith.addf %974, %959 : vector<8x20xf32>
    %979 = arith.addf %977, %978 : vector<8x20xf32>
    %cst_84 = arith.constant 5.000000e-01 : f32
    %980 = vector.broadcast %cst_84 : f32 to vector<8x20xf32>
    %981 = arith.mulf %980, %979 : vector<8x20xf32>
    %982 = math.tanh %981 : vector<8x20xf32>
    %cst_85 = arith.constant 5.000000e-01 : f32
    %983 = vector.broadcast %cst_85 : f32 to vector<8x20xf32>
    %984 = arith.mulf %983, %982 : vector<8x20xf32>
    %cst_86 = arith.constant 5.000000e-01 : f32
    %985 = vector.broadcast %cst_86 : f32 to vector<8x20xf32>
    %986 = arith.addf %984, %985 : vector<8x20xf32>
    %987 = math.tanh %979 : vector<8x20xf32>
    %988 = vector.extract_strided_slice %986 {offsets = [0, 0], sizes = [8, 5], strides = [1, 1]} : vector<8x20xf32> to vector<8x5xf32>
    %989 = vector.extract_strided_slice %986 {offsets = [0, 5], sizes = [8, 5], strides = [1, 1]} : vector<8x20xf32> to vector<8x5xf32>
    %990 = vector.extract_strided_slice %987 {offsets = [0, 10], sizes = [8, 5], strides = [1, 1]} : vector<8x20xf32> to vector<8x5xf32>
    %991 = vector.extract_strided_slice %986 {offsets = [0, 15], sizes = [8, 5], strides = [1, 1]} : vector<8x20xf32> to vector<8x5xf32>
    %992 = arith.mulf %989, %956 : vector<8x5xf32>
    %993 = arith.mulf %988, %990 : vector<8x5xf32>
    %994 = arith.addf %992, %993 : vector<8x5xf32>
    %995 = math.tanh %994 : vector<8x5xf32>
    %996 = arith.mulf %991, %995 : vector<8x5xf32>
    %997 = tpu.concatenate %730, %768, %806, %844, %882, %920, %958, %996 in 0 : vector<8x5xf32>, vector<8x5xf32>, vector<8x5xf32>, vector<8x5xf32>, vector<8x5xf32>, vector<8x5xf32>, vector<8x5xf32>, vector<8x5xf32> -> vector<64x5xf32>
    %cst_87 = arith.constant dense<0.000000e+00> : vector<64x20xf32>
    %998 = tpu.matmul %997, %11, %cst_87 {dimension_numbers = #tpu.dot_dimension_numbers<[1], [0], [0], [1], [0, 0, 1, 1], [], []>} : vector<64x5xf32>, vector<5x20xf32>, vector<64x20xf32> -> vector<64x20xf32>
    %999 = vector.broadcast %13 : vector<1x20xf32> to vector<64x20xf32>
    %1000 = arith.addf %998, %999 : vector<64x20xf32>
    %1001 = vector.extract_strided_slice %12 {offsets = [0, 0], sizes = [1, 20], strides = [1, 1]} : vector<5x20xf32> to vector<1x20xf32>
    %1002 = vector.shape_cast %1001 : vector<1x20xf32> to vector<1x20xf32>
    %1003 = vector.broadcast %1002 : vector<1x20xf32> to vector<8x20xf32>
    %1004 = vector.extract_strided_slice %12 {offsets = [1, 0], sizes = [1, 20], strides = [1, 1]} : vector<5x20xf32> to vector<1x20xf32>
    %1005 = vector.shape_cast %1004 : vector<1x20xf32> to vector<1x20xf32>
    %1006 = vector.broadcast %1005 : vector<1x20xf32> to vector<8x20xf32>
    %1007 = vector.extract_strided_slice %12 {offsets = [2, 0], sizes = [1, 20], strides = [1, 1]} : vector<5x20xf32> to vector<1x20xf32>
    %1008 = vector.shape_cast %1007 : vector<1x20xf32> to vector<1x20xf32>
    %1009 = vector.broadcast %1008 : vector<1x20xf32> to vector<8x20xf32>
    %1010 = vector.extract_strided_slice %12 {offsets = [3, 0], sizes = [1, 20], strides = [1, 1]} : vector<5x20xf32> to vector<1x20xf32>
    %1011 = vector.shape_cast %1010 : vector<1x20xf32> to vector<1x20xf32>
    %1012 = vector.broadcast %1011 : vector<1x20xf32> to vector<8x20xf32>
    %1013 = vector.extract_strided_slice %12 {offsets = [4, 0], sizes = [1, 20], strides = [1, 1]} : vector<5x20xf32> to vector<1x20xf32>
    %1014 = vector.shape_cast %1013 : vector<1x20xf32> to vector<1x20xf32>
    %1015 = vector.broadcast %1014 : vector<1x20xf32> to vector<8x20xf32>
    %cst_88 = arith.constant 0.000000e+00 : f32
    %1016 = vector.broadcast %cst_88 : f32 to vector<8x5xf32>
    %cst_89 = arith.constant 0.000000e+00 : f32
    %1017 = vector.broadcast %cst_89 : f32 to vector<8x5xf32>
    %1018 = vector.extract_strided_slice %1000 {offsets = [0, 0], sizes = [8, 20], strides = [1, 1]} : vector<64x20xf32> to vector<8x20xf32>
    %1019 = vector.extract_strided_slice %1016 {offsets = [0, 0], sizes = [8, 1], strides = [1, 1]} : vector<8x5xf32> to vector<8x1xf32>
    %1020 = vector.broadcast %1019 : vector<8x1xf32> to vector<8x20xf32>
    %1021 = arith.mulf %1020, %1003 : vector<8x20xf32>
    %1022 = vector.extract_strided_slice %1016 {offsets = [0, 1], sizes = [8, 1], strides = [1, 1]} : vector<8x5xf32> to vector<8x1xf32>
    %1023 = vector.broadcast %1022 : vector<8x1xf32> to vector<8x20xf32>
    %1024 = arith.mulf %1023, %1006 : vector<8x20xf32>
    %1025 = vector.extract_strided_slice %1016 {offsets = [0, 2], sizes = [8, 1], strides = [1, 1]} : vector<8x5xf32> to vector<8x1xf32>
    %1026 = vector.broadcast %1025 : vector<8x1xf32> to vector<8x20xf32>
    %1027 = arith.mulf %1026, %1009 : vector<8x20xf32>
    %1028 = vector.extract_strided_slice %1016 {offsets = [0, 3], sizes = [8, 1], strides = [1, 1]} : vector<8x5xf32> to vector<8x1xf32>
    %1029 = vector.broadcast %1028 : vector<8x1xf32> to vector<8x20xf32>
    %1030 = arith.mulf %1029, %1012 : vector<8x20xf32>
    %1031 = vector.extract_strided_slice %1016 {offsets = [0, 4], sizes = [8, 1], strides = [1, 1]} : vector<8x5xf32> to vector<8x1xf32>
    %1032 = vector.broadcast %1031 : vector<8x1xf32> to vector<8x20xf32>
    %1033 = arith.mulf %1032, %1015 : vector<8x20xf32>
    %1034 = arith.addf %1021, %1024 : vector<8x20xf32>
    %1035 = arith.addf %1027, %1030 : vector<8x20xf32>
    %1036 = arith.addf %1034, %1035 : vector<8x20xf32>
    %1037 = arith.addf %1033, %1018 : vector<8x20xf32>
    %1038 = arith.addf %1036, %1037 : vector<8x20xf32>
    %cst_90 = arith.constant 5.000000e-01 : f32
    %1039 = vector.broadcast %cst_90 : f32 to vector<8x20xf32>
    %1040 = arith.mulf %1039, %1038 : vector<8x20xf32>
    %1041 = math.tanh %1040 : vector<8x20xf32>
    %cst_91 = arith.constant 5.000000e-01 : f32
    %1042 = vector.broadcast %cst_91 : f32 to vector<8x20xf32>
    %1043 = arith.mulf %1042, %1041 : vector<8x20xf32>
    %cst_92 = arith.constant 5.000000e-01 : f32
    %1044 = vector.broadcast %cst_92 : f32 to vector<8x20xf32>
    %1045 = arith.addf %1043, %1044 : vector<8x20xf32>
    %1046 = math.tanh %1038 : vector<8x20xf32>
    %1047 = vector.extract_strided_slice %1045 {offsets = [0, 0], sizes = [8, 5], strides = [1, 1]} : vector<8x20xf32> to vector<8x5xf32>
    %1048 = vector.extract_strided_slice %1045 {offsets = [0, 5], sizes = [8, 5], strides = [1, 1]} : vector<8x20xf32> to vector<8x5xf32>
    %1049 = vector.extract_strided_slice %1046 {offsets = [0, 10], sizes = [8, 5], strides = [1, 1]} : vector<8x20xf32> to vector<8x5xf32>
    %1050 = vector.extract_strided_slice %1045 {offsets = [0, 15], sizes = [8, 5], strides = [1, 1]} : vector<8x20xf32> to vector<8x5xf32>
    %1051 = arith.mulf %1048, %1017 : vector<8x5xf32>
    %1052 = arith.mulf %1047, %1049 : vector<8x5xf32>
    %1053 = arith.addf %1051, %1052 : vector<8x5xf32>
    %1054 = math.tanh %1053 : vector<8x5xf32>
    %1055 = arith.mulf %1050, %1054 : vector<8x5xf32>
    %1056 = vector.extract_strided_slice %1000 {offsets = [8, 0], sizes = [8, 20], strides = [1, 1]} : vector<64x20xf32> to vector<8x20xf32>
    %1057 = vector.extract_strided_slice %1055 {offsets = [0, 0], sizes = [8, 1], strides = [1, 1]} : vector<8x5xf32> to vector<8x1xf32>
    %1058 = vector.broadcast %1057 : vector<8x1xf32> to vector<8x20xf32>
    %1059 = arith.mulf %1058, %1003 : vector<8x20xf32>
    %1060 = vector.extract_strided_slice %1055 {offsets = [0, 1], sizes = [8, 1], strides = [1, 1]} : vector<8x5xf32> to vector<8x1xf32>
    %1061 = vector.broadcast %1060 : vector<8x1xf32> to vector<8x20xf32>
    %1062 = arith.mulf %1061, %1006 : vector<8x20xf32>
    %1063 = vector.extract_strided_slice %1055 {offsets = [0, 2], sizes = [8, 1], strides = [1, 1]} : vector<8x5xf32> to vector<8x1xf32>
    %1064 = vector.broadcast %1063 : vector<8x1xf32> to vector<8x20xf32>
    %1065 = arith.mulf %1064, %1009 : vector<8x20xf32>
    %1066 = vector.extract_strided_slice %1055 {offsets = [0, 3], sizes = [8, 1], strides = [1, 1]} : vector<8x5xf32> to vector<8x1xf32>
    %1067 = vector.broadcast %1066 : vector<8x1xf32> to vector<8x20xf32>
    %1068 = arith.mulf %1067, %1012 : vector<8x20xf32>
    %1069 = vector.extract_strided_slice %1055 {offsets = [0, 4], sizes = [8, 1], strides = [1, 1]} : vector<8x5xf32> to vector<8x1xf32>
    %1070 = vector.broadcast %1069 : vector<8x1xf32> to vector<8x20xf32>
    %1071 = arith.mulf %1070, %1015 : vector<8x20xf32>
    %1072 = arith.addf %1059, %1062 : vector<8x20xf32>
    %1073 = arith.addf %1065, %1068 : vector<8x20xf32>
    %1074 = arith.addf %1072, %1073 : vector<8x20xf32>
    %1075 = arith.addf %1071, %1056 : vector<8x20xf32>
    %1076 = arith.addf %1074, %1075 : vector<8x20xf32>
    %cst_93 = arith.constant 5.000000e-01 : f32
    %1077 = vector.broadcast %cst_93 : f32 to vector<8x20xf32>
    %1078 = arith.mulf %1077, %1076 : vector<8x20xf32>
    %1079 = math.tanh %1078 : vector<8x20xf32>
    %cst_94 = arith.constant 5.000000e-01 : f32
    %1080 = vector.broadcast %cst_94 : f32 to vector<8x20xf32>
    %1081 = arith.mulf %1080, %1079 : vector<8x20xf32>
    %cst_95 = arith.constant 5.000000e-01 : f32
    %1082 = vector.broadcast %cst_95 : f32 to vector<8x20xf32>
    %1083 = arith.addf %1081, %1082 : vector<8x20xf32>
    %1084 = math.tanh %1076 : vector<8x20xf32>
    %1085 = vector.extract_strided_slice %1083 {offsets = [0, 0], sizes = [8, 5], strides = [1, 1]} : vector<8x20xf32> to vector<8x5xf32>
    %1086 = vector.extract_strided_slice %1083 {offsets = [0, 5], sizes = [8, 5], strides = [1, 1]} : vector<8x20xf32> to vector<8x5xf32>
    %1087 = vector.extract_strided_slice %1084 {offsets = [0, 10], sizes = [8, 5], strides = [1, 1]} : vector<8x20xf32> to vector<8x5xf32>
    %1088 = vector.extract_strided_slice %1083 {offsets = [0, 15], sizes = [8, 5], strides = [1, 1]} : vector<8x20xf32> to vector<8x5xf32>
    %1089 = arith.mulf %1086, %1053 : vector<8x5xf32>
    %1090 = arith.mulf %1085, %1087 : vector<8x5xf32>
    %1091 = arith.addf %1089, %1090 : vector<8x5xf32>
    %1092 = math.tanh %1091 : vector<8x5xf32>
    %1093 = arith.mulf %1088, %1092 : vector<8x5xf32>
    %1094 = vector.extract_strided_slice %1000 {offsets = [16, 0], sizes = [8, 20], strides = [1, 1]} : vector<64x20xf32> to vector<8x20xf32>
    %1095 = vector.extract_strided_slice %1093 {offsets = [0, 0], sizes = [8, 1], strides = [1, 1]} : vector<8x5xf32> to vector<8x1xf32>
    %1096 = vector.broadcast %1095 : vector<8x1xf32> to vector<8x20xf32>
    %1097 = arith.mulf %1096, %1003 : vector<8x20xf32>
    %1098 = vector.extract_strided_slice %1093 {offsets = [0, 1], sizes = [8, 1], strides = [1, 1]} : vector<8x5xf32> to vector<8x1xf32>
    %1099 = vector.broadcast %1098 : vector<8x1xf32> to vector<8x20xf32>
    %1100 = arith.mulf %1099, %1006 : vector<8x20xf32>
    %1101 = vector.extract_strided_slice %1093 {offsets = [0, 2], sizes = [8, 1], strides = [1, 1]} : vector<8x5xf32> to vector<8x1xf32>
    %1102 = vector.broadcast %1101 : vector<8x1xf32> to vector<8x20xf32>
    %1103 = arith.mulf %1102, %1009 : vector<8x20xf32>
    %1104 = vector.extract_strided_slice %1093 {offsets = [0, 3], sizes = [8, 1], strides = [1, 1]} : vector<8x5xf32> to vector<8x1xf32>
    %1105 = vector.broadcast %1104 : vector<8x1xf32> to vector<8x20xf32>
    %1106 = arith.mulf %1105, %1012 : vector<8x20xf32>
    %1107 = vector.extract_strided_slice %1093 {offsets = [0, 4], sizes = [8, 1], strides = [1, 1]} : vector<8x5xf32> to vector<8x1xf32>
    %1108 = vector.broadcast %1107 : vector<8x1xf32> to vector<8x20xf32>
    %1109 = arith.mulf %1108, %1015 : vector<8x20xf32>
    %1110 = arith.addf %1097, %1100 : vector<8x20xf32>
    %1111 = arith.addf %1103, %1106 : vector<8x20xf32>
    %1112 = arith.addf %1110, %1111 : vector<8x20xf32>
    %1113 = arith.addf %1109, %1094 : vector<8x20xf32>
    %1114 = arith.addf %1112, %1113 : vector<8x20xf32>
    %cst_96 = arith.constant 5.000000e-01 : f32
    %1115 = vector.broadcast %cst_96 : f32 to vector<8x20xf32>
    %1116 = arith.mulf %1115, %1114 : vector<8x20xf32>
    %1117 = math.tanh %1116 : vector<8x20xf32>
    %cst_97 = arith.constant 5.000000e-01 : f32
    %1118 = vector.broadcast %cst_97 : f32 to vector<8x20xf32>
    %1119 = arith.mulf %1118, %1117 : vector<8x20xf32>
    %cst_98 = arith.constant 5.000000e-01 : f32
    %1120 = vector.broadcast %cst_98 : f32 to vector<8x20xf32>
    %1121 = arith.addf %1119, %1120 : vector<8x20xf32>
    %1122 = math.tanh %1114 : vector<8x20xf32>
    %1123 = vector.extract_strided_slice %1121 {offsets = [0, 0], sizes = [8, 5], strides = [1, 1]} : vector<8x20xf32> to vector<8x5xf32>
    %1124 = vector.extract_strided_slice %1121 {offsets = [0, 5], sizes = [8, 5], strides = [1, 1]} : vector<8x20xf32> to vector<8x5xf32>
    %1125 = vector.extract_strided_slice %1122 {offsets = [0, 10], sizes = [8, 5], strides = [1, 1]} : vector<8x20xf32> to vector<8x5xf32>
    %1126 = vector.extract_strided_slice %1121 {offsets = [0, 15], sizes = [8, 5], strides = [1, 1]} : vector<8x20xf32> to vector<8x5xf32>
    %1127 = arith.mulf %1124, %1091 : vector<8x5xf32>
    %1128 = arith.mulf %1123, %1125 : vector<8x5xf32>
    %1129 = arith.addf %1127, %1128 : vector<8x5xf32>
    %1130 = math.tanh %1129 : vector<8x5xf32>
    %1131 = arith.mulf %1126, %1130 : vector<8x5xf32>
    %1132 = vector.extract_strided_slice %1000 {offsets = [24, 0], sizes = [8, 20], strides = [1, 1]} : vector<64x20xf32> to vector<8x20xf32>
    %1133 = vector.extract_strided_slice %1131 {offsets = [0, 0], sizes = [8, 1], strides = [1, 1]} : vector<8x5xf32> to vector<8x1xf32>
    %1134 = vector.broadcast %1133 : vector<8x1xf32> to vector<8x20xf32>
    %1135 = arith.mulf %1134, %1003 : vector<8x20xf32>
    %1136 = vector.extract_strided_slice %1131 {offsets = [0, 1], sizes = [8, 1], strides = [1, 1]} : vector<8x5xf32> to vector<8x1xf32>
    %1137 = vector.broadcast %1136 : vector<8x1xf32> to vector<8x20xf32>
    %1138 = arith.mulf %1137, %1006 : vector<8x20xf32>
    %1139 = vector.extract_strided_slice %1131 {offsets = [0, 2], sizes = [8, 1], strides = [1, 1]} : vector<8x5xf32> to vector<8x1xf32>
    %1140 = vector.broadcast %1139 : vector<8x1xf32> to vector<8x20xf32>
    %1141 = arith.mulf %1140, %1009 : vector<8x20xf32>
    %1142 = vector.extract_strided_slice %1131 {offsets = [0, 3], sizes = [8, 1], strides = [1, 1]} : vector<8x5xf32> to vector<8x1xf32>
    %1143 = vector.broadcast %1142 : vector<8x1xf32> to vector<8x20xf32>
    %1144 = arith.mulf %1143, %1012 : vector<8x20xf32>
    %1145 = vector.extract_strided_slice %1131 {offsets = [0, 4], sizes = [8, 1], strides = [1, 1]} : vector<8x5xf32> to vector<8x1xf32>
    %1146 = vector.broadcast %1145 : vector<8x1xf32> to vector<8x20xf32>
    %1147 = arith.mulf %1146, %1015 : vector<8x20xf32>
    %1148 = arith.addf %1135, %1138 : vector<8x20xf32>
    %1149 = arith.addf %1141, %1144 : vector<8x20xf32>
    %1150 = arith.addf %1148, %1149 : vector<8x20xf32>
    %1151 = arith.addf %1147, %1132 : vector<8x20xf32>
    %1152 = arith.addf %1150, %1151 : vector<8x20xf32>
    %cst_99 = arith.constant 5.000000e-01 : f32
    %1153 = vector.broadcast %cst_99 : f32 to vector<8x20xf32>
    %1154 = arith.mulf %1153, %1152 : vector<8x20xf32>
    %1155 = math.tanh %1154 : vector<8x20xf32>
    %cst_100 = arith.constant 5.000000e-01 : f32
    %1156 = vector.broadcast %cst_100 : f32 to vector<8x20xf32>
    %1157 = arith.mulf %1156, %1155 : vector<8x20xf32>
    %cst_101 = arith.constant 5.000000e-01 : f32
    %1158 = vector.broadcast %cst_101 : f32 to vector<8x20xf32>
    %1159 = arith.addf %1157, %1158 : vector<8x20xf32>
    %1160 = math.tanh %1152 : vector<8x20xf32>
    %1161 = vector.extract_strided_slice %1159 {offsets = [0, 0], sizes = [8, 5], strides = [1, 1]} : vector<8x20xf32> to vector<8x5xf32>
    %1162 = vector.extract_strided_slice %1159 {offsets = [0, 5], sizes = [8, 5], strides = [1, 1]} : vector<8x20xf32> to vector<8x5xf32>
    %1163 = vector.extract_strided_slice %1160 {offsets = [0, 10], sizes = [8, 5], strides = [1, 1]} : vector<8x20xf32> to vector<8x5xf32>
    %1164 = vector.extract_strided_slice %1159 {offsets = [0, 15], sizes = [8, 5], strides = [1, 1]} : vector<8x20xf32> to vector<8x5xf32>
    %1165 = arith.mulf %1162, %1129 : vector<8x5xf32>
    %1166 = arith.mulf %1161, %1163 : vector<8x5xf32>
    %1167 = arith.addf %1165, %1166 : vector<8x5xf32>
    %1168 = math.tanh %1167 : vector<8x5xf32>
    %1169 = arith.mulf %1164, %1168 : vector<8x5xf32>
    %1170 = vector.extract_strided_slice %1000 {offsets = [32, 0], sizes = [8, 20], strides = [1, 1]} : vector<64x20xf32> to vector<8x20xf32>
    %1171 = vector.extract_strided_slice %1169 {offsets = [0, 0], sizes = [8, 1], strides = [1, 1]} : vector<8x5xf32> to vector<8x1xf32>
    %1172 = vector.broadcast %1171 : vector<8x1xf32> to vector<8x20xf32>
    %1173 = arith.mulf %1172, %1003 : vector<8x20xf32>
    %1174 = vector.extract_strided_slice %1169 {offsets = [0, 1], sizes = [8, 1], strides = [1, 1]} : vector<8x5xf32> to vector<8x1xf32>
    %1175 = vector.broadcast %1174 : vector<8x1xf32> to vector<8x20xf32>
    %1176 = arith.mulf %1175, %1006 : vector<8x20xf32>
    %1177 = vector.extract_strided_slice %1169 {offsets = [0, 2], sizes = [8, 1], strides = [1, 1]} : vector<8x5xf32> to vector<8x1xf32>
    %1178 = vector.broadcast %1177 : vector<8x1xf32> to vector<8x20xf32>
    %1179 = arith.mulf %1178, %1009 : vector<8x20xf32>
    %1180 = vector.extract_strided_slice %1169 {offsets = [0, 3], sizes = [8, 1], strides = [1, 1]} : vector<8x5xf32> to vector<8x1xf32>
    %1181 = vector.broadcast %1180 : vector<8x1xf32> to vector<8x20xf32>
    %1182 = arith.mulf %1181, %1012 : vector<8x20xf32>
    %1183 = vector.extract_strided_slice %1169 {offsets = [0, 4], sizes = [8, 1], strides = [1, 1]} : vector<8x5xf32> to vector<8x1xf32>
    %1184 = vector.broadcast %1183 : vector<8x1xf32> to vector<8x20xf32>
    %1185 = arith.mulf %1184, %1015 : vector<8x20xf32>
    %1186 = arith.addf %1173, %1176 : vector<8x20xf32>
    %1187 = arith.addf %1179, %1182 : vector<8x20xf32>
    %1188 = arith.addf %1186, %1187 : vector<8x20xf32>
    %1189 = arith.addf %1185, %1170 : vector<8x20xf32>
    %1190 = arith.addf %1188, %1189 : vector<8x20xf32>
    %cst_102 = arith.constant 5.000000e-01 : f32
    %1191 = vector.broadcast %cst_102 : f32 to vector<8x20xf32>
    %1192 = arith.mulf %1191, %1190 : vector<8x20xf32>
    %1193 = math.tanh %1192 : vector<8x20xf32>
    %cst_103 = arith.constant 5.000000e-01 : f32
    %1194 = vector.broadcast %cst_103 : f32 to vector<8x20xf32>
    %1195 = arith.mulf %1194, %1193 : vector<8x20xf32>
    %cst_104 = arith.constant 5.000000e-01 : f32
    %1196 = vector.broadcast %cst_104 : f32 to vector<8x20xf32>
    %1197 = arith.addf %1195, %1196 : vector<8x20xf32>
    %1198 = math.tanh %1190 : vector<8x20xf32>
    %1199 = vector.extract_strided_slice %1197 {offsets = [0, 0], sizes = [8, 5], strides = [1, 1]} : vector<8x20xf32> to vector<8x5xf32>
    %1200 = vector.extract_strided_slice %1197 {offsets = [0, 5], sizes = [8, 5], strides = [1, 1]} : vector<8x20xf32> to vector<8x5xf32>
    %1201 = vector.extract_strided_slice %1198 {offsets = [0, 10], sizes = [8, 5], strides = [1, 1]} : vector<8x20xf32> to vector<8x5xf32>
    %1202 = vector.extract_strided_slice %1197 {offsets = [0, 15], sizes = [8, 5], strides = [1, 1]} : vector<8x20xf32> to vector<8x5xf32>
    %1203 = arith.mulf %1200, %1167 : vector<8x5xf32>
    %1204 = arith.mulf %1199, %1201 : vector<8x5xf32>
    %1205 = arith.addf %1203, %1204 : vector<8x5xf32>
    %1206 = math.tanh %1205 : vector<8x5xf32>
    %1207 = arith.mulf %1202, %1206 : vector<8x5xf32>
    %1208 = vector.extract_strided_slice %1000 {offsets = [40, 0], sizes = [8, 20], strides = [1, 1]} : vector<64x20xf32> to vector<8x20xf32>
    %1209 = vector.extract_strided_slice %1207 {offsets = [0, 0], sizes = [8, 1], strides = [1, 1]} : vector<8x5xf32> to vector<8x1xf32>
    %1210 = vector.broadcast %1209 : vector<8x1xf32> to vector<8x20xf32>
    %1211 = arith.mulf %1210, %1003 : vector<8x20xf32>
    %1212 = vector.extract_strided_slice %1207 {offsets = [0, 1], sizes = [8, 1], strides = [1, 1]} : vector<8x5xf32> to vector<8x1xf32>
    %1213 = vector.broadcast %1212 : vector<8x1xf32> to vector<8x20xf32>
    %1214 = arith.mulf %1213, %1006 : vector<8x20xf32>
    %1215 = vector.extract_strided_slice %1207 {offsets = [0, 2], sizes = [8, 1], strides = [1, 1]} : vector<8x5xf32> to vector<8x1xf32>
    %1216 = vector.broadcast %1215 : vector<8x1xf32> to vector<8x20xf32>
    %1217 = arith.mulf %1216, %1009 : vector<8x20xf32>
    %1218 = vector.extract_strided_slice %1207 {offsets = [0, 3], sizes = [8, 1], strides = [1, 1]} : vector<8x5xf32> to vector<8x1xf32>
    %1219 = vector.broadcast %1218 : vector<8x1xf32> to vector<8x20xf32>
    %1220 = arith.mulf %1219, %1012 : vector<8x20xf32>
    %1221 = vector.extract_strided_slice %1207 {offsets = [0, 4], sizes = [8, 1], strides = [1, 1]} : vector<8x5xf32> to vector<8x1xf32>
    %1222 = vector.broadcast %1221 : vector<8x1xf32> to vector<8x20xf32>
    %1223 = arith.mulf %1222, %1015 : vector<8x20xf32>
    %1224 = arith.addf %1211, %1214 : vector<8x20xf32>
    %1225 = arith.addf %1217, %1220 : vector<8x20xf32>
    %1226 = arith.addf %1224, %1225 : vector<8x20xf32>
    %1227 = arith.addf %1223, %1208 : vector<8x20xf32>
    %1228 = arith.addf %1226, %1227 : vector<8x20xf32>
    %cst_105 = arith.constant 5.000000e-01 : f32
    %1229 = vector.broadcast %cst_105 : f32 to vector<8x20xf32>
    %1230 = arith.mulf %1229, %1228 : vector<8x20xf32>
    %1231 = math.tanh %1230 : vector<8x20xf32>
    %cst_106 = arith.constant 5.000000e-01 : f32
    %1232 = vector.broadcast %cst_106 : f32 to vector<8x20xf32>
    %1233 = arith.mulf %1232, %1231 : vector<8x20xf32>
    %cst_107 = arith.constant 5.000000e-01 : f32
    %1234 = vector.broadcast %cst_107 : f32 to vector<8x20xf32>
    %1235 = arith.addf %1233, %1234 : vector<8x20xf32>
    %1236 = math.tanh %1228 : vector<8x20xf32>
    %1237 = vector.extract_strided_slice %1235 {offsets = [0, 0], sizes = [8, 5], strides = [1, 1]} : vector<8x20xf32> to vector<8x5xf32>
    %1238 = vector.extract_strided_slice %1235 {offsets = [0, 5], sizes = [8, 5], strides = [1, 1]} : vector<8x20xf32> to vector<8x5xf32>
    %1239 = vector.extract_strided_slice %1236 {offsets = [0, 10], sizes = [8, 5], strides = [1, 1]} : vector<8x20xf32> to vector<8x5xf32>
    %1240 = vector.extract_strided_slice %1235 {offsets = [0, 15], sizes = [8, 5], strides = [1, 1]} : vector<8x20xf32> to vector<8x5xf32>
    %1241 = arith.mulf %1238, %1205 : vector<8x5xf32>
    %1242 = arith.mulf %1237, %1239 : vector<8x5xf32>
    %1243 = arith.addf %1241, %1242 : vector<8x5xf32>
    %1244 = math.tanh %1243 : vector<8x5xf32>
    %1245 = arith.mulf %1240, %1244 : vector<8x5xf32>
    %1246 = vector.extract_strided_slice %1000 {offsets = [48, 0], sizes = [8, 20], strides = [1, 1]} : vector<64x20xf32> to vector<8x20xf32>
    %1247 = vector.extract_strided_slice %1245 {offsets = [0, 0], sizes = [8, 1], strides = [1, 1]} : vector<8x5xf32> to vector<8x1xf32>
    %1248 = vector.broadcast %1247 : vector<8x1xf32> to vector<8x20xf32>
    %1249 = arith.mulf %1248, %1003 : vector<8x20xf32>
    %1250 = vector.extract_strided_slice %1245 {offsets = [0, 1], sizes = [8, 1], strides = [1, 1]} : vector<8x5xf32> to vector<8x1xf32>
    %1251 = vector.broadcast %1250 : vector<8x1xf32> to vector<8x20xf32>
    %1252 = arith.mulf %1251, %1006 : vector<8x20xf32>
    %1253 = vector.extract_strided_slice %1245 {offsets = [0, 2], sizes = [8, 1], strides = [1, 1]} : vector<8x5xf32> to vector<8x1xf32>
    %1254 = vector.broadcast %1253 : vector<8x1xf32> to vector<8x20xf32>
    %1255 = arith.mulf %1254, %1009 : vector<8x20xf32>
    %1256 = vector.extract_strided_slice %1245 {offsets = [0, 3], sizes = [8, 1], strides = [1, 1]} : vector<8x5xf32> to vector<8x1xf32>
    %1257 = vector.broadcast %1256 : vector<8x1xf32> to vector<8x20xf32>
    %1258 = arith.mulf %1257, %1012 : vector<8x20xf32>
    %1259 = vector.extract_strided_slice %1245 {offsets = [0, 4], sizes = [8, 1], strides = [1, 1]} : vector<8x5xf32> to vector<8x1xf32>
    %1260 = vector.broadcast %1259 : vector<8x1xf32> to vector<8x20xf32>
    %1261 = arith.mulf %1260, %1015 : vector<8x20xf32>
    %1262 = arith.addf %1249, %1252 : vector<8x20xf32>
    %1263 = arith.addf %1255, %1258 : vector<8x20xf32>
    %1264 = arith.addf %1262, %1263 : vector<8x20xf32>
    %1265 = arith.addf %1261, %1246 : vector<8x20xf32>
    %1266 = arith.addf %1264, %1265 : vector<8x20xf32>
    %cst_108 = arith.constant 5.000000e-01 : f32
    %1267 = vector.broadcast %cst_108 : f32 to vector<8x20xf32>
    %1268 = arith.mulf %1267, %1266 : vector<8x20xf32>
    %1269 = math.tanh %1268 : vector<8x20xf32>
    %cst_109 = arith.constant 5.000000e-01 : f32
    %1270 = vector.broadcast %cst_109 : f32 to vector<8x20xf32>
    %1271 = arith.mulf %1270, %1269 : vector<8x20xf32>
    %cst_110 = arith.constant 5.000000e-01 : f32
    %1272 = vector.broadcast %cst_110 : f32 to vector<8x20xf32>
    %1273 = arith.addf %1271, %1272 : vector<8x20xf32>
    %1274 = math.tanh %1266 : vector<8x20xf32>
    %1275 = vector.extract_strided_slice %1273 {offsets = [0, 0], sizes = [8, 5], strides = [1, 1]} : vector<8x20xf32> to vector<8x5xf32>
    %1276 = vector.extract_strided_slice %1273 {offsets = [0, 5], sizes = [8, 5], strides = [1, 1]} : vector<8x20xf32> to vector<8x5xf32>
    %1277 = vector.extract_strided_slice %1274 {offsets = [0, 10], sizes = [8, 5], strides = [1, 1]} : vector<8x20xf32> to vector<8x5xf32>
    %1278 = vector.extract_strided_slice %1273 {offsets = [0, 15], sizes = [8, 5], strides = [1, 1]} : vector<8x20xf32> to vector<8x5xf32>
    %1279 = arith.mulf %1276, %1243 : vector<8x5xf32>
    %1280 = arith.mulf %1275, %1277 : vector<8x5xf32>
    %1281 = arith.addf %1279, %1280 : vector<8x5xf32>
    %1282 = math.tanh %1281 : vector<8x5xf32>
    %1283 = arith.mulf %1278, %1282 : vector<8x5xf32>
    %1284 = vector.extract_strided_slice %1000 {offsets = [56, 0], sizes = [8, 20], strides = [1, 1]} : vector<64x20xf32> to vector<8x20xf32>
    %1285 = vector.extract_strided_slice %1283 {offsets = [0, 0], sizes = [8, 1], strides = [1, 1]} : vector<8x5xf32> to vector<8x1xf32>
    %1286 = vector.broadcast %1285 : vector<8x1xf32> to vector<8x20xf32>
    %1287 = arith.mulf %1286, %1003 : vector<8x20xf32>
    %1288 = vector.extract_strided_slice %1283 {offsets = [0, 1], sizes = [8, 1], strides = [1, 1]} : vector<8x5xf32> to vector<8x1xf32>
    %1289 = vector.broadcast %1288 : vector<8x1xf32> to vector<8x20xf32>
    %1290 = arith.mulf %1289, %1006 : vector<8x20xf32>
    %1291 = vector.extract_strided_slice %1283 {offsets = [0, 2], sizes = [8, 1], strides = [1, 1]} : vector<8x5xf32> to vector<8x1xf32>
    %1292 = vector.broadcast %1291 : vector<8x1xf32> to vector<8x20xf32>
    %1293 = arith.mulf %1292, %1009 : vector<8x20xf32>
    %1294 = vector.extract_strided_slice %1283 {offsets = [0, 3], sizes = [8, 1], strides = [1, 1]} : vector<8x5xf32> to vector<8x1xf32>
    %1295 = vector.broadcast %1294 : vector<8x1xf32> to vector<8x20xf32>
    %1296 = arith.mulf %1295, %1012 : vector<8x20xf32>
    %1297 = vector.extract_strided_slice %1283 {offsets = [0, 4], sizes = [8, 1], strides = [1, 1]} : vector<8x5xf32> to vector<8x1xf32>
    %1298 = vector.broadcast %1297 : vector<8x1xf32> to vector<8x20xf32>
    %1299 = arith.mulf %1298, %1015 : vector<8x20xf32>
    %1300 = arith.addf %1287, %1290 : vector<8x20xf32>
    %1301 = arith.addf %1293, %1296 : vector<8x20xf32>
    %1302 = arith.addf %1300, %1301 : vector<8x20xf32>
    %1303 = arith.addf %1299, %1284 : vector<8x20xf32>
    %1304 = arith.addf %1302, %1303 : vector<8x20xf32>
    %cst_111 = arith.constant 5.000000e-01 : f32
    %1305 = vector.broadcast %cst_111 : f32 to vector<8x20xf32>
    %1306 = arith.mulf %1305, %1304 : vector<8x20xf32>
    %1307 = math.tanh %1306 : vector<8x20xf32>
    %cst_112 = arith.constant 5.000000e-01 : f32
    %1308 = vector.broadcast %cst_112 : f32 to vector<8x20xf32>
    %1309 = arith.mulf %1308, %1307 : vector<8x20xf32>
    %cst_113 = arith.constant 5.000000e-01 : f32
    %1310 = vector.broadcast %cst_113 : f32 to vector<8x20xf32>
    %1311 = arith.addf %1309, %1310 : vector<8x20xf32>
    %1312 = math.tanh %1304 : vector<8x20xf32>
    %1313 = vector.extract_strided_slice %1311 {offsets = [0, 0], sizes = [8, 5], strides = [1, 1]} : vector<8x20xf32> to vector<8x5xf32>
    %1314 = vector.extract_strided_slice %1311 {offsets = [0, 5], sizes = [8, 5], strides = [1, 1]} : vector<8x20xf32> to vector<8x5xf32>
    %1315 = vector.extract_strided_slice %1312 {offsets = [0, 10], sizes = [8, 5], strides = [1, 1]} : vector<8x20xf32> to vector<8x5xf32>
    %1316 = vector.extract_strided_slice %1311 {offsets = [0, 15], sizes = [8, 5], strides = [1, 1]} : vector<8x20xf32> to vector<8x5xf32>
    %1317 = arith.mulf %1314, %1281 : vector<8x5xf32>
    %1318 = arith.mulf %1313, %1315 : vector<8x5xf32>
    %1319 = arith.addf %1317, %1318 : vector<8x5xf32>
    %1320 = math.tanh %1319 : vector<8x5xf32>
    %1321 = arith.mulf %1316, %1320 : vector<8x5xf32>
    %1322 = tpu.concatenate %1055, %1093, %1131, %1169, %1207, %1245, %1283, %1321 in 0 : vector<8x5xf32>, vector<8x5xf32>, vector<8x5xf32>, vector<8x5xf32>, vector<8x5xf32>, vector<8x5xf32>, vector<8x5xf32>, vector<8x5xf32> -> vector<64x5xf32>
    %cst_114 = arith.constant dense<0.000000e+00> : vector<64x5xf32>
    %1323 = tpu.matmul %1322, %14, %cst_114 {dimension_numbers = #tpu.dot_dimension_numbers<[1], [0], [0], [1], [0, 0, 1, 1], [], []>} : vector<64x5xf32>, vector<5x5xf32>, vector<64x5xf32> -> vector<64x5xf32>
    %1324 = vector.broadcast %15 : vector<1x5xf32> to vector<64x5xf32>
    %1325 = arith.addf %1323, %1324 : vector<64x5xf32>
    %cst_115 = arith.constant 5.000000e-01 : f32
    %1326 = vector.broadcast %cst_115 : f32 to vector<64x5xf32>
    %1327 = arith.mulf %1326, %1325 : vector<64x5xf32>
    %1328 = math.tanh %1327 : vector<64x5xf32>
    %cst_116 = arith.constant 5.000000e-01 : f32
    %1329 = vector.broadcast %cst_116 : f32 to vector<64x5xf32>
    %1330 = arith.mulf %1329, %1328 : vector<64x5xf32>
    %cst_117 = arith.constant 5.000000e-01 : f32
    %1331 = vector.broadcast %cst_117 : f32 to vector<64x5xf32>
    %1332 = arith.addf %1330, %1331 : vector<64x5xf32>
    %c0_118 = arith.constant 0 : index
    %c0_119 = arith.constant 0 : index
    %1333 = vector.load %arg4[%c0_118, %c0_119] : memref<64x5xf32, #tpu.memory_space<vmem>>, vector<64x5xf32>
    tpu.vector_store %arg4[%c0_118, %c0_119], %1332 {strides = array<i32>} : memref<64x5xf32, #tpu.memory_space<vmem>>, vector<64x5xf32>,
    return
  }
  func.func @transform_0(%arg0: i32) -> (i32, i32) {
    %c0_i32 = arith.constant 0 : i32
    %c0_i32_0 = arith.constant 0 : i32
    %c0_i32_1 = arith.constant 0 : i32
    return %c0_i32, %c0_i32_0 : i32, i32
  }
  func.func @transform_1(%arg0: i32) -> (i32, i32) {
    %c0_i32 = arith.constant 0 : i32
    %c0_i32_0 = arith.constant 0 : i32
    %c0_i32_1 = arith.constant 0 : i32
    return %c0_i32, %c0_i32_0 : i32, i32
  }
  func.func @transform_2(%arg0: i32) -> (i32, i32) {
    %c0_i32 = arith.constant 0 : i32
    %c0_i32_0 = arith.constant 0 : i32
    %c0_i32_1 = arith.constant 0 : i32
    return %c0_i32, %c0_i32_0 : i32, i32
  }
  func.func @transform_3(%arg0: i32) -> (i32, i32) {
    %c0_i32 = arith.constant 0 : i32
    %c0_i32_0 = arith.constant 0 : i32
    %c0_i32_1 = arith.constant 0 : i32
    return %c0_i32, %c0_i32_0 : i32, i32
  }
}

</mosaic_0001>

<llo_original>
// kernel: tpu_custom_call.1
$region0: #{tpu_custom_call.1}
  #allocation0 [shape = 'u32[]', space=smem, size = 0x4, offset = 0x4, fixed_abs, tag = 'smem constant byte address 0x4 - core index']
  #allocation1 [shape = 'u32[72,128]{1,0:T(1,128)}', space=vmem, size = 0x9000, scoped, tag = 'internal scratch']
  %s0 = inlined_call_operand.vmem [shape: f32[64,225], index: 0, kind: input, shape index: {}]
  %s1 = inlined_call_operand.vmem [shape: f32[225,20], index: 1, kind: input, shape index: {}]
  %s2 = inlined_call_operand.vmem [shape: f32[120,20], index: 2, kind: input, shape index: {}]
  %s3 = inlined_call_operand.vmem [shape: f32[64,5], index: 3, kind: output, shape index: {}]
  %s4 = sld [smem:[#allocation0]]
  $region22: #{tpu_custom_call.1} parent=0
    _
  %s6 = ssub.s32 1, %s4
  %s7 = scalar_select 0, %s6, %s4
  // Predicated region
  $region2: #{tpu_custom_call.1} parent=0 // pred_check
    _
  $region3: #{tpu_custom_call.1} parent=0 // pred_check_branch
    %9 = sbr.rel (0) target = $region5
  $region4: #{tpu_custom_call.1} parent=0 // pred_region
    _
  $region5: #{tpu_custom_call.1} parent=0 // pred_fallthru
    _
  // Predicated region
  $region6: #{tpu_custom_call.1} parent=0 // pred_check
    _
  $region7: #{tpu_custom_call.1} parent=0 // pred_check_branch
    %11 = sbr.rel (0) target = $region9
  $region8: #{tpu_custom_call.1} parent=0 // pred_region
    _
  $region9: #{tpu_custom_call.1} parent=0 // pred_fallthru
    _
  // Predicated region
  $region10: #{tpu_custom_call.1} parent=0 // pred_check
    _
  $region11: #{tpu_custom_call.1} parent=0 // pred_check_branch
    %13 = sbr.rel (0) target = $region13
  $region12: #{tpu_custom_call.1} parent=0 // pred_region
    _
  $region13: #{tpu_custom_call.1} parent=0 // pred_fallthru
    _
  %v14 = vld [vmem:[%s2] sm:$0xff]
  %v15 = vld [vmem:[%s2 + $0x8] sm:$0xff]
  %v16 = vld [vmem:[%s2 + $0x10] sm:$0xff]
  %v17 = vld [vmem:[%s2 + $0x18] sm:$0xff]
  %v18 = vld [vmem:[%s2 + $0x20] sm:$0xff]
  %v19 = vld [vmem:[%s2 + $0x28] sm:$0xff]
  %v20 = vld [vmem:[%s2 + $0x30] sm:$0xff]
  %v21 = vld [vmem:[%s2 + $0x38] sm:$0xff]
  %v22 = vld [vmem:[%s2 + $0x40] sm:$0xff]
  %v23 = vld [vmem:[%s2 + $0x48] sm:$0xff]
  %v24 = vld [vmem:[%s2 + $0x50] sm:$0xff]
  %v25 = vld [vmem:[%s2 + $0x58] sm:$0xff]
  %v26 = vld [vmem:[%s2 + $0x60] sm:$0xff]
  %v27 = vld [vmem:[%s2 + $0x68] sm:$0xff]
  %v28 = vld [vmem:[%s2 + $0x70] sm:$0xff]
  %v29 = vld [vmem:[%s0] sm:$0xff]
  %v30 = vld [vmem:[%s0 + $0x8] sm:$0xff]
  %v31 = vld [vmem:[%s0 + $0x10] sm:$0xff]
  %v32 = vld [vmem:[%s0 + $0x18] sm:$0xff]
  %v33 = vld [vmem:[%s0 + $0x20] sm:$0xff]
  %v34 = vld [vmem:[%s0 + $0x28] sm:$0xff]
  %v35 = vld [vmem:[%s0 + $0x30] sm:$0xff]
  %v36 = vld [vmem:[%s0 + $0x38] sm:$0xff]
  %v37 = vld [vmem:[%s0 + $0x40] sm:$0xff]
  %v38 = vld [vmem:[%s0 + $0x48] sm:$0xff]
  %v39 = vld [vmem:[%s0 + $0x50] sm:$0xff]
  %v40 = vld [vmem:[%s0 + $0x58] sm:$0xff]
  %v41 = vld [vmem:[%s0 + $0x60] sm:$0xff]
  %v42 = vld [vmem:[%s0 + $0x68] sm:$0xff]
  %v43 = vld [vmem:[%s0 + $0x70] sm:$0xff]
  %v44 = vld [vmem:[%s0 + $0x78] sm:$0xff]
  %v45 = vld [vmem:[%s1] sm:$0xff]
  %v46 = vld [vmem:[%s1 + $0x8] sm:$0xff]
  %v47 = vld [vmem:[%s1 + $0x10] sm:$0xff]
  %v48 = vld [vmem:[%s1 + $0x18] sm:$0xff]
  %v49 = vld [vmem:[%s1 + $0x20] sm:$0xff]
  %v50 = vld [vmem:[%s1 + $0x28] sm:$0xff]
  %v51 = vld [vmem:[%s1 + $0x30] sm:$0xff]
  %v52 = vld [vmem:[%s1 + $0x38] sm:$0xff]
  %v53 = vld [vmem:[%s1 + $0x40] sm:$0xff]
  %v54 = vld [vmem:[%s1 + $0x48] sm:$0xff]
  %v55 = vld [vmem:[%s1 + $0x50] sm:$0xff]
  %v56 = vld [vmem:[%s1 + $0x58] sm:$0xff]
  %v57 = vld [vmem:[%s1 + $0x60] sm:$0xff]
  %v58 = vld [vmem:[%s1 + $0x68] sm:$0xff]
  %v59 = vld [vmem:[%s1 + $0x70] sm:$0xff]
  %v60 = vld [vmem:[%s1 + $0x78] sm:$0xff]
  %v61 = vld [vmem:[%s1 + $0x80] sm:$0xff]
  %v62 = vld [vmem:[%s1 + $0x88] sm:$0xff]
  %v63 = vld [vmem:[%s1 + $0x90] sm:$0xff]
  %v64 = vld [vmem:[%s1 + $0x98] sm:$0xff]
  %v65 = vld [vmem:[%s1 + $0xa0] sm:$0xff]
  %v66 = vld [vmem:[%s1 + $0xa8] sm:$0xff]
  %v67 = vld [vmem:[%s1 + $0xb0] sm:$0xff]
  %v68 = vld [vmem:[%s1 + $0xb8] sm:$0xff]
  %v69 = vld [vmem:[%s1 + $0xc0] sm:$0xff]
  %v70 = vld [vmem:[%s1 + $0xc8] sm:$0xff]
  %v71 = vld [vmem:[%s1 + $0xd0] sm:$0xff]
  %v72 = vld [vmem:[%s1 + $0xd8] sm:$0xff]
  %v73 = vld [vmem:[%s1 + $0xe0] sm:$0x1]
  %v74 = vperm.slane %v15, 0
  %vm75 = vcmask 793600
  %v77 = vsel %vm75, %v30, 0
  %v80 = vsel %vm75, %v32, 0
  %v83 = vsel %vm75, %v34, 0
  %v86 = vsel %vm75, %v36, 0
  %v89 = vsel %vm75, %v38, 0
  %v92 = vsel %vm75, %v40, 0
  %v95 = vsel %vm75, %v42, 0
  %v98 = vsel %vm75, %v44, 0
  %vm100 = vcmask 1040384
  %v102 = vsel %vm100, %v73, 0
  %104 = vmatpush.msra.mxu0 %v60
  %105 = vmatpush.msra.mxu0 %v59
  %106 = vmatpush.msra.mxu0 %v58
  %107 = vmatpush.msra.mxu0 %v57
  %108 = vmatpush.msra.mxu0 %v56
  %109 = vmatpush.msra.mxu0 %v55
  %110 = vmatpush.msra.mxu0 %v54
  %111 = vmatpush.msra.mxu0 %v53
  %112 = vmatpush.msra.mxu0 %v52
  %113 = vmatpush.msra.mxu0 %v51
  %114 = vmatpush.msra.mxu0 %v50
  %115 = vmatpush.msra.mxu0 %v49
  %116 = vmatpush.msra.mxu0 %v48
  %117 = vmatpush.msra.mxu0 %v47
  %118 = vmatpush.msra.mxu0 %v46
  %119 = vmatpush.msra.mxu0 %v45
  %120 = vmatmul.f32.gmra.mxu0 %v29
  %v121 = vpop.f32.mrf.mxu0
  %v122 = vadd.f32 %v74, %v121
  %123 = vmatmul.f32.gmra.mxu0 %v31
  %v124 = vpop.f32.mrf.mxu0
  %v125 = vadd.f32 %v74, %v124
  %126 = vmatmul.f32.gmra.mxu0 %v33
  %v127 = vpop.f32.mrf.mxu0
  %v128 = vadd.f32 %v74, %v127
  %129 = vmatmul.f32.gmra.mxu0 %v35
  %v130 = vpop.f32.mrf.mxu0
  %v131 = vadd.f32 %v74, %v130
  %132 = vmatmul.f32.gmra.mxu0 %v37
  %v133 = vpop.f32.mrf.mxu0
  %v134 = vadd.f32 %v74, %v133
  %135 = vmatmul.f32.gmra.mxu0 %v39
  %v136 = vpop.f32.mrf.mxu0
  %v137 = vadd.f32 %v74, %v136
  %138 = vmatmul.f32.gmra.mxu0 %v41
  %v139 = vpop.f32.mrf.mxu0
  %v140 = vadd.f32 %v74, %v139
  %141 = vmatmul.f32.gmra.mxu0 %v43
  %v142 = vpop.f32.mrf.mxu0
  %v143 = vadd.f32 %v74, %v142
  %144 = vdwg.mxu0
  %145 = vmatpush.msra.mxu0 0.0
  %146 = vmatpush.msra.mxu0 0.0
  %147 = vmatpush.msra.mxu0 0.0
  %148 = vmatpush.msra.mxu0 %v102
  %149 = vmatpush.msra.mxu0 %v72
  %150 = vmatpush.msra.mxu0 %v71
  %151 = vmatpush.msra.mxu0 %v70
  %152 = vmatpush.msra.mxu0 %v69
  %153 = vmatpush.msra.mxu0 %v68
  %154 = vmatpush.msra.mxu0 %v67
  %155 = vmatpush.msra.mxu0 %v66
  %156 = vmatpush.msra.mxu0 %v65
  %157 = vmatpush.msra.mxu0 %v64
  %158 = vmatpush.msra.mxu0 %v63
  %159 = vmatpush.msra.mxu0 %v62
  %160 = vmatpush.msra.mxu0 %v61
  %161 = vmatmul.f32.gmra.mxu0 %v77
  %v162 = vpop.f32.mrf.mxu0
  %v163 = vadd.f32 %v122, %v162
  %164 = vmatmul.f32.gmra.mxu0 %v80
  %v165 = vpop.f32.mrf.mxu0
  %v166 = vadd.f32 %v125, %v165
  %167 = vmatmul.f32.gmra.mxu0 %v83
  %v168 = vpop.f32.mrf.mxu0
  %v169 = vadd.f32 %v128, %v168
  %170 = vmatmul.f32.gmra.mxu0 %v86
  %v171 = vpop.f32.mrf.mxu0
  %v172 = vadd.f32 %v131, %v171
  %173 = vmatmul.f32.gmra.mxu0 %v89
  %v174 = vpop.f32.mrf.mxu0
  %v175 = vadd.f32 %v134, %v174
  %176 = vmatmul.f32.gmra.mxu0 %v92
  %v177 = vpop.f32.mrf.mxu0
  %v178 = vadd.f32 %v137, %v177
  %179 = vmatmul.f32.gmra.mxu0 %v95
  %v180 = vpop.f32.mrf.mxu0
  %v181 = vadd.f32 %v140, %v180
  %182 = vmatmul.f32.gmra.mxu0 %v98
  %v183 = vpop.f32.mrf.mxu0
  %v184 = vadd.f32 %v143, %v183
  %185 = vdwg.mxu0
  %v186 = vperm.slane %v14, 0
  %v187 = vperm.slane %v14, 1
  %v188 = vperm.slane %v14, 2
  %v189 = vperm.slane %v14, 3
  %v190 = vperm.slane %v14, 4
  %v191 = vmul.f32 %v186, 0.0
  %v192 = vmul.f32 %v187, 0.0
  %v193 = vmul.f32 %v188, 0.0
  %v194 = vmul.f32 %v189, 0.0
  %v195 = vmul.f32 %v190, 0.0
  %v196 = vadd.f32 %v191, %v192
  %v197 = vadd.f32 %v193, %v194
  %v198 = vadd.f32 %v196, %v197
  %v199 = vadd.f32 %v195, %v163
  %v200 = vadd.f32 %v198, %v199
  %v201 = vmul.f32 %v200, 0.5
  %v202 = vtanh.pop %v201
  %v203 = vmul.f32 %v202, 0.5
  %v204 = vadd.f32 %v203, 0.5
  %v205 = vtanh.pop %v200
  %v206 = vmul.f32 %v204, 0.0
  %208 = vrot.lane.b32.xlu0 %v205, 118
  %v209 = vpop.permute.xlu0 %208
  %v211 = vmul.f32 %v204, %v209
  %213 = vrot.lane.b32.xlu0 %v211, 5
  %v214 = vpop.permute.xlu0 %213
  %v216 = vadd.f32 %v206, %v214
  %v217 = vtanh.pop %v216
  %219 = vrot.lane.b32.xlu0 %v217, 10
  %v220 = vpop.permute.xlu0 %219
  %v222 = vmul.f32 %v204, %v220
  %224 = vset.pattern.permute.xlu0 15
  %225 = vperm.xlu0 %224, %v222
  %v226 = vpop.permute.xlu0 %225
  %v228 = vmul.f32 %v226, %v186
  %229 = vset.pattern.permute.xlu0 16
  %230 = vperm.xlu0 %229, %v222
  %v231 = vpop.permute.xlu0 %230
  %v233 = vmul.f32 %v231, %v187
  %234 = vset.pattern.permute.xlu0 17
  %235 = vperm.xlu0 %234, %v222
  %v236 = vpop.permute.xlu0 %235
  %v238 = vmul.f32 %v236, %v188
  %239 = vset.pattern.permute.xlu0 18
  %240 = vperm.xlu0 %239, %v222
  %v241 = vpop.permute.xlu0 %240
  %v243 = vmul.f32 %v241, %v189
  %244 = vset.pattern.permute.xlu0 19
  %245 = vperm.xlu0 %244, %v222
  %v246 = vpop.permute.xlu0 %245
  %v248 = vmul.f32 %v246, %v190
  %v249 = vadd.f32 %v228, %v233
  %v250 = vadd.f32 %v238, %v243
  %v251 = vadd.f32 %v249, %v250
  %v252 = vadd.f32 %v248, %v166
  %v253 = vadd.f32 %v251, %v252
  %v254 = vmul.f32 %v253, 0.5
  %v255 = vtanh.pop %v254
  %v256 = vmul.f32 %v255, 0.5
  %v257 = vadd.f32 %v256, 0.5
  %v258 = vtanh.pop %v253
  %v259 = vmul.f32 %v257, %v216
  %261 = vrot.lane.b32.xlu0 %v258, 118
  %v262 = vpop.permute.xlu0 %261
  %v264 = vmul.f32 %v257, %v262
  %266 = vrot.lane.b32.xlu0 %v264, 5
  %v267 = vpop.permute.xlu0 %266
  %v269 = vadd.f32 %v259, %v267
  %v270 = vtanh.pop %v269
  %272 = vrot.lane.b32.xlu0 %v270, 10
  %v273 = vpop.permute.xlu0 %272
  %v275 = vmul.f32 %v257, %v273
  %277 = vset.pattern.permute.xlu0 15
  %278 = vperm.xlu0 %277, %v275
  %v279 = vpop.permute.xlu0 %278
  %v281 = vmul.f32 %v279, %v186
  %282 = vset.pattern.permute.xlu0 16
  %283 = vperm.xlu0 %282, %v275
  %v284 = vpop.permute.xlu0 %283
  %v286 = vmul.f32 %v284, %v187
  %287 = vset.pattern.permute.xlu0 17
  %288 = vperm.xlu0 %287, %v275
  %v289 = vpop.permute.xlu0 %288
  %v291 = vmul.f32 %v289, %v188
  %292 = vset.pattern.permute.xlu0 18
  %293 = vperm.xlu0 %292, %v275
  %v294 = vpop.permute.xlu0 %293
  %v296 = vmul.f32 %v294, %v189
  %297 = vset.pattern.permute.xlu0 19
  %298 = vperm.xlu0 %297, %v275
  %v299 = vpop.permute.xlu0 %298
  %v301 = vmul.f32 %v299, %v190
  %v302 = vadd.f32 %v281, %v286
  %v303 = vadd.f32 %v291, %v296
  %v304 = vadd.f32 %v302, %v303
  %v305 = vadd.f32 %v301, %v169
  %v306 = vadd.f32 %v304, %v305
  %v307 = vmul.f32 %v306, 0.5
  %v308 = vtanh.pop %v307
  %v309 = vmul.f32 %v308, 0.5
  %v310 = vadd.f32 %v309, 0.5
  %v311 = vtanh.pop %v306
  %v312 = vmul.f32 %v310, %v269
  %314 = vrot.lane.b32.xlu0 %v311, 118
  %v315 = vpop.permute.xlu0 %314
  %v317 = vmul.f32 %v310, %v315
  %319 = vrot.lane.b32.xlu0 %v317, 5
  %v320 = vpop.permute.xlu0 %319
  %v322 = vadd.f32 %v312, %v320
  %v323 = vtanh.pop %v322
  %325 = vrot.lane.b32.xlu0 %v323, 10
  %v326 = vpop.permute.xlu0 %325
  %v328 = vmul.f32 %v310, %v326
  %330 = vset.pattern.permute.xlu0 15
  %331 = vperm.xlu0 %330, %v328
  %v332 = vpop.permute.xlu0 %331
  %v334 = vmul.f32 %v332, %v186
  %335 = vset.pattern.permute.xlu0 16
  %336 = vperm.xlu0 %335, %v328
  %v337 = vpop.permute.xlu0 %336
  %v339 = vmul.f32 %v337, %v187
  %340 = vset.pattern.permute.xlu0 17
  %341 = vperm.xlu0 %340, %v328
  %v342 = vpop.permute.xlu0 %341
  %v344 = vmul.f32 %v342, %v188
  %345 = vset.pattern.permute.xlu0 18
  %346 = vperm.xlu0 %345, %v328
  %v347 = vpop.permute.xlu0 %346
  %v349 = vmul.f32 %v347, %v189
  %350 = vset.pattern.permute.xlu0 19
  %351 = vperm.xlu0 %350, %v328
  %v352 = vpop.permute.xlu0 %351
  %v354 = vmul.f32 %v352, %v190
  %v355 = vadd.f32 %v334, %v339
  %v356 = vadd.f32 %v344, %v349
  %v357 = vadd.f32 %v355, %v356
  %v358 = vadd.f32 %v354, %v172
  %v359 = vadd.f32 %v357, %v358
  %v360 = vmul.f32 %v359, 0.5
  %v361 = vtanh.pop %v360
  %v362 = vmul.f32 %v361, 0.5
  %v363 = vadd.f32 %v362, 0.5
  %v364 = vtanh.pop %v359
  %v365 = vmul.f32 %v363, %v322
  %367 = vrot.lane.b32.xlu0 %v364, 118
  %v368 = vpop.permute.xlu0 %367
  %v370 = vmul.f32 %v363, %v368
  %372 = vrot.lane.b32.xlu0 %v370, 5
  %v373 = vpop.permute.xlu0 %372
  %v375 = vadd.f32 %v365, %v373
  %v376 = vtanh.pop %v375
  %378 = vrot.lane.b32.xlu0 %v376, 10
  %v379 = vpop.permute.xlu0 %378
  %v381 = vmul.f32 %v363, %v379
  %383 = vset.pattern.permute.xlu0 15
  %384 = vperm.xlu0 %383, %v381
  %v385 = vpop.permute.xlu0 %384
  %v387 = vmul.f32 %v385, %v186
  %388 = vset.pattern.permute.xlu0 16
  %389 = vperm.xlu0 %388, %v381
  %v390 = vpop.permute.xlu0 %389
  %v392 = vmul.f32 %v390, %v187
  %393 = vset.pattern.permute.xlu0 17
  %394 = vperm.xlu0 %393, %v381
  %v395 = vpop.permute.xlu0 %394
  %v397 = vmul.f32 %v395, %v188
  %398 = vset.pattern.permute.xlu0 18
  %399 = vperm.xlu0 %398, %v381
  %v400 = vpop.permute.xlu0 %399
  %v402 = vmul.f32 %v400, %v189
  %403 = vset.pattern.permute.xlu0 19
  %404 = vperm.xlu0 %403, %v381
  %v405 = vpop.permute.xlu0 %404
  %v407 = vmul.f32 %v405, %v190
  %v408 = vadd.f32 %v387, %v392
  %v409 = vadd.f32 %v397, %v402
  %v410 = vadd.f32 %v408, %v409
  %v411 = vadd.f32 %v407, %v175
  %v412 = vadd.f32 %v410, %v411
  %v413 = vmul.f32 %v412, 0.5
  %v414 = vtanh.pop %v413
  %v415 = vmul.f32 %v414, 0.5
  %v416 = vadd.f32 %v415, 0.5
  %v417 = vtanh.pop %v412
  %v418 = vmul.f32 %v416, %v375
  %420 = vrot.lane.b32.xlu0 %v417, 118
  %v421 = vpop.permute.xlu0 %420
  %v423 = vmul.f32 %v416, %v421
  %425 = vrot.lane.b32.xlu0 %v423, 5
  %v426 = vpop.permute.xlu0 %425
  %v428 = vadd.f32 %v418, %v426
  %v429 = vtanh.pop %v428
  %431 = vrot.lane.b32.xlu0 %v429, 10
  %v432 = vpop.permute.xlu0 %431
  %v434 = vmul.f32 %v416, %v432
  %436 = vset.pattern.permute.xlu0 15
  %437 = vperm.xlu0 %436, %v434
  %v438 = vpop.permute.xlu0 %437
  %v440 = vmul.f32 %v438, %v186
  %441 = vset.pattern.permute.xlu0 16
  %442 = vperm.xlu0 %441, %v434
  %v443 = vpop.permute.xlu0 %442
  %v445 = vmul.f32 %v443, %v187
  %446 = vset.pattern.permute.xlu0 17
  %447 = vperm.xlu0 %446, %v434
  %v448 = vpop.permute.xlu0 %447
  %v450 = vmul.f32 %v448, %v188
  %451 = vset.pattern.permute.xlu0 18
  %452 = vperm.xlu0 %451, %v434
  %v453 = vpop.permute.xlu0 %452
  %v455 = vmul.f32 %v453, %v189
  %456 = vset.pattern.permute.xlu0 19
  %457 = vperm.xlu0 %456, %v434
  %v458 = vpop.permute.xlu0 %457
  %v460 = vmul.f32 %v458, %v190
  %v461 = vadd.f32 %v440, %v445
  %v462 = vadd.f32 %v450, %v455
  %v463 = vadd.f32 %v461, %v462
  %v464 = vadd.f32 %v460, %v178
  %v465 = vadd.f32 %v463, %v464
  %v466 = vmul.f32 %v465, 0.5
  %v467 = vtanh.pop %v466
  %v468 = vmul.f32 %v467, 0.5
  %v469 = vadd.f32 %v468, 0.5
  %v470 = vtanh.pop %v465
  %v471 = vmul.f32 %v469, %v428
  %473 = vrot.lane.b32.xlu0 %v470, 118
  %v474 = vpop.permute.xlu0 %473
  %v476 = vmul.f32 %v469, %v474
  %478 = vrot.lane.b32.xlu0 %v476, 5
  %v479 = vpop.permute.xlu0 %478
  %v481 = vadd.f32 %v471, %v479
  %v482 = vtanh.pop %v481
  %484 = vrot.lane.b32.xlu0 %v482, 10
  %v485 = vpop.permute.xlu0 %484
  %v487 = vmul.f32 %v469, %v485
  %489 = vset.pattern.permute.xlu0 15
  %490 = vperm.xlu0 %489, %v487
  %v491 = vpop.permute.xlu0 %490
  %v493 = vmul.f32 %v491, %v186
  %494 = vset.pattern.permute.xlu0 16
  %495 = vperm.xlu0 %494, %v487
  %v496 = vpop.permute.xlu0 %495
  %v498 = vmul.f32 %v496, %v187
  %499 = vset.pattern.permute.xlu0 17
  %500 = vperm.xlu0 %499, %v487
  %v501 = vpop.permute.xlu0 %500
  %v503 = vmul.f32 %v501, %v188
  %504 = vset.pattern.permute.xlu0 18
  %505 = vperm.xlu0 %504, %v487
  %v506 = vpop.permute.xlu0 %505
  %v508 = vmul.f32 %v506, %v189
  %509 = vset.pattern.permute.xlu0 19
  %510 = vperm.xlu0 %509, %v487
  %v511 = vpop.permute.xlu0 %510
  %v513 = vmul.f32 %v511, %v190
  %v514 = vadd.f32 %v493, %v498
  %v515 = vadd.f32 %v503, %v508
  %v516 = vadd.f32 %v514, %v515
  %v517 = vadd.f32 %v513, %v181
  %v518 = vadd.f32 %v516, %v517
  %v519 = vmul.f32 %v518, 0.5
  %v520 = vtanh.pop %v519
  %v521 = vmul.f32 %v520, 0.5
  %v522 = vadd.f32 %v521, 0.5
  %v523 = vtanh.pop %v518
  %v524 = vmul.f32 %v522, %v481
  %526 = vrot.lane.b32.xlu0 %v523, 118
  %v527 = vpop.permute.xlu0 %526
  %v529 = vmul.f32 %v522, %v527
  %531 = vrot.lane.b32.xlu0 %v529, 5
  %v532 = vpop.permute.xlu0 %531
  %v534 = vadd.f32 %v524, %v532
  %v535 = vtanh.pop %v534
  %537 = vrot.lane.b32.xlu0 %v535, 10
  %v538 = vpop.permute.xlu0 %537
  %v540 = vmul.f32 %v522, %v538
  %542 = vset.pattern.permute.xlu0 15
  %543 = vperm.xlu0 %542, %v540
  %v544 = vpop.permute.xlu0 %543
  %v546 = vmul.f32 %v544, %v186
  %547 = vset.pattern.permute.xlu0 16
  %548 = vperm.xlu0 %547, %v540
  %v549 = vpop.permute.xlu0 %548
  %v551 = vmul.f32 %v549, %v187
  %552 = vset.pattern.permute.xlu0 17
  %553 = vperm.xlu0 %552, %v540
  %v554 = vpop.permute.xlu0 %553
  %v556 = vmul.f32 %v554, %v188
  %557 = vset.pattern.permute.xlu0 18
  %558 = vperm.xlu0 %557, %v540
  %v559 = vpop.permute.xlu0 %558
  %v561 = vmul.f32 %v559, %v189
  %562 = vset.pattern.permute.xlu0 19
  %563 = vperm.xlu0 %562, %v540
  %v564 = vpop.permute.xlu0 %563
  %v566 = vmul.f32 %v564, %v190
  %v567 = vadd.f32 %v546, %v551
  %v568 = vadd.f32 %v556, %v561
  %v569 = vadd.f32 %v567, %v568
  %v570 = vadd.f32 %v566, %v184
  %v571 = vadd.f32 %v569, %v570
  %v572 = vmul.f32 %v571, 0.5
  %v573 = vtanh.pop %v572
  %v574 = vmul.f32 %v573, 0.5
  %v575 = vadd.f32 %v574, 0.5
  %v576 = vtanh.pop %v571
  %v577 = vmul.f32 %v575, %v534
  %579 = vrot.lane.b32.xlu0 %v576, 118
  %v580 = vpop.permute.xlu0 %579
  %v582 = vmul.f32 %v575, %v580
  %584 = vrot.lane.b32.xlu0 %v582, 5
  %v585 = vpop.permute.xlu0 %584
  %v587 = vadd.f32 %v577, %v585
  %v588 = vtanh.pop %v587
  %590 = vrot.lane.b32.xlu0 %v588, 10
  %v591 = vpop.permute.xlu0 %590
  %v593 = vmul.f32 %v575, %v591
  %v594 = vperm.slane %v18, 0
  %596 = vrot.lane.b32.xlu0 %v222, 113
  %v597 = vpop.permute.xlu0 %596
  %598 = vrot.lane.b32.xlu0 %v275, 113
  %v599 = vpop.permute.xlu0 %598
  %600 = vrot.lane.b32.xlu0 %v328, 113
  %v601 = vpop.permute.xlu0 %600
  %602 = vrot.lane.b32.xlu0 %v381, 113
  %v603 = vpop.permute.xlu0 %602
  %604 = vrot.lane.b32.xlu0 %v434, 113
  %v605 = vpop.permute.xlu0 %604
  %606 = vrot.lane.b32.xlu0 %v487, 113
  %v607 = vpop.permute.xlu0 %606
  %608 = vrot.lane.b32.xlu0 %v540, 113
  %v609 = vpop.permute.xlu0 %608
  %610 = vrot.lane.b32.xlu0 %v593, 113
  %v611 = vpop.permute.xlu0 %610
  %vm612 = vcmask 39936
  %v613 = vsel %vm612, %v597, 0
  %v615 = vsel %vm612, %v599, 0
  %v617 = vsel %vm612, %v601, 0
  %v619 = vsel %vm612, %v603, 0
  %v621 = vsel %vm612, %v605, 0
  %v623 = vsel %vm612, %v607, 0
  %v625 = vsel %vm612, %v609, 0
  %v627 = vsel %vm612, %v611, 0
  %vm629 = vcmask 1044480
  %v631 = vsel %vm629, %v16, 0
  %633 = vmatpush.msra.mxu0 0.0
  %634 = vmatpush.msra.mxu0 0.0
  %635 = vmatpush.msra.mxu0 0.0
  %636 = vmatpush.msra.mxu0 0.0
  %637 = vmatpush.msra.mxu0 0.0
  %638 = vmatpush.msra.mxu0 0.0
  %639 = vmatpush.msra.mxu0 0.0
  %640 = vmatpush.msra.mxu0 0.0
  %641 = vmatpush.msra.mxu0 0.0
  %642 = vmatpush.msra.mxu0 0.0
  %643 = vmatpush.msra.mxu0 0.0
  %644 = vmatpush.msra.mxu0 0.0
  %645 = vmatpush.msra.mxu0 0.0
  %646 = vmatpush.msra.mxu0 0.0
  %647 = vmatpush.msra.mxu0 0.0
  %648 = vmatpush.msra.mxu0 %v631
  %649 = vmatmul.f32.gmra.mxu0 %v613
  %v650 = vpop.f32.mrf.mxu0
  %v651 = vadd.f32 %v594, %v650
  %652 = vmatmul.f32.gmra.mxu0 %v615
  %v653 = vpop.f32.mrf.mxu0
  %v654 = vadd.f32 %v594, %v653
  %655 = vmatmul.f32.gmra.mxu0 %v617
  %v656 = vpop.f32.mrf.mxu0
  %v657 = vadd.f32 %v594, %v656
  %658 = vmatmul.f32.gmra.mxu0 %v619
  %v659 = vpop.f32.mrf.mxu0
  %v660 = vadd.f32 %v594, %v659
  %661 = vmatmul.f32.gmra.mxu0 %v621
  %v662 = vpop.f32.mrf.mxu0
  %v663 = vadd.f32 %v594, %v662
  %664 = vmatmul.f32.gmra.mxu0 %v623
  %v665 = vpop.f32.mrf.mxu0
  %v666 = vadd.f32 %v594, %v665
  %667 = vmatmul.f32.gmra.mxu0 %v625
  %v668 = vpop.f32.mrf.mxu0
  %v669 = vadd.f32 %v594, %v668
  %670 = vmatmul.f32.gmra.mxu0 %v627
  %v671 = vpop.f32.mrf.mxu0
  %v672 = vadd.f32 %v594, %v671
  %673 = vdwg.mxu0
  %v674 = vperm.slane %v17, 0
  %v675 = vperm.slane %v17, 1
  %v676 = vperm.slane %v17, 2
  %v677 = vperm.slane %v17, 3
  %v678 = vperm.slane %v17, 4
  %v679 = vmul.f32 %v674, 0.0
  %v680 = vmul.f32 %v675, 0.0
  %v681 = vmul.f32 %v676, 0.0
  %v682 = vmul.f32 %v677, 0.0
  %v683 = vmul.f32 %v678, 0.0
  %v684 = vadd.f32 %v679, %v680
  %v685 = vadd.f32 %v681, %v682
  %v686 = vadd.f32 %v684, %v685
  %v687 = vadd.f32 %v683, %v651
  %v688 = vadd.f32 %v686, %v687
  %v689 = vmul.f32 %v688, 0.5
  %v690 = vtanh.pop %v689
  %v691 = vmul.f32 %v690, 0.5
  %v692 = vadd.f32 %v691, 0.5
  %v693 = vtanh.pop %v688
  %v694 = vmul.f32 %v692, 0.0
  %696 = vrot.lane.b32.xlu0 %v693, 118
  %v697 = vpop.permute.xlu0 %696
  %v699 = vmul.f32 %v692, %v697
  %701 = vrot.lane.b32.xlu0 %v699, 5
  %v702 = vpop.permute.xlu0 %701
  %v704 = vadd.f32 %v694, %v702
  %v705 = vtanh.pop %v704
  %707 = vrot.lane.b32.xlu0 %v705, 10
  %v708 = vpop.permute.xlu0 %707
  %v710 = vmul.f32 %v692, %v708
  %712 = vset.pattern.permute.xlu0 15
  %713 = vperm.xlu0 %712, %v710
  %v714 = vpop.permute.xlu0 %713
  %v716 = vmul.f32 %v714, %v674
  %717 = vset.pattern.permute.xlu0 16
  %718 = vperm.xlu0 %717, %v710
  %v719 = vpop.permute.xlu0 %718
  %v721 = vmul.f32 %v719, %v675
  %722 = vset.pattern.permute.xlu0 17
  %723 = vperm.xlu0 %722, %v710
  %v724 = vpop.permute.xlu0 %723
  %v726 = vmul.f32 %v724, %v676
  %727 = vset.pattern.permute.xlu0 18
  %728 = vperm.xlu0 %727, %v710
  %v729 = vpop.permute.xlu0 %728
  %v731 = vmul.f32 %v729, %v677
  %732 = vset.pattern.permute.xlu0 19
  %733 = vperm.xlu0 %732, %v710
  %v734 = vpop.permute.xlu0 %733
  %v736 = vmul.f32 %v734, %v678
  %v737 = vadd.f32 %v716, %v721
  %v738 = vadd.f32 %v726, %v731
  %v739 = vadd.f32 %v737, %v738
  %v740 = vadd.f32 %v736, %v654
  %v741 = vadd.f32 %v739, %v740
  %v742 = vmul.f32 %v741, 0.5
  %v743 = vtanh.pop %v742
  %v744 = vmul.f32 %v743, 0.5
  %v745 = vadd.f32 %v744, 0.5
  %v746 = vtanh.pop %v741
  %v747 = vmul.f32 %v745, %v704
  %749 = vrot.lane.b32.xlu0 %v746, 118
  %v750 = vpop.permute.xlu0 %749
  %v752 = vmul.f32 %v745, %v750
  %754 = vrot.lane.b32.xlu0 %v752, 5
  %v755 = vpop.permute.xlu0 %754
  %v757 = vadd.f32 %v747, %v755
  %v758 = vtanh.pop %v757
  %760 = vrot.lane.b32.xlu0 %v758, 10
  %v761 = vpop.permute.xlu0 %760
  %v763 = vmul.f32 %v745, %v761
  %765 = vset.pattern.permute.xlu0 15
  %766 = vperm.xlu0 %765, %v763
  %v767 = vpop.permute.xlu0 %766
  %v769 = vmul.f32 %v767, %v674
  %770 = vset.pattern.permute.xlu0 16
  %771 = vperm.xlu0 %770, %v763
  %v772 = vpop.permute.xlu0 %771
  %v774 = vmul.f32 %v772, %v675
  %775 = vset.pattern.permute.xlu0 17
  %776 = vperm.xlu0 %775, %v763
  %v777 = vpop.permute.xlu0 %776
  %v779 = vmul.f32 %v777, %v676
  %780 = vset.pattern.permute.xlu0 18
  %781 = vperm.xlu0 %780, %v763
  %v782 = vpop.permute.xlu0 %781
  %v784 = vmul.f32 %v782, %v677
  %785 = vset.pattern.permute.xlu0 19
  %786 = vperm.xlu0 %785, %v763
  %v787 = vpop.permute.xlu0 %786
  %v789 = vmul.f32 %v787, %v678
  %v790 = vadd.f32 %v769, %v774
  %v791 = vadd.f32 %v779, %v784
  %v792 = vadd.f32 %v790, %v791
  %v793 = vadd.f32 %v789, %v657
  %v794 = vadd.f32 %v792, %v793
  %v795 = vmul.f32 %v794, 0.5
  %v796 = vtanh.pop %v795
  %v797 = vmul.f32 %v796, 0.5
  %v798 = vadd.f32 %v797, 0.5
  %v799 = vtanh.pop %v794
  %v800 = vmul.f32 %v798, %v757
  %802 = vrot.lane.b32.xlu0 %v799, 118
  %v803 = vpop.permute.xlu0 %802
  %v805 = vmul.f32 %v798, %v803
  %807 = vrot.lane.b32.xlu0 %v805, 5
  %v808 = vpop.permute.xlu0 %807
  %v810 = vadd.f32 %v800, %v808
  %v811 = vtanh.pop %v810
  %813 = vrot.lane.b32.xlu0 %v811, 10
  %v814 = vpop.permute.xlu0 %813
  %v816 = vmul.f32 %v798, %v814
  %818 = vset.pattern.permute.xlu0 15
  %819 = vperm.xlu0 %818, %v816
  %v820 = vpop.permute.xlu0 %819
  %v822 = vmul.f32 %v820, %v674
  %823 = vset.pattern.permute.xlu0 16
  %824 = vperm.xlu0 %823, %v816
  %v825 = vpop.permute.xlu0 %824
  %v827 = vmul.f32 %v825, %v675
  %828 = vset.pattern.permute.xlu0 17
  %829 = vperm.xlu0 %828, %v816
  %v830 = vpop.permute.xlu0 %829
  %v832 = vmul.f32 %v830, %v676
  %833 = vset.pattern.permute.xlu0 18
  %834 = vperm.xlu0 %833, %v816
  %v835 = vpop.permute.xlu0 %834
  %v837 = vmul.f32 %v835, %v677
  %838 = vset.pattern.permute.xlu0 19
  %839 = vperm.xlu0 %838, %v816
  %v840 = vpop.permute.xlu0 %839
  %v842 = vmul.f32 %v840, %v678
  %v843 = vadd.f32 %v822, %v827
  %v844 = vadd.f32 %v832, %v837
  %v845 = vadd.f32 %v843, %v844
  %v846 = vadd.f32 %v842, %v660
  %v847 = vadd.f32 %v845, %v846
  %v848 = vmul.f32 %v847, 0.5
  %v849 = vtanh.pop %v848
  %v850 = vmul.f32 %v849, 0.5
  %v851 = vadd.f32 %v850, 0.5
  %v852 = vtanh.pop %v847
  %v853 = vmul.f32 %v851, %v810
  %855 = vrot.lane.b32.xlu0 %v852, 118
  %v856 = vpop.permute.xlu0 %855
  %v858 = vmul.f32 %v851, %v856
  %860 = vrot.lane.b32.xlu0 %v858, 5
  %v861 = vpop.permute.xlu0 %860
  %v863 = vadd.f32 %v853, %v861
  %v864 = vtanh.pop %v863
  %866 = vrot.lane.b32.xlu0 %v864, 10
  %v867 = vpop.permute.xlu0 %866
  %v869 = vmul.f32 %v851, %v867
  %871 = vset.pattern.permute.xlu0 15
  %872 = vperm.xlu0 %871, %v869
  %v873 = vpop.permute.xlu0 %872
  %v875 = vmul.f32 %v873, %v674
  %876 = vset.pattern.permute.xlu0 16
  %877 = vperm.xlu0 %876, %v869
  %v878 = vpop.permute.xlu0 %877
  %v880 = vmul.f32 %v878, %v675
  %881 = vset.pattern.permute.xlu0 17
  %882 = vperm.xlu0 %881, %v869
  %v883 = vpop.permute.xlu0 %882
  %v885 = vmul.f32 %v883, %v676
  %886 = vset.pattern.permute.xlu0 18
  %887 = vperm.xlu0 %886, %v869
  %v888 = vpop.permute.xlu0 %887
  %v890 = vmul.f32 %v888, %v677
  %891 = vset.pattern.permute.xlu0 19
  %892 = vperm.xlu0 %891, %v869
  %v893 = vpop.permute.xlu0 %892
  %v895 = vmul.f32 %v893, %v678
  %v896 = vadd.f32 %v875, %v880
  %v897 = vadd.f32 %v885, %v890
  %v898 = vadd.f32 %v896, %v897
  %v899 = vadd.f32 %v895, %v663
  %v900 = vadd.f32 %v898, %v899
  %v901 = vmul.f32 %v900, 0.5
  %v902 = vtanh.pop %v901
  %v903 = vmul.f32 %v902, 0.5
  %v904 = vadd.f32 %v903, 0.5
  %v905 = vtanh.pop %v900
  %v906 = vmul.f32 %v904, %v863
  %908 = vrot.lane.b32.xlu0 %v905, 118
  %v909 = vpop.permute.xlu0 %908
  %v911 = vmul.f32 %v904, %v909
  %913 = vrot.lane.b32.xlu0 %v911, 5
  %v914 = vpop.permute.xlu0 %913
  %v916 = vadd.f32 %v906, %v914
  %v917 = vtanh.pop %v916
  %919 = vrot.lane.b32.xlu0 %v917, 10
  %v920 = vpop.permute.xlu0 %919
  %v922 = vmul.f32 %v904, %v920
  %924 = vset.pattern.permute.xlu0 15
  %925 = vperm.xlu0 %924, %v922
  %v926 = vpop.permute.xlu0 %925
  %v928 = vmul.f32 %v926, %v674
  %929 = vset.pattern.permute.xlu0 16
  %930 = vperm.xlu0 %929, %v922
  %v931 = vpop.permute.xlu0 %930
  %v933 = vmul.f32 %v931, %v675
  %934 = vset.pattern.permute.xlu0 17
  %935 = vperm.xlu0 %934, %v922
  %v936 = vpop.permute.xlu0 %935
  %v938 = vmul.f32 %v936, %v676
  %939 = vset.pattern.permute.xlu0 18
  %940 = vperm.xlu0 %939, %v922
  %v941 = vpop.permute.xlu0 %940
  %v943 = vmul.f32 %v941, %v677
  %944 = vset.pattern.permute.xlu0 19
  %945 = vperm.xlu0 %944, %v922
  %v946 = vpop.permute.xlu0 %945
  %v948 = vmul.f32 %v946, %v678
  %v949 = vadd.f32 %v928, %v933
  %v950 = vadd.f32 %v938, %v943
  %v951 = vadd.f32 %v949, %v950
  %v952 = vadd.f32 %v948, %v666
  %v953 = vadd.f32 %v951, %v952
  %v954 = vmul.f32 %v953, 0.5
  %v955 = vtanh.pop %v954
  %v956 = vmul.f32 %v955, 0.5
  %v957 = vadd.f32 %v956, 0.5
  %v958 = vtanh.pop %v953
  %v959 = vmul.f32 %v957, %v916
  %961 = vrot.lane.b32.xlu0 %v958, 118
  %v962 = vpop.permute.xlu0 %961
  %v964 = vmul.f32 %v957, %v962
  %966 = vrot.lane.b32.xlu0 %v964, 5
  %v967 = vpop.permute.xlu0 %966
  %v969 = vadd.f32 %v959, %v967
  %v970 = vtanh.pop %v969
  %972 = vrot.lane.b32.xlu0 %v970, 10
  %v973 = vpop.permute.xlu0 %972
  %v975 = vmul.f32 %v957, %v973
  %977 = vset.pattern.permute.xlu0 15
  %978 = vperm.xlu0 %977, %v975
  %v979 = vpop.permute.xlu0 %978
  %v981 = vmul.f32 %v979, %v674
  %982 = vset.pattern.permute.xlu0 16
  %983 = vperm.xlu0 %982, %v975
  %v984 = vpop.permute.xlu0 %983
  %v986 = vmul.f32 %v984, %v675
  %987 = vset.pattern.permute.xlu0 17
  %988 = vperm.xlu0 %987, %v975
  %v989 = vpop.permute.xlu0 %988
  %v991 = vmul.f32 %v989, %v676
  %992 = vset.pattern.permute.xlu0 18
  %993 = vperm.xlu0 %992, %v975
  %v994 = vpop.permute.xlu0 %993
  %v996 = vmul.f32 %v994, %v677
  %997 = vset.pattern.permute.xlu0 19
  %998 = vperm.xlu0 %997, %v975
  %v999 = vpop.permute.xlu0 %998
  %v1001 = vmul.f32 %v999, %v678
  %v1002 = vadd.f32 %v981, %v986
  %v1003 = vadd.f32 %v991, %v996
  %v1004 = vadd.f32 %v1002, %v1003
  %v1005 = vadd.f32 %v1001, %v669
  %v1006 = vadd.f32 %v1004, %v1005
  %v1007 = vmul.f32 %v1006, 0.5
  %v1008 = vtanh.pop %v1007
  %v1009 = vmul.f32 %v1008, 0.5
  %v1010 = vadd.f32 %v1009, 0.5
  %v1011 = vtanh.pop %v1006
  %v1012 = vmul.f32 %v1010, %v969
  %1014 = vrot.lane.b32.xlu0 %v1011, 118
  %v1015 = vpop.permute.xlu0 %1014
  %v1017 = vmul.f32 %v1010, %v1015
  %1019 = vrot.lane.b32.xlu0 %v1017, 5
  %v1020 = vpop.permute.xlu0 %1019
  %v1022 = vadd.f32 %v1012, %v1020
  %v1023 = vtanh.pop %v1022
  %1025 = vrot.lane.b32.xlu0 %v1023, 10
  %v1026 = vpop.permute.xlu0 %1025
  %v1028 = vmul.f32 %v1010, %v1026
  %1030 = vset.pattern.permute.xlu0 15
  %1031 = vperm.xlu0 %1030, %v1028
  %v1032 = vpop.permute.xlu0 %1031
  %v1034 = vmul.f32 %v1032, %v674
  %1035 = vset.pattern.permute.xlu0 16
  %1036 = vperm.xlu0 %1035, %v1028
  %v1037 = vpop.permute.xlu0 %1036
  %v1039 = vmul.f32 %v1037, %v675
  %1040 = vset.pattern.permute.xlu0 17
  %1041 = vperm.xlu0 %1040, %v1028
  %v1042 = vpop.permute.xlu0 %1041
  %v1044 = vmul.f32 %v1042, %v676
  %1045 = vset.pattern.permute.xlu0 18
  %1046 = vperm.xlu0 %1045, %v1028
  %v1047 = vpop.permute.xlu0 %1046
  %v1049 = vmul.f32 %v1047, %v677
  %1050 = vset.pattern.permute.xlu0 19
  %1051 = vperm.xlu0 %1050, %v1028
  %v1052 = vpop.permute.xlu0 %1051
  %v1054 = vmul.f32 %v1052, %v678
  %v1055 = vadd.f32 %v1034, %v1039
  %v1056 = vadd.f32 %v1044, %v1049
  %v1057 = vadd.f32 %v1055, %v1056
  %v1058 = vadd.f32 %v1054, %v672
  %v1059 = vadd.f32 %v1057, %v1058
  %v1060 = vmul.f32 %v1059, 0.5
  %v1061 = vtanh.pop %v1060
  %v1062 = vmul.f32 %v1061, 0.5
  %v1063 = vadd.f32 %v1062, 0.5
  %v1064 = vtanh.pop %v1059
  %v1065 = vmul.f32 %v1063, %v1022
  %1067 = vrot.lane.b32.xlu0 %v1064, 118
  %v1068 = vpop.permute.xlu0 %1067
  %v1070 = vmul.f32 %v1063, %v1068
  %1072 = vrot.lane.b32.xlu0 %v1070, 5
  %v1073 = vpop.permute.xlu0 %1072
  %v1075 = vadd.f32 %v1065, %v1073
  %v1076 = vtanh.pop %v1075
  %1078 = vrot.lane.b32.xlu0 %v1076, 10
  %v1079 = vpop.permute.xlu0 %1078
  %v1081 = vmul.f32 %v1063, %v1079
  %v1082 = vperm.slane %v20, 0
  %1084 = vrot.lane.b32.xlu0 %v710, 113
  %v1085 = vpop.permute.xlu0 %1084
  %1086 = vrot.lane.b32.xlu0 %v763, 113
  %v1087 = vpop.permute.xlu0 %1086
  %1088 = vrot.lane.b32.xlu0 %v816, 113
  %v1089 = vpop.permute.xlu0 %1088
  %1090 = vrot.lane.b32.xlu0 %v869, 113
  %v1091 = vpop.permute.xlu0 %1090
  %1092 = vrot.lane.b32.xlu0 %v922, 113
  %v1093 = vpop.permute.xlu0 %1092
  %1094 = vrot.lane.b32.xlu0 %v975, 113
  %v1095 = vpop.permute.xlu0 %1094
  %1096 = vrot.lane.b32.xlu0 %v1028, 113
  %v1097 = vpop.permute.xlu0 %1096
  %1098 = vrot.lane.b32.xlu0 %v1081, 113
  %v1099 = vpop.permute.xlu0 %1098
  %v1100 = vsel %vm612, %v1085, 0
  %v1102 = vsel %vm612, %v1087, 0
  %v1104 = vsel %vm612, %v1089, 0
  %v1106 = vsel %vm612, %v1091, 0
  %v1108 = vsel %vm612, %v1093, 0
  %v1110 = vsel %vm612, %v1095, 0
  %v1112 = vsel %vm612, %v1097, 0
  %v1114 = vsel %vm612, %v1099, 0
  %v1117 = vsel %vm629, %v19, 0
  %1119 = vmatpush.msra.mxu0 0.0
  %1120 = vmatpush.msra.mxu0 0.0
  %1121 = vmatpush.msra.mxu0 0.0
  %1122 = vmatpush.msra.mxu0 0.0
  %1123 = vmatpush.msra.mxu0 0.0
  %1124 = vmatpush.msra.mxu0 0.0
  %1125 = vmatpush.msra.mxu0 0.0
  %1126 = vmatpush.msra.mxu0 0.0
  %1127 = vmatpush.msra.mxu0 0.0
  %1128 = vmatpush.msra.mxu0 0.0
  %1129 = vmatpush.msra.mxu0 0.0
  %1130 = vmatpush.msra.mxu0 0.0
  %1131 = vmatpush.msra.mxu0 0.0
  %1132 = vmatpush.msra.mxu0 0.0
  %1133 = vmatpush.msra.mxu0 0.0
  %1134 = vmatpush.msra.mxu0 %v1117
  %1135 = vmatmul.f32.gmra.mxu0 %v1100
  %v1136 = vpop.f32.mrf.mxu0
  %v1137 = vadd.f32 %v1082, %v1136
  %1138 = vmatmul.f32.gmra.mxu0 %v1102
  %v1139 = vpop.f32.mrf.mxu0
  %v1140 = vadd.f32 %v1082, %v1139
  %1141 = vmatmul.f32.gmra.mxu0 %v1104
  %v1142 = vpop.f32.mrf.mxu0
  %v1143 = vadd.f32 %v1082, %v1142
  %1144 = vmatmul.f32.gmra.mxu0 %v1106
  %v1145 = vpop.f32.mrf.mxu0
  %v1146 = vadd.f32 %v1082, %v1145
  %1147 = vmatmul.f32.gmra.mxu0 %v1108
  %v1148 = vpop.f32.mrf.mxu0
  %v1149 = vadd.f32 %v1082, %v1148
  %1150 = vmatmul.f32.gmra.mxu0 %v1110
  %v1151 = vpop.f32.mrf.mxu0
  %v1152 = vadd.f32 %v1082, %v1151
  %1153 = vmatmul.f32.gmra.mxu0 %v1112
  %v1154 = vpop.f32.mrf.mxu0
  %v1155 = vadd.f32 %v1082, %v1154
  %1156 = vmatmul.f32.gmra.mxu0 %v1114
  %v1157 = vpop.f32.mrf.mxu0
  %v1158 = vadd.f32 %v1082, %v1157
  %1159 = vdwg.mxu0
  %v1160 = vmax.f32 %v1137, 0.0
  %v1161 = vmax.f32 %v1140, 0.0
  %v1162 = vmax.f32 %v1143, 0.0
  %v1163 = vmax.f32 %v1146, 0.0
  %v1164 = vmax.f32 %v1149, 0.0
  %v1165 = vmax.f32 %v1152, 0.0
  %v1166 = vmax.f32 %v1155, 0.0
  %v1167 = vmax.f32 %v1158, 0.0
  %v1168 = vperm.slane %v23, 0
  %v1170 = vsel %vm612, %v1160, 0
  %v1173 = vsel %vm612, %v1161, 0
  %v1176 = vsel %vm612, %v1162, 0
  %v1179 = vsel %vm612, %v1163, 0
  %v1182 = vsel %vm612, %v1164, 0
  %v1185 = vsel %vm612, %v1165, 0
  %v1188 = vsel %vm612, %v1166, 0
  %v1191 = vsel %vm612, %v1167, 0
  %v1194 = vsel %vm629, %v21, 0
  %1196 = vmatpush.msra.mxu0 0.0
  %1197 = vmatpush.msra.mxu0 0.0
  %1198 = vmatpush.msra.mxu0 0.0
  %1199 = vmatpush.msra.mxu0 0.0
  %1200 = vmatpush.msra.mxu0 0.0
  %1201 = vmatpush.msra.mxu0 0.0
  %1202 = vmatpush.msra.mxu0 0.0
  %1203 = vmatpush.msra.mxu0 0.0
  %1204 = vmatpush.msra.mxu0 0.0
  %1205 = vmatpush.msra.mxu0 0.0
  %1206 = vmatpush.msra.mxu0 0.0
  %1207 = vmatpush.msra.mxu0 0.0
  %1208 = vmatpush.msra.mxu0 0.0
  %1209 = vmatpush.msra.mxu0 0.0
  %1210 = vmatpush.msra.mxu0 0.0
  %1211 = vmatpush.msra.mxu0 %v1194
  %1212 = vmatmul.f32.gmra.mxu0 %v1170
  %v1213 = vpop.f32.mrf.mxu0
  %v1214 = vadd.f32 %v1168, %v1213
  %1215 = vmatmul.f32.gmra.mxu0 %v1173
  %v1216 = vpop.f32.mrf.mxu0
  %v1217 = vadd.f32 %v1168, %v1216
  %1218 = vmatmul.f32.gmra.mxu0 %v1176
  %v1219 = vpop.f32.mrf.mxu0
  %v1220 = vadd.f32 %v1168, %v1219
  %1221 = vmatmul.f32.gmra.mxu0 %v1179
  %v1222 = vpop.f32.mrf.mxu0
  %v1223 = vadd.f32 %v1168, %v1222
  %1224 = vmatmul.f32.gmra.mxu0 %v1182
  %v1225 = vpop.f32.mrf.mxu0
  %v1226 = vadd.f32 %v1168, %v1225
  %1227 = vmatmul.f32.gmra.mxu0 %v1185
  %v1228 = vpop.f32.mrf.mxu0
  %v1229 = vadd.f32 %v1168, %v1228
  %1230 = vmatmul.f32.gmra.mxu0 %v1188
  %v1231 = vpop.f32.mrf.mxu0
  %v1232 = vadd.f32 %v1168, %v1231
  %1233 = vmatmul.f32.gmra.mxu0 %v1191
  %v1234 = vpop.f32.mrf.mxu0
  %v1235 = vadd.f32 %v1168, %v1234
  %1236 = vdwg.mxu0
  %v1237 = vperm.slane %v22, 0
  %v1238 = vperm.slane %v22, 1
  %v1239 = vperm.slane %v22, 2
  %v1240 = vperm.slane %v22, 3
  %v1241 = vperm.slane %v22, 4
  %v1242 = vmul.f32 %v1237, 0.0
  %v1243 = vmul.f32 %v1238, 0.0
  %v1244 = vmul.f32 %v1239, 0.0
  %v1245 = vmul.f32 %v1240, 0.0
  %v1246 = vmul.f32 %v1241, 0.0
  %v1247 = vadd.f32 %v1242, %v1243
  %v1248 = vadd.f32 %v1244, %v1245
  %v1249 = vadd.f32 %v1247, %v1248
  %v1250 = vadd.f32 %v1246, %v1214
  %v1251 = vadd.f32 %v1249, %v1250
  %v1252 = vmul.f32 %v1251, 0.5
  %v1253 = vtanh.pop %v1252
  %v1254 = vmul.f32 %v1253, 0.5
  %v1255 = vadd.f32 %v1254, 0.5
  %v1256 = vtanh.pop %v1251
  %v1257 = vmul.f32 %v1255, 0.0
  %1259 = vrot.lane.b32.xlu0 %v1256, 118
  %v1260 = vpop.permute.xlu0 %1259
  %v1262 = vmul.f32 %v1255, %v1260
  %1264 = vrot.lane.b32.xlu0 %v1262, 5
  %v1265 = vpop.permute.xlu0 %1264
  %v1267 = vadd.f32 %v1257, %v1265
  %v1268 = vtanh.pop %v1267
  %1270 = vrot.lane.b32.xlu0 %v1268, 10
  %v1271 = vpop.permute.xlu0 %1270
  %v1273 = vmul.f32 %v1255, %v1271
  %1275 = vset.pattern.permute.xlu0 15
  %1276 = vperm.xlu0 %1275, %v1273
  %v1277 = vpop.permute.xlu0 %1276
  %v1279 = vmul.f32 %v1277, %v1237
  %1280 = vset.pattern.permute.xlu0 16
  %1281 = vperm.xlu0 %1280, %v1273
  %v1282 = vpop.permute.xlu0 %1281
  %v1284 = vmul.f32 %v1282, %v1238
  %1285 = vset.pattern.permute.xlu0 17
  %1286 = vperm.xlu0 %1285, %v1273
  %v1287 = vpop.permute.xlu0 %1286
  %v1289 = vmul.f32 %v1287, %v1239
  %1290 = vset.pattern.permute.xlu0 18
  %1291 = vperm.xlu0 %1290, %v1273
  %v1292 = vpop.permute.xlu0 %1291
  %v1294 = vmul.f32 %v1292, %v1240
  %1295 = vset.pattern.permute.xlu0 19
  %1296 = vperm.xlu0 %1295, %v1273
  %v1297 = vpop.permute.xlu0 %1296
  %v1299 = vmul.f32 %v1297, %v1241
  %v1300 = vadd.f32 %v1279, %v1284
  %v1301 = vadd.f32 %v1289, %v1294
  %v1302 = vadd.f32 %v1300, %v1301
  %v1303 = vadd.f32 %v1299, %v1217
  %v1304 = vadd.f32 %v1302, %v1303
  %v1305 = vmul.f32 %v1304, 0.5
  %v1306 = vtanh.pop %v1305
  %v1307 = vmul.f32 %v1306, 0.5
  %v1308 = vadd.f32 %v1307, 0.5
  %v1309 = vtanh.pop %v1304
  %v1310 = vmul.f32 %v1308, %v1267
  %1312 = vrot.lane.b32.xlu0 %v1309, 118
  %v1313 = vpop.permute.xlu0 %1312
  %v1315 = vmul.f32 %v1308, %v1313
  %1317 = vrot.lane.b32.xlu0 %v1315, 5
  %v1318 = vpop.permute.xlu0 %1317
  %v1320 = vadd.f32 %v1310, %v1318
  %v1321 = vtanh.pop %v1320
  %1323 = vrot.lane.b32.xlu0 %v1321, 10
  %v1324 = vpop.permute.xlu0 %1323
  %v1326 = vmul.f32 %v1308, %v1324
  %1328 = vset.pattern.permute.xlu0 15
  %1329 = vperm.xlu0 %1328, %v1326
  %v1330 = vpop.permute.xlu0 %1329
  %v1332 = vmul.f32 %v1330, %v1237
  %1333 = vset.pattern.permute.xlu0 16
  %1334 = vperm.xlu0 %1333, %v1326
  %v1335 = vpop.permute.xlu0 %1334
  %v1337 = vmul.f32 %v1335, %v1238
  %1338 = vset.pattern.permute.xlu0 17
  %1339 = vperm.xlu0 %1338, %v1326
  %v1340 = vpop.permute.xlu0 %1339
  %v1342 = vmul.f32 %v1340, %v1239
  %1343 = vset.pattern.permute.xlu0 18
  %1344 = vperm.xlu0 %1343, %v1326
  %v1345 = vpop.permute.xlu0 %1344
  %v1347 = vmul.f32 %v1345, %v1240
  %1348 = vset.pattern.permute.xlu0 19
  %1349 = vperm.xlu0 %1348, %v1326
  %v1350 = vpop.permute.xlu0 %1349
  %v1352 = vmul.f32 %v1350, %v1241
  %v1353 = vadd.f32 %v1332, %v1337
  %v1354 = vadd.f32 %v1342, %v1347
  %v1355 = vadd.f32 %v1353, %v1354
  %v1356 = vadd.f32 %v1352, %v1220
  %v1357 = vadd.f32 %v1355, %v1356
  %v1358 = vmul.f32 %v1357, 0.5
  %v1359 = vtanh.pop %v1358
  %v1360 = vmul.f32 %v1359, 0.5
  %v1361 = vadd.f32 %v1360, 0.5
  %v1362 = vtanh.pop %v1357
  %v1363 = vmul.f32 %v1361, %v1320
  %1365 = vrot.lane.b32.xlu0 %v1362, 118
  %v1366 = vpop.permute.xlu0 %1365
  %v1368 = vmul.f32 %v1361, %v1366
  %1370 = vrot.lane.b32.xlu0 %v1368, 5
  %v1371 = vpop.permute.xlu0 %1370
  %v1373 = vadd.f32 %v1363, %v1371
  %v1374 = vtanh.pop %v1373
  %1376 = vrot.lane.b32.xlu0 %v1374, 10
  %v1377 = vpop.permute.xlu0 %1376
  %v1379 = vmul.f32 %v1361, %v1377
  %1381 = vset.pattern.permute.xlu0 15
  %1382 = vperm.xlu0 %1381, %v1379
  %v1383 = vpop.permute.xlu0 %1382
  %v1385 = vmul.f32 %v1383, %v1237
  %1386 = vset.pattern.permute.xlu0 16
  %1387 = vperm.xlu0 %1386, %v1379
  %v1388 = vpop.permute.xlu0 %1387
  %v1390 = vmul.f32 %v1388, %v1238
  %1391 = vset.pattern.permute.xlu0 17
  %1392 = vperm.xlu0 %1391, %v1379
  %v1393 = vpop.permute.xlu0 %1392
  %v1395 = vmul.f32 %v1393, %v1239
  %1396 = vset.pattern.permute.xlu0 18
  %1397 = vperm.xlu0 %1396, %v1379
  %v1398 = vpop.permute.xlu0 %1397
  %v1400 = vmul.f32 %v1398, %v1240
  %1401 = vset.pattern.permute.xlu0 19
  %1402 = vperm.xlu0 %1401, %v1379
  %v1403 = vpop.permute.xlu0 %1402
  %v1405 = vmul.f32 %v1403, %v1241
  %v1406 = vadd.f32 %v1385, %v1390
  %v1407 = vadd.f32 %v1395, %v1400
  %v1408 = vadd.f32 %v1406, %v1407
  %v1409 = vadd.f32 %v1405, %v1223
  %v1410 = vadd.f32 %v1408, %v1409
  %v1411 = vmul.f32 %v1410, 0.5
  %v1412 = vtanh.pop %v1411
  %v1413 = vmul.f32 %v1412, 0.5
  %v1414 = vadd.f32 %v1413, 0.5
  %v1415 = vtanh.pop %v1410
  %v1416 = vmul.f32 %v1414, %v1373
  %1418 = vrot.lane.b32.xlu0 %v1415, 118
  %v1419 = vpop.permute.xlu0 %1418
  %v1421 = vmul.f32 %v1414, %v1419
  %1423 = vrot.lane.b32.xlu0 %v1421, 5
  %v1424 = vpop.permute.xlu0 %1423
  %v1426 = vadd.f32 %v1416, %v1424
  %v1427 = vtanh.pop %v1426
  %1429 = vrot.lane.b32.xlu0 %v1427, 10
  %v1430 = vpop.permute.xlu0 %1429
  %v1432 = vmul.f32 %v1414, %v1430
  %1434 = vset.pattern.permute.xlu0 15
  %1435 = vperm.xlu0 %1434, %v1432
  %v1436 = vpop.permute.xlu0 %1435
  %v1438 = vmul.f32 %v1436, %v1237
  %1439 = vset.pattern.permute.xlu0 16
  %1440 = vperm.xlu0 %1439, %v1432
  %v1441 = vpop.permute.xlu0 %1440
  %v1443 = vmul.f32 %v1441, %v1238
  %1444 = vset.pattern.permute.xlu0 17
  %1445 = vperm.xlu0 %1444, %v1432
  %v1446 = vpop.permute.xlu0 %1445
  %v1448 = vmul.f32 %v1446, %v1239
  %1449 = vset.pattern.permute.xlu0 18
  %1450 = vperm.xlu0 %1449, %v1432
  %v1451 = vpop.permute.xlu0 %1450
  %v1453 = vmul.f32 %v1451, %v1240
  %1454 = vset.pattern.permute.xlu0 19
  %1455 = vperm.xlu0 %1454, %v1432
  %v1456 = vpop.permute.xlu0 %1455
  %v1458 = vmul.f32 %v1456, %v1241
  %v1459 = vadd.f32 %v1438, %v1443
  %v1460 = vadd.f32 %v1448, %v1453
  %v1461 = vadd.f32 %v1459, %v1460
  %v1462 = vadd.f32 %v1458, %v1226
  %v1463 = vadd.f32 %v1461, %v1462
  %v1464 = vmul.f32 %v1463, 0.5
  %v1465 = vtanh.pop %v1464
  %v1466 = vmul.f32 %v1465, 0.5
  %v1467 = vadd.f32 %v1466, 0.5
  %v1468 = vtanh.pop %v1463
  %v1469 = vmul.f32 %v1467, %v1426
  %1471 = vrot.lane.b32.xlu0 %v1468, 118
  %v1472 = vpop.permute.xlu0 %1471
  %v1474 = vmul.f32 %v1467, %v1472
  %1476 = vrot.lane.b32.xlu0 %v1474, 5
  %v1477 = vpop.permute.xlu0 %1476
  %v1479 = vadd.f32 %v1469, %v1477
  %v1480 = vtanh.pop %v1479
  %1482 = vrot.lane.b32.xlu0 %v1480, 10
  %v1483 = vpop.permute.xlu0 %1482
  %v1485 = vmul.f32 %v1467, %v1483
  %1487 = vset.pattern.permute.xlu0 15
  %1488 = vperm.xlu0 %1487, %v1485
  %v1489 = vpop.permute.xlu0 %1488
  %v1491 = vmul.f32 %v1489, %v1237
  %1492 = vset.pattern.permute.xlu0 16
  %1493 = vperm.xlu0 %1492, %v1485
  %v1494 = vpop.permute.xlu0 %1493
  %v1496 = vmul.f32 %v1494, %v1238
  %1497 = vset.pattern.permute.xlu0 17
  %1498 = vperm.xlu0 %1497, %v1485
  %v1499 = vpop.permute.xlu0 %1498
  %v1501 = vmul.f32 %v1499, %v1239
  %1502 = vset.pattern.permute.xlu0 18
  %1503 = vperm.xlu0 %1502, %v1485
  %v1504 = vpop.permute.xlu0 %1503
  %v1506 = vmul.f32 %v1504, %v1240
  %1507 = vset.pattern.permute.xlu0 19
  %1508 = vperm.xlu0 %1507, %v1485
  %v1509 = vpop.permute.xlu0 %1508
  %v1511 = vmul.f32 %v1509, %v1241
  %v1512 = vadd.f32 %v1491, %v1496
  %v1513 = vadd.f32 %v1501, %v1506
  %v1514 = vadd.f32 %v1512, %v1513
  %v1515 = vadd.f32 %v1511, %v1229
  %v1516 = vadd.f32 %v1514, %v1515
  %v1517 = vmul.f32 %v1516, 0.5
  %v1518 = vtanh.pop %v1517
  %v1519 = vmul.f32 %v1518, 0.5
  %v1520 = vadd.f32 %v1519, 0.5
  %v1521 = vtanh.pop %v1516
  %v1522 = vmul.f32 %v1520, %v1479
  %1524 = vrot.lane.b32.xlu0 %v1521, 118
  %v1525 = vpop.permute.xlu0 %1524
  %v1527 = vmul.f32 %v1520, %v1525
  %1529 = vrot.lane.b32.xlu0 %v1527, 5
  %v1530 = vpop.permute.xlu0 %1529
  %v1532 = vadd.f32 %v1522, %v1530
  %v1533 = vtanh.pop %v1532
  %1535 = vrot.lane.b32.xlu0 %v1533, 10
  %v1536 = vpop.permute.xlu0 %1535
  %v1538 = vmul.f32 %v1520, %v1536
  %1540 = vset.pattern.permute.xlu0 15
  %1541 = vperm.xlu0 %1540, %v1538
  %v1542 = vpop.permute.xlu0 %1541
  %v1544 = vmul.f32 %v1542, %v1237
  %1545 = vset.pattern.permute.xlu0 16
  %1546 = vperm.xlu0 %1545, %v1538
  %v1547 = vpop.permute.xlu0 %1546
  %v1549 = vmul.f32 %v1547, %v1238
  %1550 = vset.pattern.permute.xlu0 17
  %1551 = vperm.xlu0 %1550, %v1538
  %v1552 = vpop.permute.xlu0 %1551
  %v1554 = vmul.f32 %v1552, %v1239
  %1555 = vset.pattern.permute.xlu0 18
  %1556 = vperm.xlu0 %1555, %v1538
  %v1557 = vpop.permute.xlu0 %1556
  %v1559 = vmul.f32 %v1557, %v1240
  %1560 = vset.pattern.permute.xlu0 19
  %1561 = vperm.xlu0 %1560, %v1538
  %v1562 = vpop.permute.xlu0 %1561
  %v1564 = vmul.f32 %v1562, %v1241
  %v1565 = vadd.f32 %v1544, %v1549
  %v1566 = vadd.f32 %v1554, %v1559
  %v1567 = vadd.f32 %v1565, %v1566
  %v1568 = vadd.f32 %v1564, %v1232
  %v1569 = vadd.f32 %v1567, %v1568
  %v1570 = vmul.f32 %v1569, 0.5
  %v1571 = vtanh.pop %v1570
  %v1572 = vmul.f32 %v1571, 0.5
  %v1573 = vadd.f32 %v1572, 0.5
  %v1574 = vtanh.pop %v1569
  %v1575 = vmul.f32 %v1573, %v1532
  %1577 = vrot.lane.b32.xlu0 %v1574, 118
  %v1578 = vpop.permute.xlu0 %1577
  %v1580 = vmul.f32 %v1573, %v1578
  %1582 = vrot.lane.b32.xlu0 %v1580, 5
  %v1583 = vpop.permute.xlu0 %1582
  %v1585 = vadd.f32 %v1575, %v1583
  %v1586 = vtanh.pop %v1585
  %1588 = vrot.lane.b32.xlu0 %v1586, 10
  %v1589 = vpop.permute.xlu0 %1588
  %v1591 = vmul.f32 %v1573, %v1589
  %1593 = vset.pattern.permute.xlu0 15
  %1594 = vperm.xlu0 %1593, %v1591
  %v1595 = vpop.permute.xlu0 %1594
  %v1597 = vmul.f32 %v1595, %v1237
  %1598 = vset.pattern.permute.xlu0 16
  %1599 = vperm.xlu0 %1598, %v1591
  %v1600 = vpop.permute.xlu0 %1599
  %v1602 = vmul.f32 %v1600, %v1238
  %1603 = vset.pattern.permute.xlu0 17
  %1604 = vperm.xlu0 %1603, %v1591
  %v1605 = vpop.permute.xlu0 %1604
  %v1607 = vmul.f32 %v1605, %v1239
  %1608 = vset.pattern.permute.xlu0 18
  %1609 = vperm.xlu0 %1608, %v1591
  %v1610 = vpop.permute.xlu0 %1609
  %v1612 = vmul.f32 %v1610, %v1240
  %1613 = vset.pattern.permute.xlu0 19
  %1614 = vperm.xlu0 %1613, %v1591
  %v1615 = vpop.permute.xlu0 %1614
  %v1617 = vmul.f32 %v1615, %v1241
  %v1618 = vadd.f32 %v1597, %v1602
  %v1619 = vadd.f32 %v1607, %v1612
  %v1620 = vadd.f32 %v1618, %v1619
  %v1621 = vadd.f32 %v1617, %v1235
  %v1622 = vadd.f32 %v1620, %v1621
  %v1623 = vmul.f32 %v1622, 0.5
  %v1624 = vtanh.pop %v1623
  %v1625 = vmul.f32 %v1624, 0.5
  %v1626 = vadd.f32 %v1625, 0.5
  %v1627 = vtanh.pop %v1622
  %v1628 = vmul.f32 %v1626, %v1585
  %1630 = vrot.lane.b32.xlu0 %v1627, 118
  %v1631 = vpop.permute.xlu0 %1630
  %v1633 = vmul.f32 %v1626, %v1631
  %1635 = vrot.lane.b32.xlu0 %v1633, 5
  %v1636 = vpop.permute.xlu0 %1635
  %v1638 = vadd.f32 %v1628, %v1636
  %v1639 = vtanh.pop %v1638
  %1641 = vrot.lane.b32.xlu0 %v1639, 10
  %v1642 = vpop.permute.xlu0 %1641
  %v1644 = vmul.f32 %v1626, %v1642
  %v1645 = vperm.slane %v26, 0
  %1647 = vrot.lane.b32.xlu0 %v1273, 113
  %v1648 = vpop.permute.xlu0 %1647
  %1649 = vrot.lane.b32.xlu0 %v1326, 113
  %v1650 = vpop.permute.xlu0 %1649
  %1651 = vrot.lane.b32.xlu0 %v1379, 113
  %v1652 = vpop.permute.xlu0 %1651
  %1653 = vrot.lane.b32.xlu0 %v1432, 113
  %v1654 = vpop.permute.xlu0 %1653
  %1655 = vrot.lane.b32.xlu0 %v1485, 113
  %v1656 = vpop.permute.xlu0 %1655
  %1657 = vrot.lane.b32.xlu0 %v1538, 113
  %v1658 = vpop.permute.xlu0 %1657
  %1659 = vrot.lane.b32.xlu0 %v1591, 113
  %v1660 = vpop.permute.xlu0 %1659
  %1661 = vrot.lane.b32.xlu0 %v1644, 113
  %v1662 = vpop.permute.xlu0 %1661
  %v1663 = vsel %vm612, %v1648, 0
  %v1665 = vsel %vm612, %v1650, 0
  %v1667 = vsel %vm612, %v1652, 0
  %v1669 = vsel %vm612, %v1654, 0
  %v1671 = vsel %vm612, %v1656, 0
  %v1673 = vsel %vm612, %v1658, 0
  %v1675 = vsel %vm612, %v1660, 0
  %v1677 = vsel %vm612, %v1662, 0
  %v1680 = vsel %vm629, %v24, 0
  %1682 = vmatpush.msra.mxu0 0.0
  %1683 = vmatpush.msra.mxu0 0.0
  %1684 = vmatpush.msra.mxu0 0.0
  %1685 = vmatpush.msra.mxu0 0.0
  %1686 = vmatpush.msra.mxu0 0.0
  %1687 = vmatpush.msra.mxu0 0.0
  %1688 = vmatpush.msra.mxu0 0.0
  %1689 = vmatpush.msra.mxu0 0.0
  %1690 = vmatpush.msra.mxu0 0.0
  %1691 = vmatpush.msra.mxu0 0.0
  %1692 = vmatpush.msra.mxu0 0.0
  %1693 = vmatpush.msra.mxu0 0.0
  %1694 = vmatpush.msra.mxu0 0.0
  %1695 = vmatpush.msra.mxu0 0.0
  %1696 = vmatpush.msra.mxu0 0.0
  %1697 = vmatpush.msra.mxu0 %v1680
  %1698 = vmatmul.f32.gmra.mxu0 %v1663
  %v1699 = vpop.f32.mrf.mxu0
  %v1700 = vadd.f32 %v1645, %v1699
  %1701 = vmatmul.f32.gmra.mxu0 %v1665
  %v1702 = vpop.f32.mrf.mxu0
  %v1703 = vadd.f32 %v1645, %v1702
  %1704 = vmatmul.f32.gmra.mxu0 %v1667
  %v1705 = vpop.f32.mrf.mxu0
  %v1706 = vadd.f32 %v1645, %v1705
  %1707 = vmatmul.f32.gmra.mxu0 %v1669
  %v1708 = vpop.f32.mrf.mxu0
  %v1709 = vadd.f32 %v1645, %v1708
  %1710 = vmatmul.f32.gmra.mxu0 %v1671
  %v1711 = vpop.f32.mrf.mxu0
  %v1712 = vadd.f32 %v1645, %v1711
  %1713 = vmatmul.f32.gmra.mxu0 %v1673
  %v1714 = vpop.f32.mrf.mxu0
  %v1715 = vadd.f32 %v1645, %v1714
  %1716 = vmatmul.f32.gmra.mxu0 %v1675
  %v1717 = vpop.f32.mrf.mxu0
  %v1718 = vadd.f32 %v1645, %v1717
  %1719 = vmatmul.f32.gmra.mxu0 %v1677
  %v1720 = vpop.f32.mrf.mxu0
  %v1721 = vadd.f32 %v1645, %v1720
  %1722 = vdwg.mxu0
  %v1723 = vperm.slane %v25, 0
  %v1724 = vperm.slane %v25, 1
  %v1725 = vperm.slane %v25, 2
  %v1726 = vperm.slane %v25, 3
  %v1727 = vperm.slane %v25, 4
  %v1728 = vmul.f32 %v1723, 0.0
  %v1729 = vmul.f32 %v1724, 0.0
  %v1730 = vmul.f32 %v1725, 0.0
  %v1731 = vmul.f32 %v1726, 0.0
  %v1732 = vmul.f32 %v1727, 0.0
  %v1733 = vadd.f32 %v1728, %v1729
  %v1734 = vadd.f32 %v1730, %v1731
  %v1735 = vadd.f32 %v1733, %v1734
  %v1736 = vadd.f32 %v1732, %v1700
  %v1737 = vadd.f32 %v1735, %v1736
  %v1738 = vmul.f32 %v1737, 0.5
  %v1739 = vtanh.pop %v1738
  %v1740 = vmul.f32 %v1739, 0.5
  %v1741 = vadd.f32 %v1740, 0.5
  %v1742 = vtanh.pop %v1737
  %v1743 = vmul.f32 %v1741, 0.0
  %1745 = vrot.lane.b32.xlu0 %v1742, 118
  %v1746 = vpop.permute.xlu0 %1745
  %v1748 = vmul.f32 %v1741, %v1746
  %1750 = vrot.lane.b32.xlu0 %v1748, 5
  %v1751 = vpop.permute.xlu0 %1750
  %v1753 = vadd.f32 %v1743, %v1751
  %v1754 = vtanh.pop %v1753
  %1756 = vrot.lane.b32.xlu0 %v1754, 10
  %v1757 = vpop.permute.xlu0 %1756
  %v1759 = vmul.f32 %v1741, %v1757
  %1761 = vset.pattern.permute.xlu0 15
  %1762 = vperm.xlu0 %1761, %v1759
  %v1763 = vpop.permute.xlu0 %1762
  %v1765 = vmul.f32 %v1763, %v1723
  %1766 = vset.pattern.permute.xlu0 16
  %1767 = vperm.xlu0 %1766, %v1759
  %v1768 = vpop.permute.xlu0 %1767
  %v1770 = vmul.f32 %v1768, %v1724
  %1771 = vset.pattern.permute.xlu0 17
  %1772 = vperm.xlu0 %1771, %v1759
  %v1773 = vpop.permute.xlu0 %1772
  %v1775 = vmul.f32 %v1773, %v1725
  %1776 = vset.pattern.permute.xlu0 18
  %1777 = vperm.xlu0 %1776, %v1759
  %v1778 = vpop.permute.xlu0 %1777
  %v1780 = vmul.f32 %v1778, %v1726
  %1781 = vset.pattern.permute.xlu0 19
  %1782 = vperm.xlu0 %1781, %v1759
  %v1783 = vpop.permute.xlu0 %1782
  %v1785 = vmul.f32 %v1783, %v1727
  %v1786 = vadd.f32 %v1765, %v1770
  %v1787 = vadd.f32 %v1775, %v1780
  %v1788 = vadd.f32 %v1786, %v1787
  %v1789 = vadd.f32 %v1785, %v1703
  %v1790 = vadd.f32 %v1788, %v1789
  %v1791 = vmul.f32 %v1790, 0.5
  %v1792 = vtanh.pop %v1791
  %v1793 = vmul.f32 %v1792, 0.5
  %v1794 = vadd.f32 %v1793, 0.5
  %v1795 = vtanh.pop %v1790
  %v1796 = vmul.f32 %v1794, %v1753
  %1798 = vrot.lane.b32.xlu0 %v1795, 118
  %v1799 = vpop.permute.xlu0 %1798
  %v1801 = vmul.f32 %v1794, %v1799
  %1803 = vrot.lane.b32.xlu0 %v1801, 5
  %v1804 = vpop.permute.xlu0 %1803
  %v1806 = vadd.f32 %v1796, %v1804
  %v1807 = vtanh.pop %v1806
  %1809 = vrot.lane.b32.xlu0 %v1807, 10
  %v1810 = vpop.permute.xlu0 %1809
  %v1812 = vmul.f32 %v1794, %v1810
  %1814 = vset.pattern.permute.xlu0 15
  %1815 = vperm.xlu0 %1814, %v1812
  %v1816 = vpop.permute.xlu0 %1815
  %v1818 = vmul.f32 %v1816, %v1723
  %1819 = vset.pattern.permute.xlu0 16
  %1820 = vperm.xlu0 %1819, %v1812
  %v1821 = vpop.permute.xlu0 %1820
  %v1823 = vmul.f32 %v1821, %v1724
  %1824 = vset.pattern.permute.xlu0 17
  %1825 = vperm.xlu0 %1824, %v1812
  %v1826 = vpop.permute.xlu0 %1825
  %v1828 = vmul.f32 %v1826, %v1725
  %1829 = vset.pattern.permute.xlu0 18
  %1830 = vperm.xlu0 %1829, %v1812
  %v1831 = vpop.permute.xlu0 %1830
  %v1833 = vmul.f32 %v1831, %v1726
  %1834 = vset.pattern.permute.xlu0 19
  %1835 = vperm.xlu0 %1834, %v1812
  %v1836 = vpop.permute.xlu0 %1835
  %v1838 = vmul.f32 %v1836, %v1727
  %v1839 = vadd.f32 %v1818, %v1823
  %v1840 = vadd.f32 %v1828, %v1833
  %v1841 = vadd.f32 %v1839, %v1840
  %v1842 = vadd.f32 %v1838, %v1706
  %v1843 = vadd.f32 %v1841, %v1842
  %v1844 = vmul.f32 %v1843, 0.5
  %v1845 = vtanh.pop %v1844
  %v1846 = vmul.f32 %v1845, 0.5
  %v1847 = vadd.f32 %v1846, 0.5
  %v1848 = vtanh.pop %v1843
  %v1849 = vmul.f32 %v1847, %v1806
  %1851 = vrot.lane.b32.xlu0 %v1848, 118
  %v1852 = vpop.permute.xlu0 %1851
  %v1854 = vmul.f32 %v1847, %v1852
  %1856 = vrot.lane.b32.xlu0 %v1854, 5
  %v1857 = vpop.permute.xlu0 %1856
  %v1859 = vadd.f32 %v1849, %v1857
  %v1860 = vtanh.pop %v1859
  %1862 = vrot.lane.b32.xlu0 %v1860, 10
  %v1863 = vpop.permute.xlu0 %1862
  %v1865 = vmul.f32 %v1847, %v1863
  %1867 = vset.pattern.permute.xlu0 15
  %1868 = vperm.xlu0 %1867, %v1865
  %v1869 = vpop.permute.xlu0 %1868
  %v1871 = vmul.f32 %v1869, %v1723
  %1872 = vset.pattern.permute.xlu0 16
  %1873 = vperm.xlu0 %1872, %v1865
  %v1874 = vpop.permute.xlu0 %1873
  %v1876 = vmul.f32 %v1874, %v1724
  %1877 = vset.pattern.permute.xlu0 17
  %1878 = vperm.xlu0 %1877, %v1865
  %v1879 = vpop.permute.xlu0 %1878
  %v1881 = vmul.f32 %v1879, %v1725
  %1882 = vset.pattern.permute.xlu0 18
  %1883 = vperm.xlu0 %1882, %v1865
  %v1884 = vpop.permute.xlu0 %1883
  %v1886 = vmul.f32 %v1884, %v1726
  %1887 = vset.pattern.permute.xlu0 19
  %1888 = vperm.xlu0 %1887, %v1865
  %v1889 = vpop.permute.xlu0 %1888
  %v1891 = vmul.f32 %v1889, %v1727
  %v1892 = vadd.f32 %v1871, %v1876
  %v1893 = vadd.f32 %v1881, %v1886
  %v1894 = vadd.f32 %v1892, %v1893
  %v1895 = vadd.f32 %v1891, %v1709
  %v1896 = vadd.f32 %v1894, %v1895
  %v1897 = vmul.f32 %v1896, 0.5
  %v1898 = vtanh.pop %v1897
  %v1899 = vmul.f32 %v1898, 0.5
  %v1900 = vadd.f32 %v1899, 0.5
  %v1901 = vtanh.pop %v1896
  %v1902 = vmul.f32 %v1900, %v1859
  %1904 = vrot.lane.b32.xlu0 %v1901, 118
  %v1905 = vpop.permute.xlu0 %1904
  %v1907 = vmul.f32 %v1900, %v1905
  %1909 = vrot.lane.b32.xlu0 %v1907, 5
  %v1910 = vpop.permute.xlu0 %1909
  %v1912 = vadd.f32 %v1902, %v1910
  %v1913 = vtanh.pop %v1912
  %1915 = vrot.lane.b32.xlu0 %v1913, 10
  %v1916 = vpop.permute.xlu0 %1915
  %v1918 = vmul.f32 %v1900, %v1916
  %1920 = vset.pattern.permute.xlu0 15
  %1921 = vperm.xlu0 %1920, %v1918
  %v1922 = vpop.permute.xlu0 %1921
  %v1924 = vmul.f32 %v1922, %v1723
  %1925 = vset.pattern.permute.xlu0 16
  %1926 = vperm.xlu0 %1925, %v1918
  %v1927 = vpop.permute.xlu0 %1926
  %v1929 = vmul.f32 %v1927, %v1724
  %1930 = vset.pattern.permute.xlu0 17
  %1931 = vperm.xlu0 %1930, %v1918
  %v1932 = vpop.permute.xlu0 %1931
  %v1934 = vmul.f32 %v1932, %v1725
  %1935 = vset.pattern.permute.xlu0 18
  %1936 = vperm.xlu0 %1935, %v1918
  %v1937 = vpop.permute.xlu0 %1936
  %v1939 = vmul.f32 %v1937, %v1726
  %1940 = vset.pattern.permute.xlu0 19
  %1941 = vperm.xlu0 %1940, %v1918
  %v1942 = vpop.permute.xlu0 %1941
  %v1944 = vmul.f32 %v1942, %v1727
  %v1945 = vadd.f32 %v1924, %v1929
  %v1946 = vadd.f32 %v1934, %v1939
  %v1947 = vadd.f32 %v1945, %v1946
  %v1948 = vadd.f32 %v1944, %v1712
  %v1949 = vadd.f32 %v1947, %v1948
  %v1950 = vmul.f32 %v1949, 0.5
  %v1951 = vtanh.pop %v1950
  %v1952 = vmul.f32 %v1951, 0.5
  %v1953 = vadd.f32 %v1952, 0.5
  %v1954 = vtanh.pop %v1949
  %v1955 = vmul.f32 %v1953, %v1912
  %1957 = vrot.lane.b32.xlu0 %v1954, 118
  %v1958 = vpop.permute.xlu0 %1957
  %v1960 = vmul.f32 %v1953, %v1958
  %1962 = vrot.lane.b32.xlu0 %v1960, 5
  %v1963 = vpop.permute.xlu0 %1962
  %v1965 = vadd.f32 %v1955, %v1963
  %v1966 = vtanh.pop %v1965
  %1968 = vrot.lane.b32.xlu0 %v1966, 10
  %v1969 = vpop.permute.xlu0 %1968
  %v1971 = vmul.f32 %v1953, %v1969
  %1973 = vset.pattern.permute.xlu0 15
  %1974 = vperm.xlu0 %1973, %v1971
  %v1975 = vpop.permute.xlu0 %1974
  %v1977 = vmul.f32 %v1975, %v1723
  %1978 = vset.pattern.permute.xlu0 16
  %1979 = vperm.xlu0 %1978, %v1971
  %v1980 = vpop.permute.xlu0 %1979
  %v1982 = vmul.f32 %v1980, %v1724
  %1983 = vset.pattern.permute.xlu0 17
  %1984 = vperm.xlu0 %1983, %v1971
  %v1985 = vpop.permute.xlu0 %1984
  %v1987 = vmul.f32 %v1985, %v1725
  %1988 = vset.pattern.permute.xlu0 18
  %1989 = vperm.xlu0 %1988, %v1971
  %v1990 = vpop.permute.xlu0 %1989
  %v1992 = vmul.f32 %v1990, %v1726
  %1993 = vset.pattern.permute.xlu0 19
  %1994 = vperm.xlu0 %1993, %v1971
  %v1995 = vpop.permute.xlu0 %1994
  %v1997 = vmul.f32 %v1995, %v1727
  %v1998 = vadd.f32 %v1977, %v1982
  %v1999 = vadd.f32 %v1987, %v1992
  %v2000 = vadd.f32 %v1998, %v1999
  %v2001 = vadd.f32 %v1997, %v1715
  %v2002 = vadd.f32 %v2000, %v2001
  %v2003 = vmul.f32 %v2002, 0.5
  %v2004 = vtanh.pop %v2003
  %v2005 = vmul.f32 %v2004, 0.5
  %v2006 = vadd.f32 %v2005, 0.5
  %v2007 = vtanh.pop %v2002
  %v2008 = vmul.f32 %v2006, %v1965
  %2010 = vrot.lane.b32.xlu0 %v2007, 118
  %v2011 = vpop.permute.xlu0 %2010
  %v2013 = vmul.f32 %v2006, %v2011
  %2015 = vrot.lane.b32.xlu0 %v2013, 5
  %v2016 = vpop.permute.xlu0 %2015
  %v2018 = vadd.f32 %v2008, %v2016
  %v2019 = vtanh.pop %v2018
  %2021 = vrot.lane.b32.xlu0 %v2019, 10
  %v2022 = vpop.permute.xlu0 %2021
  %v2024 = vmul.f32 %v2006, %v2022
  %2026 = vset.pattern.permute.xlu0 15
  %2027 = vperm.xlu0 %2026, %v2024
  %v2028 = vpop.permute.xlu0 %2027
  %v2030 = vmul.f32 %v2028, %v1723
  %2031 = vset.pattern.permute.xlu0 16
  %2032 = vperm.xlu0 %2031, %v2024
  %v2033 = vpop.permute.xlu0 %2032
  %v2035 = vmul.f32 %v2033, %v1724
  %2036 = vset.pattern.permute.xlu0 17
  %2037 = vperm.xlu0 %2036, %v2024
  %v2038 = vpop.permute.xlu0 %2037
  %v2040 = vmul.f32 %v2038, %v1725
  %2041 = vset.pattern.permute.xlu0 18
  %2042 = vperm.xlu0 %2041, %v2024
  %v2043 = vpop.permute.xlu0 %2042
  %v2045 = vmul.f32 %v2043, %v1726
  %2046 = vset.pattern.permute.xlu0 19
  %2047 = vperm.xlu0 %2046, %v2024
  %v2048 = vpop.permute.xlu0 %2047
  %v2050 = vmul.f32 %v2048, %v1727
  %v2051 = vadd.f32 %v2030, %v2035
  %v2052 = vadd.f32 %v2040, %v2045
  %v2053 = vadd.f32 %v2051, %v2052
  %v2054 = vadd.f32 %v2050, %v1718
  %v2055 = vadd.f32 %v2053, %v2054
  %v2056 = vmul.f32 %v2055, 0.5
  %v2057 = vtanh.pop %v2056
  %v2058 = vmul.f32 %v2057, 0.5
  %v2059 = vadd.f32 %v2058, 0.5
  %v2060 = vtanh.pop %v2055
  %v2061 = vmul.f32 %v2059, %v2018
  %2063 = vrot.lane.b32.xlu0 %v2060, 118
  %v2064 = vpop.permute.xlu0 %2063
  %v2066 = vmul.f32 %v2059, %v2064
  %2068 = vrot.lane.b32.xlu0 %v2066, 5
  %v2069 = vpop.permute.xlu0 %2068
  %v2071 = vadd.f32 %v2061, %v2069
  %v2072 = vtanh.pop %v2071
  %2074 = vrot.lane.b32.xlu0 %v2072, 10
  %v2075 = vpop.permute.xlu0 %2074
  %v2077 = vmul.f32 %v2059, %v2075
  %2079 = vset.pattern.permute.xlu0 15
  %2080 = vperm.xlu0 %2079, %v2077
  %v2081 = vpop.permute.xlu0 %2080
  %v2083 = vmul.f32 %v2081, %v1723
  %2084 = vset.pattern.permute.xlu0 16
  %2085 = vperm.xlu0 %2084, %v2077
  %v2086 = vpop.permute.xlu0 %2085
  %v2088 = vmul.f32 %v2086, %v1724
  %2089 = vset.pattern.permute.xlu0 17
  %2090 = vperm.xlu0 %2089, %v2077
  %v2091 = vpop.permute.xlu0 %2090
  %v2093 = vmul.f32 %v2091, %v1725
  %2094 = vset.pattern.permute.xlu0 18
  %2095 = vperm.xlu0 %2094, %v2077
  %v2096 = vpop.permute.xlu0 %2095
  %v2098 = vmul.f32 %v2096, %v1726
  %2099 = vset.pattern.permute.xlu0 19
  %2100 = vperm.xlu0 %2099, %v2077
  %v2101 = vpop.permute.xlu0 %2100
  %v2103 = vmul.f32 %v2101, %v1727
  %v2104 = vadd.f32 %v2083, %v2088
  %v2105 = vadd.f32 %v2093, %v2098
  %v2106 = vadd.f32 %v2104, %v2105
  %v2107 = vadd.f32 %v2103, %v1721
  %v2108 = vadd.f32 %v2106, %v2107
  %v2109 = vmul.f32 %v2108, 0.5
  %v2110 = vtanh.pop %v2109
  %v2111 = vmul.f32 %v2110, 0.5
  %v2112 = vadd.f32 %v2111, 0.5
  %v2113 = vtanh.pop %v2108
  %v2114 = vmul.f32 %v2112, %v2071
  %2116 = vrot.lane.b32.xlu0 %v2113, 118
  %v2117 = vpop.permute.xlu0 %2116
  %v2119 = vmul.f32 %v2112, %v2117
  %2121 = vrot.lane.b32.xlu0 %v2119, 5
  %v2122 = vpop.permute.xlu0 %2121
  %v2124 = vadd.f32 %v2114, %v2122
  %v2125 = vtanh.pop %v2124
  %2127 = vrot.lane.b32.xlu0 %v2125, 10
  %v2128 = vpop.permute.xlu0 %2127
  %v2130 = vmul.f32 %v2112, %v2128
  %v2131 = vperm.slane %v28, 0
  %2133 = vrot.lane.b32.xlu0 %v1759, 113
  %v2134 = vpop.permute.xlu0 %2133
  %2135 = vrot.lane.b32.xlu0 %v1812, 113
  %v2136 = vpop.permute.xlu0 %2135
  %2137 = vrot.lane.b32.xlu0 %v1865, 113
  %v2138 = vpop.permute.xlu0 %2137
  %2139 = vrot.lane.b32.xlu0 %v1918, 113
  %v2140 = vpop.permute.xlu0 %2139
  %2141 = vrot.lane.b32.xlu0 %v1971, 113
  %v2142 = vpop.permute.xlu0 %2141
  %2143 = vrot.lane.b32.xlu0 %v2024, 113
  %v2144 = vpop.permute.xlu0 %2143
  %2145 = vrot.lane.b32.xlu0 %v2077, 113
  %v2146 = vpop.permute.xlu0 %2145
  %2147 = vrot.lane.b32.xlu0 %v2130, 113
  %v2148 = vpop.permute.xlu0 %2147
  %v2149 = vsel %vm612, %v2134, 0
  %v2151 = vsel %vm612, %v2136, 0
  %v2153 = vsel %vm612, %v2138, 0
  %v2155 = vsel %vm612, %v2140, 0
  %v2157 = vsel %vm612, %v2142, 0
  %v2159 = vsel %vm612, %v2144, 0
  %v2161 = vsel %vm612, %v2146, 0
  %v2163 = vsel %vm612, %v2148, 0
  %v2166 = vsel %vm629, %v27, 0
  %2168 = vmatpush.msra.mxu0 0.0
  %2169 = vmatpush.msra.mxu0 0.0
  %2170 = vmatpush.msra.mxu0 0.0
  %2171 = vmatpush.msra.mxu0 0.0
  %2172 = vmatpush.msra.mxu0 0.0
  %2173 = vmatpush.msra.mxu0 0.0
  %2174 = vmatpush.msra.mxu0 0.0
  %2175 = vmatpush.msra.mxu0 0.0
  %2176 = vmatpush.msra.mxu0 0.0
  %2177 = vmatpush.msra.mxu0 0.0
  %2178 = vmatpush.msra.mxu0 0.0
  %2179 = vmatpush.msra.mxu0 0.0
  %2180 = vmatpush.msra.mxu0 0.0
  %2181 = vmatpush.msra.mxu0 0.0
  %2182 = vmatpush.msra.mxu0 0.0
  %2183 = vmatpush.msra.mxu0 %v2166
  %2184 = vmatmul.f32.gmra.mxu0 %v2149
  %v2185 = vpop.f32.mrf.mxu0
  %v2186 = vadd.f32 %v2131, %v2185
  %2187 = vmatmul.f32.gmra.mxu0 %v2151
  %v2188 = vpop.f32.mrf.mxu0
  %v2189 = vadd.f32 %v2131, %v2188
  %2190 = vmatmul.f32.gmra.mxu0 %v2153
  %v2191 = vpop.f32.mrf.mxu0
  %v2192 = vadd.f32 %v2131, %v2191
  %2193 = vmatmul.f32.gmra.mxu0 %v2155
  %v2194 = vpop.f32.mrf.mxu0
  %v2195 = vadd.f32 %v2131, %v2194
  %2196 = vmatmul.f32.gmra.mxu0 %v2157
  %v2197 = vpop.f32.mrf.mxu0
  %v2198 = vadd.f32 %v2131, %v2197
  %2199 = vmatmul.f32.gmra.mxu0 %v2159
  %v2200 = vpop.f32.mrf.mxu0
  %v2201 = vadd.f32 %v2131, %v2200
  %2202 = vmatmul.f32.gmra.mxu0 %v2161
  %v2203 = vpop.f32.mrf.mxu0
  %v2204 = vadd.f32 %v2131, %v2203
  %2205 = vmatmul.f32.gmra.mxu0 %v2163
  %v2206 = vpop.f32.mrf.mxu0
  %v2207 = vadd.f32 %v2131, %v2206
  %2208 = vdwg.mxu0
  %v2209 = vmul.f32 %v2186, 0.5
  %v2210 = vmul.f32 %v2189, 0.5
  %v2211 = vmul.f32 %v2192, 0.5
  %v2212 = vmul.f32 %v2195, 0.5
  %v2213 = vmul.f32 %v2198, 0.5
  %v2214 = vmul.f32 %v2201, 0.5
  %v2215 = vmul.f32 %v2204, 0.5
  %v2216 = vmul.f32 %v2207, 0.5
  %v2217 = vtanh.pop %v2209
  %v2218 = vtanh.pop %v2210
  %v2219 = vtanh.pop %v2211
  %v2220 = vtanh.pop %v2212
  %v2221 = vtanh.pop %v2213
  %v2222 = vtanh.pop %v2214
  %v2223 = vtanh.pop %v2215
  %v2224 = vtanh.pop %v2216
  %v2225 = vmul.f32 %v2217, 0.5
  %v2226 = vmul.f32 %v2218, 0.5
  %v2227 = vmul.f32 %v2219, 0.5
  %v2228 = vmul.f32 %v2220, 0.5
  %v2229 = vmul.f32 %v2221, 0.5
  %v2230 = vmul.f32 %v2222, 0.5
  %v2231 = vmul.f32 %v2223, 0.5
  %v2232 = vmul.f32 %v2224, 0.5
  %v2233 = vadd.f32 %v2225, 0.5
  %v2234 = vadd.f32 %v2226, 0.5
  %v2235 = vadd.f32 %v2227, 0.5
  %v2236 = vadd.f32 %v2228, 0.5
  %v2237 = vadd.f32 %v2229, 0.5
  %v2238 = vadd.f32 %v2230, 0.5
  %v2239 = vadd.f32 %v2231, 0.5
  %v2240 = vadd.f32 %v2232, 0.5
  %2241 = vst.msk [vmem:[%s3] sm:$0xff] %vm612, %v2233
  %2242 = vst.msk [vmem:[%s3 + $0x8] sm:$0xff] %vm612, %v2234
  %2243 = vst.msk [vmem:[%s3 + $0x10] sm:$0xff] %vm612, %v2235
  %2244 = vst.msk [vmem:[%s3 + $0x18] sm:$0xff] %vm612, %v2236
  %2245 = vst.msk [vmem:[%s3 + $0x20] sm:$0xff] %vm612, %v2237
  %2246 = vst.msk [vmem:[%s3 + $0x28] sm:$0xff] %vm612, %v2238
  %2247 = vst.msk [vmem:[%s3 + $0x30] sm:$0xff] %vm612, %v2239
  %2248 = vst.msk [vmem:[%s3 + $0x38] sm:$0xff] %vm612, %v2240
  // Predicated region
  $region14: #{tpu_custom_call.1} parent=0 // pred_check
    _
  $region15: #{tpu_custom_call.1} parent=0 // pred_check_branch
    %2250 = sbr.rel (0) target = $region17
  $region16: #{tpu_custom_call.1} parent=0 // pred_region
    _
  $region17: #{tpu_custom_call.1} parent=0 // pred_fallthru
    _
  // Predicated region
  $region18: #{tpu_custom_call.1} parent=0 // pred_check
    _
  $region19: #{tpu_custom_call.1} parent=0 // pred_check_branch
    %2252 = sbr.rel (0) target = $region21
  $region20: #{tpu_custom_call.1} parent=0 // pred_region
    _
  $region21: #{tpu_custom_call.1} parent=0 // pred_fallthru
    _

</llo_original>
